<compile_context>
chip_gen: v5e
topology: v5e:2x2
jax: 0.10.0
libtpu: 0.0.40
codegen_flags: <defaults>
</compile_context>

<pallas_src>
import functools

import jax
import jax.numpy as jnp
from jax.experimental import pallas as pl
from jax.experimental.pallas import tpu as pltpu

EPS = 1e-5
LANE = 128


# ----------------------------------------------------------------------------
# Pallas kernel: whole residual block for one batch element per grid step.
# ----------------------------------------------------------------------------
def _res_block_kernel(xcol_ref,  # (1, HW, 9*Cin)      bf16  conv1 im2col (K-fused)
                      w1e_ref,   # (9*Cin, 2*Coutp)    bf16  [conv1*BN1 | 1x1*BNe]
                      b1e_ref,   # (1, 2*Coutp)        f32   [BN1 shift | BNe shift]
                      w2_ref,    # (9*Coutp, Coutp)    bf16  conv2 w * BN2 scale
                      b2_ref,    # (1, Coutp)          f32   BN2 shift
                      o_ref,     # (1, HW, Coutp)      bf16
                      pad_ref,   # VMEM scratch (Ho+2, Wo+2, Coutp) bf16
                      *, Ho, Wo):
    HW = Ho * Wo
    Coutp = o_ref.shape[-1]

    # ---- conv1 (3x3) + 1x1 shortcut, fused in one MXU pass ------------------
    # Single matmul, K = 9*Cin, N = 2*Coutp (BN scales folded into weights).
    acc = jnp.dot(xcol_ref[0], w1e_ref[...],
                  preferred_element_type=jnp.float32) + b1e_ref[...]
    out1 = jnp.maximum(acc[:, :Coutp], 0.0)          # conv1+BN1+ReLU  (HW, Coutp)
    short = acc[:, Coutp:]                           # 1x1 conv + BNe shift

    # ---- conv2 (3x3, stride 1, pad 1) + BN2 shift + ReLU ---------------------
    # Zero only the 1-px border of the bf16 scratch; interior fully overwritten
    # every step (required under "parallel" sharding: scratch is per-core and
    # not zero-initialized).
    zrow = jnp.zeros((1, Wo + 2, Coutp), jnp.bfloat16)
    zcol = jnp.zeros((Ho, 1, Coutp), jnp.bfloat16)
    pad_ref[0:1, :, :] = zrow
    pad_ref[Ho + 1:Ho + 2, :, :] = zrow
    pad_ref[1:Ho + 1, 0:1, :] = zcol
    pad_ref[1:Ho + 1, Wo + 1:Wo + 2, :] = zcol
    pad_ref[1:Ho + 1, 1:Wo + 1, :] = out1.astype(jnp.bfloat16).reshape(Ho, Wo, Coutp)

    # K-fused conv2: build the (HW, 9*Coutp) im2col in VMEM (lane-aligned
    # concat of the 9 taps) and do one matmul instead of 9 dots + 8 adds.
    taps = [pad_ref[dy:dy + Ho, dx:dx + Wo, :].reshape(HW, Coutp)
            for dy in range(3) for dx in range(3)]
    xcol2 = jnp.concatenate(taps, axis=-1)           # (HW, 9*Coutp) bf16
    out2 = jnp.maximum(
        jnp.dot(xcol2, w2_ref[...], preferred_element_type=jnp.float32)
        + b2_ref[...], 0.0)

    o_ref[0] = (short + out2).astype(o_ref.dtype)


# ----------------------------------------------------------------------------
# One-time parameter packing (BN folding, channel padding, bf16 cast).
# ----------------------------------------------------------------------------
def _fold_bn_into_conv(w_oihw, bias, gamma, beta, mean, var):
    """(kh, kw, Cin, Cout) weight with BN scale folded in, plus additive shift."""
    scale = gamma / jnp.sqrt(var + EPS)               # (Cout,)
    shift = beta + (bias - mean) * scale              # (Cout,)
    w = jnp.transpose(w_oihw, (2, 3, 1, 0)) * scale   # scale over out-channels
    return w, shift


def pack_res_block_params(p):
    """Done once at model init; per-forward wrapper only does im2col + pallas."""
    Cout, Cin = p["w1"].shape[0], p["w1"].shape[1]
    Coutp = ((Cout + LANE - 1) // LANE) * LANE
    cpad = Coutp - Cout

    w1f, sh1 = _fold_bn_into_conv(p["w1"], p["b1"], p["g1"], p["beta1"],
                                  p["m1"], p["v1"])
    w2f, sh2 = _fold_bn_into_conv(p["w2"], p["b2"], p["g2"], p["beta2"],
                                  p["m2"], p["v2"])
    wef, she = _fold_bn_into_conv(p["we"], p["be"], p["ge"], p["betae"],
                                  p["me"], p["ve"])

    # conv1 weight, K-fused over taps, with the 1x1 shortcut embedded as extra
    # output columns at the centre-tap rows (dy=1, dx=1 -> rows 4*Cin:5*Cin).
    w1k = jnp.pad(w1f.reshape(9 * Cin, Cout), ((0, 0), (0, cpad)))     # (9Cin, Coutp)
    wek = jnp.pad(wef.reshape(Cin, Cout), ((0, 0), (0, cpad)))         # (Cin, Coutp)
    we_emb = jnp.zeros((9 * Cin, Coutp), jnp.float32).at[4 * Cin:5 * Cin].set(wek)
    w1e = jnp.concatenate([w1k, we_emb], axis=1).astype(jnp.bfloat16)  # (9Cin, 2Coutp)

    # conv2 weight, K-fused over taps: (9*Coutp, Coutp).
    w2k = jnp.pad(w2f, ((0, 0), (0, 0), (0, cpad), (0, cpad))) \
             .reshape(9 * Coutp, Coutp).astype(jnp.bfloat16)

    pad1 = lambda v: jnp.pad(v, (0, cpad)).astype(jnp.float32)
    b1e = jnp.concatenate([pad1(sh1), pad1(she)]).reshape(1, 2 * Coutp)
    b2k = pad1(sh2).reshape(1, Coutp)
    return dict(w1e=w1e, b1e=b1e, w2k=w2k, b2k=b2k), Cout


# ----------------------------------------------------------------------------
# Per-call wrapper: stride-dependent im2col + pallas_call.
# ----------------------------------------------------------------------------
@functools.partial(jax.jit, static_argnames=("stride", "cout"))
def res_block_pallas(x_nchw, w1e, b1e, w2k, b2k, *, stride, cout):
    x = jnp.transpose(x_nchw, (0, 2, 3, 1)).astype(jnp.float32)   # NHWC
    N, H, W, Cin = x.shape
    Coutp = w2k.shape[-1]
    Ho = (H + 2 - 3) // stride + 1
    Wo = (W + 2 - 3) // stride + 1
    HW = Ho * Wo

    # conv1 im2col, K-fused over the 9 taps: (N, HW, 9*Cin) bf16.  The centre
    # tap (dy=1, dx=1) equals the stride-sampled input; the shortcut 1x1 conv
    # is folded into the same matmul via the extra weight columns.
    xpad = jnp.pad(x, ((0, 0), (1, 1), (1, 1), (0, 0)))
    cols = []
    for dy in range(3):
        for dx in range(3):
            sl = xpad[:,
                      dy:dy + (Ho - 1) * stride + 1:stride,
                      dx:dx + (Wo - 1) * stride + 1:stride, :]
            cols.append(sl.reshape(N, HW, Cin))
    xcol = jnp.concatenate(cols, axis=-1).astype(jnp.bfloat16)    # (N, HW, 9*Cin)

    kern = functools.partial(_res_block_kernel, Ho=Ho, Wo=Wo)

    out = pl.pallas_call(
        kern,
        out_shape=jax.ShapeDtypeStruct((N, HW, Coutp), jnp.bfloat16),
        grid=(N,),
        in_specs=[
            pl.BlockSpec((1, HW, 9 * Cin), lambda n: (n, 0, 0)),
            pl.BlockSpec((9 * Cin, 2 * Coutp), lambda n: (0, 0)),
            pl.BlockSpec((1, 2 * Coutp), lambda n: (0, 0)),
            pl.BlockSpec((9 * Coutp, Coutp), lambda n: (0, 0)),
            pl.BlockSpec((1, Coutp), lambda n: (0, 0)),
        ],
        out_specs=pl.BlockSpec((1, HW, Coutp), lambda n: (n, 0, 0)),
        scratch_shapes=[pltpu.VMEM((Ho + 2, Wo + 2, Coutp), jnp.bfloat16)],
        compiler_params=pltpu.CompilerParams(
            dimension_semantics=("parallel",),
            vmem_limit_bytes=32 * 1024 * 1024),
    )(xcol, w1e, b1e, w2k, b2k)

    out = out[:, :, :cout]                            # strip lane padding
    return jnp.transpose(out.reshape(N, Ho, Wo, cout), (0, 3, 1, 2))


# ----------------------------------------------------------------------------
# Pure-JAX reference (eval-mode BN), for correctness checking.
# ----------------------------------------------------------------------------
def res_block_ref(x, p, stride):
    def conv(x, w, b, s, pad):
        y = jax.lax.conv_general_dilated(
            x, w, (s, s), pad, dimension_numbers=("NCHW", "OIHW", "NCHW"))
        return y + b[None, :, None, None]

    def bn(x, g, beta, m, v):
        return ((x - m[None, :, None, None])
                / jnp.sqrt(v[None, :, None, None] + EPS)
                * g[None, :, None, None] + beta[None, :, None, None])

    out = jax.nn.relu(bn(conv(x, p["w1"], p["b1"], stride, ((1, 1), (1, 1))),
                         p["g1"], p["beta1"], p["m1"], p["v1"]))
    out = jax.nn.relu(bn(conv(out, p["w2"], p["b2"], 1, ((1, 1), (1, 1))),
                         p["g2"], p["beta2"], p["m2"], p["v2"]))
    short = bn(conv(x, p["we"], p["be"], stride, ((0, 0), (0, 0))),
               p["ge"], p["betae"], p["me"], p["ve"])
    return short + out


def init_params(key, cin, cout):
    ks = jax.random.split(key, 18)
    r = lambda k, s, sc=0.1: sc * jax.random.normal(k, s, jnp.float32)
    return dict(
        w1=r(ks[0], (cout, cin, 3, 3)), b1=r(ks[1], (cout,)),
        g1=1.0 + r(ks[2], (cout,)), beta1=r(ks[3], (cout,)),
        m1=r(ks[4], (cout,)), v1=1.0 + jnp.abs(r(ks[5], (cout,))),
        w2=r(ks[6], (cout, cout, 3, 3)), b2=r(ks[7], (cout,)),
        g2=1.0 + r(ks[8], (cout,)), beta2=r(ks[9], (cout,)),
        m2=r(ks[10], (cout,)), v2=1.0 + jnp.abs(r(ks[11], (cout,))),
        we=r(ks[12], (cout, cin, 1, 1)), be=r(ks[13], (cout,)),
        ge=1.0 + r(ks[14], (cout,)), betae=r(ks[15], (cout,)),
        me=r(ks[16], (cout,)), ve=1.0 + jnp.abs(r(ks[17], (cout,))),
    )


if __name__ == "__main__":
    key = jax.random.PRNGKey(0)
    kx, kp = jax.random.split(key)

    N, Cin, Cout, H, W = 2, 4, 8, 16, 16
    x = jax.random.normal(kx, (N, Cin, H, W), jnp.float32)
    params = init_params(kp, Cin, Cout)

    packed, cout = pack_res_block_params(params)      # one-time weight packing
    packed = jax.tree_util.tree_map(jax.block_until_ready, packed)

    ok = True
    for stride in (1, 2):
        y = res_block_pallas(x, packed["w1e"], packed["b1e"],
                             packed["w2k"], packed["b2k"],
                             stride=stride, cout=cout)
        jax.block_until_ready(y)
        y_ref = res_block_ref(x, params, stride)
        # bf16 matmul inputs + bf16 output -> relaxed but meaningful tolerance
        ok &= bool(jnp.allclose(y.astype(jnp.float32), y_ref,
                                atol=5e-2, rtol=5e-2))

    if ok:
        print("KERNEL_OK")
</pallas_src>

<mosaic_0001>
module attributes {stable_mosaic.version = 11 : i64} {
  func.func @_res_block_kernel(%arg0: i32, %arg1: memref<1x256x36xbf16, #tpu.memory_space<vmem>>, %arg2: memref<36x256xbf16, #tpu.memory_space<vmem>>, %arg3: memref<1x256xf32, #tpu.memory_space<vmem>>, %arg4: memref<1152x128xbf16, #tpu.memory_space<vmem>>, %arg5: memref<1x128xf32, #tpu.memory_space<vmem>>, %arg6: memref<1x256x128xbf16, #tpu.memory_space<vmem>>, %arg7: memref<18x18x128xbf16, #tpu.memory_space<vmem>>) attributes {dimension_semantics = [#tpu.dimension_semantics<parallel>], iteration_bounds = array<i64: 2>, scalar_prefetch = 0 : i64, scratch_operands = 1 : i64, tpu.core_type = #tpu.core_type<tc>, window_params = [{transform_indices = @transform_0, window_bounds = array<i64: 1, 256, 36>}, {pipeline_mode = #tpu.pipeline_mode<synchronous>, transform_indices = @transform_1, window_bounds = array<i64: 36, 256>}, {pipeline_mode = #tpu.pipeline_mode<synchronous>, transform_indices = @transform_2, window_bounds = array<i64: 1, 256>}, {pipeline_mode = #tpu.pipeline_mode<synchronous>, transform_indices = @transform_3, window_bounds = array<i64: 1152, 128>}, {pipeline_mode = #tpu.pipeline_mode<synchronous>, transform_indices = @transform_4, window_bounds = array<i64: 1, 128>}, {transform_indices = @transform_5, window_bounds = array<i64: 1, 256, 128>}]} {
    %c0 = arith.constant 0 : index
    %c0_0 = arith.constant 0 : index
    %c0_1 = arith.constant 0 : index
    %0 = vector.load %arg1[%c0, %c0_0, %c0_1] : memref<1x256x36xbf16, #tpu.memory_space<vmem>>, vector<1x256x36xbf16>
    %1 = vector.shape_cast %0 : vector<1x256x36xbf16> to vector<256x36xbf16>
    %c0_2 = arith.constant 0 : index
    %c0_3 = arith.constant 0 : index
    %2 = vector.load %arg2[%c0_2, %c0_3] : memref<36x256xbf16, #tpu.memory_space<vmem>>, vector<36x256xbf16>
    %cst = arith.constant dense<0.000000e+00> : vector<256x256xf32>
    %3 = tpu.matmul %1, %2, %cst {dimension_numbers = #tpu.dot_dimension_numbers<[1], [0], [0], [1], [0, 0, 1, 1], [], []>} : vector<256x36xbf16>, vector<36x256xbf16>, vector<256x256xf32> -> vector<256x256xf32>
    %c0_4 = arith.constant 0 : index
    %c0_5 = arith.constant 0 : index
    %4 = vector.load %arg3[%c0_4, %c0_5] : memref<1x256xf32, #tpu.memory_space<vmem>>, vector<1x256xf32>
    %5 = vector.broadcast %4 : vector<1x256xf32> to vector<256x256xf32>
    %6 = arith.addf %3, %5 : vector<256x256xf32>
    %7 = vector.extract_strided_slice %6 {offsets = [0, 0], sizes = [256, 128], strides = [1, 1]} : vector<256x256xf32> to vector<256x128xf32>
    %cst_6 = arith.constant 0.000000e+00 : f32
    %8 = vector.broadcast %cst_6 : f32 to vector<256x128xf32>
    %9 = arith.maximumf %7, %8 : vector<256x128xf32>
    %10 = vector.extract_strided_slice %6 {offsets = [0, 128], sizes = [256, 128], strides = [1, 1]} : vector<256x256xf32> to vector<256x128xf32>
    %cst_7 = arith.constant 0.000000e+00 : bf16
    %11 = vector.broadcast %cst_7 : bf16 to vector<1x18x128xbf16>
    %cst_8 = arith.constant 0.000000e+00 : bf16
    %12 = vector.broadcast %cst_8 : bf16 to vector<16x1x128xbf16>
    %c0_9 = arith.constant 0 : index
    %c0_10 = arith.constant 0 : index
    %c0_11 = arith.constant 0 : index
    %13 = vector.load %arg7[%c0_9, %c0_10, %c0_11] : memref<18x18x128xbf16, #tpu.memory_space<vmem>>, vector<1x18x128xbf16>
    tpu.vector_store %arg7[%c0_9, %c0_10, %c0_11], %11 {strides = array<i32>} : memref<18x18x128xbf16, #tpu.memory_space<vmem>>, vector<1x18x128xbf16>,
    %c17 = arith.constant 17 : index
    %c0_12 = arith.constant 0 : index
    %c0_13 = arith.constant 0 : index
    %14 = vector.load %arg7[%c17, %c0_12, %c0_13] : memref<18x18x128xbf16, #tpu.memory_space<vmem>>, vector<1x18x128xbf16>
    tpu.vector_store %arg7[%c17, %c0_12, %c0_13], %11 {strides = array<i32>} : memref<18x18x128xbf16, #tpu.memory_space<vmem>>, vector<1x18x128xbf16>,
    %c1 = arith.constant 1 : index
    %c0_14 = arith.constant 0 : index
    %c0_15 = arith.constant 0 : index
    %15 = vector.load %arg7[%c1, %c0_14, %c0_15] : memref<18x18x128xbf16, #tpu.memory_space<vmem>>, vector<16x1x128xbf16>
    tpu.vector_store %arg7[%c1, %c0_14, %c0_15], %12 {strides = array<i32>} : memref<18x18x128xbf16, #tpu.memory_space<vmem>>, vector<16x1x128xbf16>,
    %c1_16 = arith.constant 1 : index
    %c17_17 = arith.constant 17 : index
    %c0_18 = arith.constant 0 : index
    %16 = vector.load %arg7[%c1_16, %c17_17, %c0_18] : memref<18x18x128xbf16, #tpu.memory_space<vmem>>, vector<16x1x128xbf16>
    tpu.vector_store %arg7[%c1_16, %c17_17, %c0_18], %12 {strides = array<i32>} : memref<18x18x128xbf16, #tpu.memory_space<vmem>>, vector<16x1x128xbf16>,
    %17 = arith.truncf %9 : vector<256x128xf32> to vector<256x128xbf16>
    %18 = vector.shape_cast %17 : vector<256x128xbf16> to vector<16x16x128xbf16>
    %c1_19 = arith.constant 1 : index
    %c1_20 = arith.constant 1 : index
    %c0_21 = arith.constant 0 : index
    %19 = vector.load %arg7[%c1_19, %c1_20, %c0_21] : memref<18x18x128xbf16, #tpu.memory_space<vmem>>, vector<16x16x128xbf16>
    tpu.vector_store %arg7[%c1_19, %c1_20, %c0_21], %18 {strides = array<i32>} : memref<18x18x128xbf16, #tpu.memory_space<vmem>>, vector<16x16x128xbf16>,
    %c0_22 = arith.constant 0 : index
    %c0_23 = arith.constant 0 : index
    %c0_24 = arith.constant 0 : index
    %20 = vector.load %arg7[%c0_22, %c0_23, %c0_24] : memref<18x18x128xbf16, #tpu.memory_space<vmem>>, vector<16x16x128xbf16>
    %21 = vector.shape_cast %20 : vector<16x16x128xbf16> to vector<256x128xbf16>
    %c0_25 = arith.constant 0 : index
    %c1_26 = arith.constant 1 : index
    %c0_27 = arith.constant 0 : index
    %22 = vector.load %arg7[%c0_25, %c1_26, %c0_27] : memref<18x18x128xbf16, #tpu.memory_space<vmem>>, vector<16x16x128xbf16>
    %23 = vector.shape_cast %22 : vector<16x16x128xbf16> to vector<256x128xbf16>
    %c0_28 = arith.constant 0 : index
    %c2 = arith.constant 2 : index
    %c0_29 = arith.constant 0 : index
    %24 = vector.load %arg7[%c0_28, %c2, %c0_29] : memref<18x18x128xbf16, #tpu.memory_space<vmem>>, vector<16x16x128xbf16>
    %25 = vector.shape_cast %24 : vector<16x16x128xbf16> to vector<256x128xbf16>
    %c1_30 = arith.constant 1 : index
    %c0_31 = arith.constant 0 : index
    %c0_32 = arith.constant 0 : index
    %26 = vector.load %arg7[%c1_30, %c0_31, %c0_32] : memref<18x18x128xbf16, #tpu.memory_space<vmem>>, vector<16x16x128xbf16>
    %27 = vector.shape_cast %26 : vector<16x16x128xbf16> to vector<256x128xbf16>
    %c1_33 = arith.constant 1 : index
    %c1_34 = arith.constant 1 : index
    %c0_35 = arith.constant 0 : index
    %28 = vector.load %arg7[%c1_33, %c1_34, %c0_35] : memref<18x18x128xbf16, #tpu.memory_space<vmem>>, vector<16x16x128xbf16>
    %29 = vector.shape_cast %28 : vector<16x16x128xbf16> to vector<256x128xbf16>
    %c1_36 = arith.constant 1 : index
    %c2_37 = arith.constant 2 : index
    %c0_38 = arith.constant 0 : index
    %30 = vector.load %arg7[%c1_36, %c2_37, %c0_38] : memref<18x18x128xbf16, #tpu.memory_space<vmem>>, vector<16x16x128xbf16>
    %31 = vector.shape_cast %30 : vector<16x16x128xbf16> to vector<256x128xbf16>
    %c2_39 = arith.constant 2 : index
    %c0_40 = arith.constant 0 : index
    %c0_41 = arith.constant 0 : index
    %32 = vector.load %arg7[%c2_39, %c0_40, %c0_41] : memref<18x18x128xbf16, #tpu.memory_space<vmem>>, vector<16x16x128xbf16>
    %33 = vector.shape_cast %32 : vector<16x16x128xbf16> to vector<256x128xbf16>
    %c2_42 = arith.constant 2 : index
    %c1_43 = arith.constant 1 : index
    %c0_44 = arith.constant 0 : index
    %34 = vector.load %arg7[%c2_42, %c1_43, %c0_44] : memref<18x18x128xbf16, #tpu.memory_space<vmem>>, vector<16x16x128xbf16>
    %35 = vector.shape_cast %34 : vector<16x16x128xbf16> to vector<256x128xbf16>
    %c2_45 = arith.constant 2 : index
    %c2_46 = arith.constant 2 : index
    %c0_47 = arith.constant 0 : index
    %36 = vector.load %arg7[%c2_45, %c2_46, %c0_47] : memref<18x18x128xbf16, #tpu.memory_space<vmem>>, vector<16x16x128xbf16>
    %37 = vector.shape_cast %36 : vector<16x16x128xbf16> to vector<256x128xbf16>
    %38 = tpu.concatenate %21, %23, %25, %27, %29, %31, %33, %35, %37 in 1 : vector<256x128xbf16>, vector<256x128xbf16>, vector<256x128xbf16>, vector<256x128xbf16>, vector<256x128xbf16>, vector<256x128xbf16>, vector<256x128xbf16>, vector<256x128xbf16>, vector<256x128xbf16> -> vector<256x1152xbf16>
    %c0_48 = arith.constant 0 : index
    %c0_49 = arith.constant 0 : index
    %39 = vector.load %arg4[%c0_48, %c0_49] : memref<1152x128xbf16, #tpu.memory_space<vmem>>, vector<1152x128xbf16>
    %cst_50 = arith.constant dense<0.000000e+00> : vector<256x128xf32>
    %40 = tpu.matmul %38, %39, %cst_50 {dimension_numbers = #tpu.dot_dimension_numbers<[1], [0], [0], [1], [0, 0, 1, 1], [], []>} : vector<256x1152xbf16>, vector<1152x128xbf16>, vector<256x128xf32> -> vector<256x128xf32>
    %c0_51 = arith.constant 0 : index
    %c0_52 = arith.constant 0 : index
    %41 = vector.load %arg5[%c0_51, %c0_52] : memref<1x128xf32, #tpu.memory_space<vmem>>, vector<1x128xf32>
    %42 = vector.broadcast %41 : vector<1x128xf32> to vector<256x128xf32>
    %43 = arith.addf %40, %42 : vector<256x128xf32>
    %cst_53 = arith.constant 0.000000e+00 : f32
    %44 = vector.broadcast %cst_53 : f32 to vector<256x128xf32>
    %45 = arith.maximumf %43, %44 : vector<256x128xf32>
    %46 = arith.addf %10, %45 : vector<256x128xf32>
    %47 = arith.truncf %46 : vector<256x128xf32> to vector<256x128xbf16>
    %c0_54 = arith.constant 0 : index
    %c0_55 = arith.constant 0 : index
    %c0_56 = arith.constant 0 : index
    %48 = vector.load %arg6[%c0_54, %c0_55, %c0_56] : memref<1x256x128xbf16, #tpu.memory_space<vmem>>, vector<1x256x128xbf16>
    %49 = vector.shape_cast %48 : vector<1x256x128xbf16> to vector<256x128xbf16>
    %50 = vector.shape_cast %47 : vector<256x128xbf16> to vector<1x256x128xbf16>
    tpu.vector_store %arg6[%c0_54, %c0_55, %c0_56], %50 {strides = array<i32>} : memref<1x256x128xbf16, #tpu.memory_space<vmem>>, vector<1x256x128xbf16>,
    return
  }
  func.func @transform_0(%arg0: i32) -> (i32, i32, i32) {
    %c0_i32 = arith.constant 0 : i32
    %c0_i32_0 = arith.constant 0 : i32
    %c0_i32_1 = arith.constant 0 : i32
    return %arg0, %c0_i32, %c0_i32_0 : i32, i32, i32
  }
  func.func @transform_1(%arg0: i32) -> (i32, i32) {
    %c0_i32 = arith.constant 0 : i32
    %c0_i32_0 = arith.constant 0 : i32
    %c0_i32_1 = arith.constant 0 : i32
    return %c0_i32, %c0_i32_0 : i32, i32
  }
  func.func @transform_2(%arg0: i32) -> (i32, i32) {
    %c0_i32 = arith.constant 0 : i32
    %c0_i32_0 = arith.constant 0 : i32
    %c0_i32_1 = arith.constant 0 : i32
    return %c0_i32, %c0_i32_0 : i32, i32
  }
  func.func @transform_3(%arg0: i32) -> (i32, i32) {
    %c0_i32 = arith.constant 0 : i32
    %c0_i32_0 = arith.constant 0 : i32
    %c0_i32_1 = arith.constant 0 : i32
    return %c0_i32, %c0_i32_0 : i32, i32
  }
  func.func @transform_4(%arg0: i32) -> (i32, i32) {
    %c0_i32 = arith.constant 0 : i32
    %c0_i32_0 = arith.constant 0 : i32
    %c0_i32_1 = arith.constant 0 : i32
    return %c0_i32, %c0_i32_0 : i32, i32
  }
  func.func @transform_5(%arg0: i32) -> (i32, i32, i32) {
    %c0_i32 = arith.constant 0 : i32
    %c0_i32_0 = arith.constant 0 : i32
    %c0_i32_1 = arith.constant 0 : i32
    return %arg0, %c0_i32, %c0_i32_0 : i32, i32, i32
  }
}

</mosaic_0001>

<llo_original>
// kernel: res_block_pallas.1
$region0: #{res_block_pallas.1}
  #allocation0 [shape = 'u32[]', space=smem, size = 0x4, offset = 0x4, fixed_abs, tag = 'smem constant byte address 0x4 - core index']
  #allocation1 [shape = 'u32[72,128]{1,0:T(1,128)}', space=vmem, size = 0x9000, scoped, tag = 'internal scratch']
  #allocation2 [shape = 'bf16[18,18,128]{2,1,0:T(8,128)(2,1)}', space=vmem, size = 0x1b000, scoped, tag = 'scratch operand']
  %s0 = inlined_call_operand.vmem [shape: bf16[2,256,36], index: 0, kind: input, shape index: {}]
  %s1 = inlined_call_operand.vmem [shape: bf16[36,256], index: 1, kind: input, shape index: {}]
  %s2 = inlined_call_operand.vmem [shape: f32[1,256], index: 2, kind: input, shape index: {}]
  %s3 = inlined_call_operand.vmem [shape: bf16[1152,128], index: 3, kind: input, shape index: {}]
  %s4 = inlined_call_operand.vmem [shape: f32[1,128], index: 4, kind: input, shape index: {}]
  %s5 = inlined_call_operand.vmem [shape: bf16[2,256,128], index: 5, kind: output, shape index: {}]
  %s6 = sld [smem:[#allocation0]]
  $region53: #{res_block_pallas.1} parent=0
    _
  %s8 = ssub.s32 1, %s6
  %s9 = scalar_select 0, %s8, %s6
  loop: start=0, step=1, limit=4
  $region2: #{res_block_pallas.1} parent=0 // loop_pre_header
    _
  $region3: #{res_block_pallas.1} parent=0 // loop_header
    %s11 = sphi 0, %s15
    %p12 = scmp.ge.s32.totalorder %s11, 4
    %s21 = sphi 0, %s23
    %s24 = sphi 0, %s21
    %s25 = sphi 0, %s24
    %s41 = sphi 0, %s25
    %s45 = sphi 0, %s45
    %s47 = sphi 0, %s45
    %s48 = sphi 0, %s47
    %s62 = sphi 0, %s48
    %s66 = sphi 0, %s66
    %s68 = sphi 0, %s66
    %s69 = sphi 0, %s68
    %s83 = sphi 0, %s69
    %s87 = sphi 0, %s87
    %s89 = sphi 0, %s87
    %s90 = sphi 0, %s89
    %s104 = sphi 0, %s90
    %s108 = sphi 0, %s108
    %s110 = sphi 0, %s108
    %s111 = sphi 0, %s110
    %s125 = sphi 0, %s111
    %s131 = sphi 0, %s133
    %s134 = sphi 0, %s131
    %s135 = sphi 0, %s134
    %s151 = sphi 0, %s135
  $region4: #{res_block_pallas.1} parent=0 // loop_header_branch
    %14 = sbr.rel (%p12) target = $region8
  $region5: #{res_block_pallas.1} parent=0 // loop_body
    %s16 = ssub.s32 %s11, 1
    %s17 = ssub.s32 %s11, 2
    %s18 = sadd.s32 %s11, 1
    %s19 = ssub.s32 %s11, %s18
    %p20 = scmp.eq.s32.totalorder %s19, 0
    %s22 = sadd.s32 %s21, 1
    %s23 = scalar_select %p20, %s21, %s22
    %p26 = pneg %p20
    %p27 = scmp.eq.s32.totalorder %s11, 1
    %p28 = por %p26, %p27
    %p29 = scmp.ne.s32.totalorder %s21, %s24
    %p30 = scmp.eq.s32.totalorder %s11, 0
    %p31 = por %p29, %p30
    %p32 = scmp.ne.s32.totalorder %s21, %s24
    %p33 = scmp.eq.s32.totalorder %s16, 1
    %p34 = por %p32, %p33
    %p35 = scmp.ne.s32.totalorder %s24, %s25
    %p36 = scmp.eq.s32.totalorder %s16, 0
    %p37 = por %p35, %p36
    %p38 = scmp.ne.s32.totalorder %s24, %s25
    %p39 = scmp.eq.s32.totalorder %s17, 1
    %p40 = por %p38, %p39
    %p42 = scmp.ne.s32.totalorder %s25, %s41
    %p43 = scmp.eq.s32.totalorder %s17, 0
    %p44 = por %p42, %p43
    %s46 = sadd.s32 %s45, 1
    %p49 = scmp.eq.s32.totalorder %s11, 1
    %p50 = scmp.ne.s32.totalorder %s45, %s47
    %p51 = scmp.eq.s32.totalorder %s11, 0
    %p52 = por %p50, %p51
    %p53 = scmp.ne.s32.totalorder %s45, %s47
    %p54 = scmp.eq.s32.totalorder %s16, 1
    %p55 = por %p53, %p54
    %p56 = scmp.ne.s32.totalorder %s47, %s48
    %p57 = scmp.eq.s32.totalorder %s16, 0
    %p58 = por %p56, %p57
    %p59 = scmp.ne.s32.totalorder %s47, %s48
    %p60 = scmp.eq.s32.totalorder %s17, 1
    %p61 = por %p59, %p60
    %p63 = scmp.ne.s32.totalorder %s48, %s62
    %p64 = scmp.eq.s32.totalorder %s17, 0
    %p65 = por %p63, %p64
    %s67 = sadd.s32 %s66, 1
    %p70 = scmp.eq.s32.totalorder %s11, 1
    %p71 = scmp.ne.s32.totalorder %s66, %s68
    %p72 = scmp.eq.s32.totalorder %s11, 0
    %p73 = por %p71, %p72
    %p74 = scmp.ne.s32.totalorder %s66, %s68
    %p75 = scmp.eq.s32.totalorder %s16, 1
    %p76 = por %p74, %p75
    %p77 = scmp.ne.s32.totalorder %s68, %s69
    %p78 = scmp.eq.s32.totalorder %s16, 0
    %p79 = por %p77, %p78
    %p80 = scmp.ne.s32.totalorder %s68, %s69
    %p81 = scmp.eq.s32.totalorder %s17, 1
    %p82 = por %p80, %p81
    %p84 = scmp.ne.s32.totalorder %s69, %s83
    %p85 = scmp.eq.s32.totalorder %s17, 0
    %p86 = por %p84, %p85
    %s88 = sadd.s32 %s87, 1
    %p91 = scmp.eq.s32.totalorder %s11, 1
    %p92 = scmp.ne.s32.totalorder %s87, %s89
    %p93 = scmp.eq.s32.totalorder %s11, 0
    %p94 = por %p92, %p93
    %p95 = scmp.ne.s32.totalorder %s87, %s89
    %p96 = scmp.eq.s32.totalorder %s16, 1
    %p97 = por %p95, %p96
    %p98 = scmp.ne.s32.totalorder %s89, %s90
    %p99 = scmp.eq.s32.totalorder %s16, 0
    %p100 = por %p98, %p99
    %p101 = scmp.ne.s32.totalorder %s89, %s90
    %p102 = scmp.eq.s32.totalorder %s17, 1
    %p103 = por %p101, %p102
    %p105 = scmp.ne.s32.totalorder %s90, %s104
    %p106 = scmp.eq.s32.totalorder %s17, 0
    %p107 = por %p105, %p106
    %s109 = sadd.s32 %s108, 1
    %p112 = scmp.eq.s32.totalorder %s11, 1
    %p113 = scmp.ne.s32.totalorder %s108, %s110
    %p114 = scmp.eq.s32.totalorder %s11, 0
    %p115 = por %p113, %p114
    %p116 = scmp.ne.s32.totalorder %s108, %s110
    %p117 = scmp.eq.s32.totalorder %s16, 1
    %p118 = por %p116, %p117
    %p119 = scmp.ne.s32.totalorder %s110, %s111
    %p120 = scmp.eq.s32.totalorder %s16, 0
    %p121 = por %p119, %p120
    %p122 = scmp.ne.s32.totalorder %s110, %s111
    %p123 = scmp.eq.s32.totalorder %s17, 1
    %p124 = por %p122, %p123
    %p126 = scmp.ne.s32.totalorder %s111, %s125
    %p127 = scmp.eq.s32.totalorder %s17, 0
    %p128 = por %p126, %p127
    %s129 = ssub.s32 %s11, %s18
    %p130 = scmp.eq.s32.totalorder %s129, 0
    %s132 = sadd.s32 %s131, 1
    %s133 = scalar_select %p130, %s131, %s132
    %p136 = pneg %p130
    %p137 = scmp.eq.s32.totalorder %s11, 1
    %p138 = por %p136, %p137
    %p139 = scmp.ne.s32.totalorder %s131, %s134
    %p140 = scmp.eq.s32.totalorder %s11, 0
    %p141 = por %p139, %p140
    %p142 = scmp.ne.s32.totalorder %s131, %s134
    %p143 = scmp.eq.s32.totalorder %s16, 1
    %p144 = por %p142, %p143
    %p145 = scmp.ne.s32.totalorder %s134, %s135
    %p146 = scmp.eq.s32.totalorder %s16, 0
    %p147 = por %p145, %p146
    %p148 = scmp.ne.s32.totalorder %s134, %s135
    %p149 = scmp.eq.s32.totalorder %s17, 1
    %p150 = por %p148, %p149
    %p152 = scmp.ne.s32.totalorder %s135, %s151
    %p153 = scmp.eq.s32.totalorder %s17, 0
    %p154 = por %p152, %p153
    %p155 = scmp.le.s32.totalorder 1, %s11
    %p156 = scmp.lt.s32.totalorder %s11, 3
    %p157 = pnand %p155, %p156
    %p158 = pneg %p157
    // Predicated region
    $region9: #{res_block_pallas.1} parent=5 // pred_check
      _
    $region10: #{res_block_pallas.1} parent=5 // pred_check_branch
      %160 = sbr.rel (%p157) target = $region12
    $region11: #{res_block_pallas.1} parent=5 // pred_region
      %s161 = ssub.s32 %s11, 1
      // Predicated region
      $region13: #{res_block_pallas.1} parent=11 // pred_check
        %p162 = pneg %p58
      $region14: #{res_block_pallas.1} parent=11 // pred_check_branch
        %164 = sbr.rel (%p162) target = $region16
      $region15: #{res_block_pallas.1} parent=11 // pred_region
        _
      $region16: #{res_block_pallas.1} parent=11 // pred_fallthru
        _
      // Predicated region
      $region17: #{res_block_pallas.1} parent=11 // pred_check
        %p165 = pneg %p79
      $region18: #{res_block_pallas.1} parent=11 // pred_check_branch
        %167 = sbr.rel (%p165) target = $region20
      $region19: #{res_block_pallas.1} parent=11 // pred_region
        _
      $region20: #{res_block_pallas.1} parent=11 // pred_fallthru
        _
      // Predicated region
      $region21: #{res_block_pallas.1} parent=11 // pred_check
        %p168 = pneg %p100
      $region22: #{res_block_pallas.1} parent=11 // pred_check_branch
        %170 = sbr.rel (%p168) target = $region24
      $region23: #{res_block_pallas.1} parent=11 // pred_region
        _
      $region24: #{res_block_pallas.1} parent=11 // pred_fallthru
        _
      // Predicated region
      $region25: #{res_block_pallas.1} parent=11 // pred_check
        %p171 = pneg %p121
      $region26: #{res_block_pallas.1} parent=11 // pred_check_branch
        %173 = sbr.rel (%p171) target = $region28
      $region27: #{res_block_pallas.1} parent=11 // pred_region
        _
      $region28: #{res_block_pallas.1} parent=11 // pred_fallthru
        _
    $region12: #{res_block_pallas.1} parent=5 // pred_fallthru
      _
    %p174 = scmp.lt.s32.totalorder %s11, 2
    // Predicated region
    $region29: #{res_block_pallas.1} parent=5 // pred_check
      %p175 = pneg %p174
    $region30: #{res_block_pallas.1} parent=5 // pred_check_branch
      %177 = sbr.rel (%p175) target = $region32
    $region31: #{res_block_pallas.1} parent=5 // pred_region
      // Predicated region
      $region33: #{res_block_pallas.1} parent=31 // pred_check
        %p178 = pneg %p31
      $region34: #{res_block_pallas.1} parent=31 // pred_check_branch
        %180 = sbr.rel (%p178) target = $region36
      $region35: #{res_block_pallas.1} parent=31 // pred_region
        %p181 = scmp.lt.s32.totalorder %s11, 1
        %s182 = scalar_select %p181, %s11, 1
        %s183 = smul.addr %s182, 32
        %s184 = smul.addr %s183, 4
        %s185 = scalar_lea.vmem %s0, %s184
      $region36: #{res_block_pallas.1} parent=31 // pred_fallthru
        _
    $region32: #{res_block_pallas.1} parent=5 // pred_fallthru
      _
    %p186 = scmp.le.s32.totalorder 1, %s11
    %p187 = scmp.lt.s32.totalorder %s11, 3
    %p188 = pnand %p186, %p187
    %p189 = pneg %p188
    // Predicated region
    $region37: #{res_block_pallas.1} parent=5 // pred_check
      _
    $region38: #{res_block_pallas.1} parent=5 // pred_check_branch
      %191 = sbr.rel (%p188) target = $region40
    $region39: #{res_block_pallas.1} parent=5 // pred_region
      %s192 = ssub.s32 %s11, 1
      %p193 = scmp.lt.s32.totalorder %s16, 1
      %s194 = scalar_select %p193, %s16, 1
      %s195 = smul.addr %s194, 32
      %s196 = smul.addr %s195, 4
      %s197 = scalar_lea.vmem %s0, %s196
      %p198 = pneg %p37
      %p199 = pneg %p34
      %p200 = pneg %p58
      %p201 = pneg %p55
      %p202 = pneg %p79
      %p203 = pneg %p76
      %p204 = pneg %p100
      %p205 = pneg %p97
      %p206 = pneg %p121
      %p207 = pneg %p118
      %p208 = pneg %p147
      %p209 = pneg %p144
      %p210 = scmp.lt.s32.totalorder %s16, 1
      %s211 = scalar_select %p210, %s16, 1
      %s212 = smul.addr %s211, 32
      %s213 = smul.addr %s212, 4
      %s214 = scalar_lea.vmem %s5, %s213
      %p215 = scmp.lt.s32.totalorder %s16, 1
      %s216 = scalar_select %p215, %s16, 1
      %s217 = smul.addr %s216, 32
      %s218 = smul.addr %s217, 4
      %s219 = scalar_lea.vmem %s0, %s218
      %p220 = scmp.lt.s32.totalorder %s16, 1
      %s221 = scalar_select %p220, %s16, 1
      %s222 = smul.addr %s221, 32
      %s223 = smul.addr %s222, 4
      %s224 = scalar_lea.vmem %s5, %s223
      %v226 = vld [vmem:[%s219] sm:$0xf]
      %v227 = vld [vmem:[%s219 + $0x4] sm:$0xf]
      %v228 = vld [vmem:[%s219 + $0x8] sm:$0xf]
      %v229 = vld [vmem:[%s219 + $0xc] sm:$0xf]
      %v230 = vld [vmem:[%s219 + $0x10] sm:$0xf]
      %v231 = vld [vmem:[%s219 + $0x14] sm:$0xf]
      %v232 = vld [vmem:[%s219 + $0x18] sm:$0xf]
      %v233 = vld [vmem:[%s219 + $0x1c] sm:$0xf]
      %v234 = vld [vmem:[%s219 + $0x20] sm:$0xf]
      %v235 = vld [vmem:[%s219 + $0x24] sm:$0xf]
      %v236 = vld [vmem:[%s219 + $0x28] sm:$0xf]
      %v237 = vld [vmem:[%s219 + $0x2c] sm:$0xf]
      %v238 = vld [vmem:[%s219 + $0x30] sm:$0xf]
      %v239 = vld [vmem:[%s219 + $0x34] sm:$0xf]
      %v240 = vld [vmem:[%s219 + $0x38] sm:$0xf]
      %v241 = vld [vmem:[%s219 + $0x3c] sm:$0xf]
      %v242 = vld [vmem:[%s219 + $0x40] sm:$0xf]
      %v243 = vld [vmem:[%s219 + $0x44] sm:$0xf]
      %v244 = vld [vmem:[%s219 + $0x48] sm:$0xf]
      %v245 = vld [vmem:[%s219 + $0x4c] sm:$0xf]
      %v246 = vld [vmem:[%s219 + $0x50] sm:$0xf]
      %v247 = vld [vmem:[%s219 + $0x54] sm:$0xf]
      %v248 = vld [vmem:[%s219 + $0x58] sm:$0xf]
      %v249 = vld [vmem:[%s219 + $0x5c] sm:$0xf]
      %v250 = vld [vmem:[%s219 + $0x60] sm:$0xf]
      %v251 = vld [vmem:[%s219 + $0x64] sm:$0xf]
      %v252 = vld [vmem:[%s219 + $0x68] sm:$0xf]
      %v253 = vld [vmem:[%s219 + $0x6c] sm:$0xf]
      %v254 = vld [vmem:[%s219 + $0x70] sm:$0xf]
      %v255 = vld [vmem:[%s219 + $0x74] sm:$0xf]
      %v256 = vld [vmem:[%s219 + $0x78] sm:$0xf]
      %v257 = vld [vmem:[%s219 + $0x7c] sm:$0xf]
      %v258 = vld [vmem:[%s1] sm:$0xff]
      %v259 = vld [vmem:[%s1 + $0x8] sm:$0xff]
      %v260 = vld [vmem:[%s1 + $0x10] sm:$0xff]
      %v261 = vld [vmem:[%s1 + $0x18] sm:$0xff]
      %v262 = vld [vmem:[%s1 + $0x20] sm:$0x33]
      %v263 = vld [vmem:[%s2] sm:$0x3]
      %v265 = vperm.slane %v263, 0
      %v266 = vperm.slane %v263, 1
      %v301 = vunpack.c.l.b16 %v226
      %v302 = vunpack.c.l.b16 %v227
      %v303 = vunpack.c.l.b16 %v228
      %v304 = vunpack.c.l.b16 %v229
      %v305 = vunpack.c.l.b16 %v230
      %v306 = vunpack.c.l.b16 %v231
      %v307 = vunpack.c.l.b16 %v232
      %v308 = vunpack.c.l.b16 %v233
      %v309 = vunpack.c.l.b16 %v234
      %v310 = vunpack.c.l.b16 %v235
      %v311 = vunpack.c.l.b16 %v236
      %v312 = vunpack.c.l.b16 %v237
      %v313 = vunpack.c.l.b16 %v238
      %v314 = vunpack.c.l.b16 %v239
      %v315 = vunpack.c.l.b16 %v240
      %v316 = vunpack.c.l.b16 %v241
      %v317 = vunpack.c.l.b16 %v242
      %v318 = vunpack.c.l.b16 %v243
      %v319 = vunpack.c.l.b16 %v244
      %v320 = vunpack.c.l.b16 %v245
      %v321 = vunpack.c.l.b16 %v246
      %v322 = vunpack.c.l.b16 %v247
      %v323 = vunpack.c.l.b16 %v248
      %v324 = vunpack.c.l.b16 %v249
      %v325 = vunpack.c.l.b16 %v250
      %v326 = vunpack.c.l.b16 %v251
      %v327 = vunpack.c.l.b16 %v252
      %v328 = vunpack.c.l.b16 %v253
      %v329 = vunpack.c.l.b16 %v254
      %v330 = vunpack.c.l.b16 %v255
      %v331 = vunpack.c.l.b16 %v256
      %v332 = vunpack.c.l.b16 %v257
      %v333 = vpack.c.b16 %v302, %v301
      %v334 = vpack.c.b16 %v304, %v303
      %v335 = vpack.c.b16 %v306, %v305
      %v336 = vpack.c.b16 %v308, %v307
      %v337 = vpack.c.b16 %v310, %v309
      %v338 = vpack.c.b16 %v312, %v311
      %v339 = vpack.c.b16 %v314, %v313
      %v340 = vpack.c.b16 %v316, %v315
      %v341 = vpack.c.b16 %v318, %v317
      %v342 = vpack.c.b16 %v320, %v319
      %v343 = vpack.c.b16 %v322, %v321
      %v344 = vpack.c.b16 %v324, %v323
      %v345 = vpack.c.b16 %v326, %v325
      %v346 = vpack.c.b16 %v328, %v327
      %v347 = vpack.c.b16 %v330, %v329
      %v348 = vpack.c.b16 %v332, %v331
      %v354 = vunpack.c.l.b16 %v258
      %v355 = vunpack.c.h.b16 %v258
      %v356 = vunpack.c.l.b16 %v259
      %v357 = vunpack.c.h.b16 %v259
      %v358 = vunpack.c.l.b16 %v260
      %v359 = vunpack.c.h.b16 %v260
      %v360 = vunpack.c.l.b16 %v261
      %v361 = vunpack.c.h.b16 %v261
      %v362 = vunpack.c.l.b16 %v262
      %v363 = vunpack.c.h.b16 %v262
      %v364 = vpack.c.b16 %v356, %v354
      %v365 = vpack.c.b16 %v357, %v355
      %v366 = vpack.c.b16 %v360, %v358
      %v367 = vpack.c.b16 %v361, %v359
      %v368 = vpack.c.b16 %v362, %v362
      %v369 = vpack.c.b16 %v363, %v363
      %vm374 = vcmask 293888
      %v376 = vsel %vm374, %v333, 0
      %v379 = vsel %vm374, %v334, 0
      %v382 = vsel %vm374, %v335, 0
      %v385 = vsel %vm374, %v336, 0
      %v388 = vsel %vm374, %v337, 0
      %v391 = vsel %vm374, %v338, 0
      %v394 = vsel %vm374, %v339, 0
      %v397 = vsel %vm374, %v340, 0
      %v400 = vsel %vm374, %v341, 0
      %v403 = vsel %vm374, %v342, 0
      %v406 = vsel %vm374, %v343, 0
      %v409 = vsel %vm374, %v344, 0
      %v412 = vsel %vm374, %v345, 0
      %v415 = vsel %vm374, %v346, 0
      %v418 = vsel %vm374, %v347, 0
      %v421 = vsel %vm374, %v348, 0
      %vm423 = vcmask 1041408
      %v425 = vsel %vm423, %v368, 0
      %v428 = vsel %vm423, %v369, 0
      %430 = vmatpush.bf16.msra.mxu0 0
      %431 = vmatpush.bf16.msra.mxu0 0
      %432 = vmatpush.bf16.msra.mxu0 0
      %433 = vmatpush.bf16.msra.mxu0 0
      %434 = vmatpush.bf16.msra.mxu0 0
      %435 = vmatpush.bf16.msra.mxu0 %v425
      %436 = vmatpush.bf16.msra.mxu0 %v366
      %437 = vmatpush.bf16.msra.mxu0 %v364
      %438 = vmatmul.bf16.gmra.mxu0 %v376
      %v439 = vpop.f32.mrf.mxu0
      %v440 = vadd.f32 %v265, %v439
      %v441 = vpop.f32.mrf.mxu0
      %v442 = vadd.f32 %v265, %v441
      %443 = vmatmul.bf16.gmra.mxu0 %v379
      %v444 = vpop.f32.mrf.mxu0
      %v445 = vadd.f32 %v265, %v444
      %v446 = vpop.f32.mrf.mxu0
      %v447 = vadd.f32 %v265, %v446
      %448 = vmatmul.bf16.gmra.mxu0 %v382
      %v449 = vpop.f32.mrf.mxu0
      %v450 = vadd.f32 %v265, %v449
      %v451 = vpop.f32.mrf.mxu0
      %v452 = vadd.f32 %v265, %v451
      %453 = vmatmul.bf16.gmra.mxu0 %v385
      %v454 = vpop.f32.mrf.mxu0
      %v455 = vadd.f32 %v265, %v454
      %v456 = vpop.f32.mrf.mxu0
      %v457 = vadd.f32 %v265, %v456
      %458 = vmatmul.bf16.gmra.mxu0 %v388
      %v459 = vpop.f32.mrf.mxu0
      %v460 = vadd.f32 %v265, %v459
      %v461 = vpop.f32.mrf.mxu0
      %v462 = vadd.f32 %v265, %v461
      %463 = vmatmul.bf16.gmra.mxu0 %v391
      %v464 = vpop.f32.mrf.mxu0
      %v465 = vadd.f32 %v265, %v464
      %v466 = vpop.f32.mrf.mxu0
      %v467 = vadd.f32 %v265, %v466
      %468 = vmatmul.bf16.gmra.mxu0 %v394
      %v469 = vpop.f32.mrf.mxu0
      %v470 = vadd.f32 %v265, %v469
      %v471 = vpop.f32.mrf.mxu0
      %v472 = vadd.f32 %v265, %v471
      %473 = vmatmul.bf16.gmra.mxu0 %v397
      %v474 = vpop.f32.mrf.mxu0
      %v475 = vadd.f32 %v265, %v474
      %v476 = vpop.f32.mrf.mxu0
      %v477 = vadd.f32 %v265, %v476
      %478 = vmatmul.bf16.gmra.mxu0 %v400
      %v479 = vpop.f32.mrf.mxu0
      %v480 = vadd.f32 %v265, %v479
      %v481 = vpop.f32.mrf.mxu0
      %v482 = vadd.f32 %v265, %v481
      %483 = vmatmul.bf16.gmra.mxu0 %v403
      %v484 = vpop.f32.mrf.mxu0
      %v485 = vadd.f32 %v265, %v484
      %v486 = vpop.f32.mrf.mxu0
      %v487 = vadd.f32 %v265, %v486
      %488 = vmatmul.bf16.gmra.mxu0 %v406
      %v489 = vpop.f32.mrf.mxu0
      %v490 = vadd.f32 %v265, %v489
      %v491 = vpop.f32.mrf.mxu0
      %v492 = vadd.f32 %v265, %v491
      %493 = vmatmul.bf16.gmra.mxu0 %v409
      %v494 = vpop.f32.mrf.mxu0
      %v495 = vadd.f32 %v265, %v494
      %v496 = vpop.f32.mrf.mxu0
      %v497 = vadd.f32 %v265, %v496
      %498 = vmatmul.bf16.gmra.mxu0 %v412
      %v499 = vpop.f32.mrf.mxu0
      %v500 = vadd.f32 %v265, %v499
      %v501 = vpop.f32.mrf.mxu0
      %v502 = vadd.f32 %v265, %v501
      %503 = vmatmul.bf16.gmra.mxu0 %v415
      %v504 = vpop.f32.mrf.mxu0
      %v505 = vadd.f32 %v265, %v504
      %v506 = vpop.f32.mrf.mxu0
      %v507 = vadd.f32 %v265, %v506
      %508 = vmatmul.bf16.gmra.mxu0 %v418
      %v509 = vpop.f32.mrf.mxu0
      %v510 = vadd.f32 %v265, %v509
      %v511 = vpop.f32.mrf.mxu0
      %v512 = vadd.f32 %v265, %v511
      %513 = vmatmul.bf16.gmra.mxu0 %v421
      %v514 = vpop.f32.mrf.mxu0
      %v515 = vadd.f32 %v265, %v514
      %v516 = vpop.f32.mrf.mxu0
      %v517 = vadd.f32 %v265, %v516
      %518 = vdwg.mxu0
      %519 = vmatpush.bf16.msra.mxu0 0
      %520 = vmatpush.bf16.msra.mxu0 0
      %521 = vmatpush.bf16.msra.mxu0 0
      %522 = vmatpush.bf16.msra.mxu0 0
      %523 = vmatpush.bf16.msra.mxu0 0
      %524 = vmatpush.bf16.msra.mxu0 %v428
      %525 = vmatpush.bf16.msra.mxu0 %v367
      %526 = vmatpush.bf16.msra.mxu0 %v365
      %527 = vmatmul.bf16.gmra.mxu0 %v376
      %v528 = vpop.f32.mrf.mxu0
      %v529 = vadd.f32 %v266, %v528
      %v530 = vpop.f32.mrf.mxu0
      %v531 = vadd.f32 %v266, %v530
      %532 = vmatmul.bf16.gmra.mxu0 %v379
      %v533 = vpop.f32.mrf.mxu0
      %v534 = vadd.f32 %v266, %v533
      %v535 = vpop.f32.mrf.mxu0
      %v536 = vadd.f32 %v266, %v535
      %537 = vmatmul.bf16.gmra.mxu0 %v382
      %v538 = vpop.f32.mrf.mxu0
      %v539 = vadd.f32 %v266, %v538
      %v540 = vpop.f32.mrf.mxu0
      %v541 = vadd.f32 %v266, %v540
      %542 = vmatmul.bf16.gmra.mxu0 %v385
      %v543 = vpop.f32.mrf.mxu0
      %v544 = vadd.f32 %v266, %v543
      %v545 = vpop.f32.mrf.mxu0
      %v546 = vadd.f32 %v266, %v545
      %547 = vmatmul.bf16.gmra.mxu0 %v388
      %v548 = vpop.f32.mrf.mxu0
      %v549 = vadd.f32 %v266, %v548
      %v550 = vpop.f32.mrf.mxu0
      %v551 = vadd.f32 %v266, %v550
      %552 = vmatmul.bf16.gmra.mxu0 %v391
      %v553 = vpop.f32.mrf.mxu0
      %v554 = vadd.f32 %v266, %v553
      %v555 = vpop.f32.mrf.mxu0
      %v556 = vadd.f32 %v266, %v555
      %557 = vmatmul.bf16.gmra.mxu0 %v394
      %v558 = vpop.f32.mrf.mxu0
      %v559 = vadd.f32 %v266, %v558
      %v560 = vpop.f32.mrf.mxu0
      %v561 = vadd.f32 %v266, %v560
      %562 = vmatmul.bf16.gmra.mxu0 %v397
      %v563 = vpop.f32.mrf.mxu0
      %v564 = vadd.f32 %v266, %v563
      %v565 = vpop.f32.mrf.mxu0
      %v566 = vadd.f32 %v266, %v565
      %567 = vmatmul.bf16.gmra.mxu0 %v400
      %v568 = vpop.f32.mrf.mxu0
      %v569 = vadd.f32 %v266, %v568
      %v570 = vpop.f32.mrf.mxu0
      %v571 = vadd.f32 %v266, %v570
      %572 = vmatmul.bf16.gmra.mxu0 %v403
      %v573 = vpop.f32.mrf.mxu0
      %v574 = vadd.f32 %v266, %v573
      %v575 = vpop.f32.mrf.mxu0
      %v576 = vadd.f32 %v266, %v575
      %577 = vmatmul.bf16.gmra.mxu0 %v406
      %v578 = vpop.f32.mrf.mxu0
      %v579 = vadd.f32 %v266, %v578
      %v580 = vpop.f32.mrf.mxu0
      %v581 = vadd.f32 %v266, %v580
      %582 = vmatmul.bf16.gmra.mxu0 %v409
      %v583 = vpop.f32.mrf.mxu0
      %v584 = vadd.f32 %v266, %v583
      %v585 = vpop.f32.mrf.mxu0
      %v586 = vadd.f32 %v266, %v585
      %587 = vmatmul.bf16.gmra.mxu0 %v412
      %v588 = vpop.f32.mrf.mxu0
      %v589 = vadd.f32 %v266, %v588
      %v590 = vpop.f32.mrf.mxu0
      %v591 = vadd.f32 %v266, %v590
      %592 = vmatmul.bf16.gmra.mxu0 %v415
      %v593 = vpop.f32.mrf.mxu0
      %v594 = vadd.f32 %v266, %v593
      %v595 = vpop.f32.mrf.mxu0
      %v596 = vadd.f32 %v266, %v595
      %597 = vmatmul.bf16.gmra.mxu0 %v418
      %v598 = vpop.f32.mrf.mxu0
      %v599 = vadd.f32 %v266, %v598
      %v600 = vpop.f32.mrf.mxu0
      %v601 = vadd.f32 %v266, %v600
      %602 = vmatmul.bf16.gmra.mxu0 %v421
      %v603 = vpop.f32.mrf.mxu0
      %v604 = vadd.f32 %v266, %v603
      %v605 = vpop.f32.mrf.mxu0
      %v606 = vadd.f32 %v266, %v605
      %607 = vdwg.mxu0
      %v608 = vmax.f32 %v440, 0.0
      %v609 = vmax.f32 %v442, 0.0
      %v610 = vmax.f32 %v445, 0.0
      %v611 = vmax.f32 %v447, 0.0
      %v612 = vmax.f32 %v450, 0.0
      %v613 = vmax.f32 %v452, 0.0
      %v614 = vmax.f32 %v455, 0.0
      %v615 = vmax.f32 %v457, 0.0
      %v616 = vmax.f32 %v460, 0.0
      %v617 = vmax.f32 %v462, 0.0
      %v618 = vmax.f32 %v465, 0.0
      %v619 = vmax.f32 %v467, 0.0
      %v620 = vmax.f32 %v470, 0.0
      %v621 = vmax.f32 %v472, 0.0
      %v622 = vmax.f32 %v475, 0.0
      %v623 = vmax.f32 %v477, 0.0
      %v624 = vmax.f32 %v480, 0.0
      %v625 = vmax.f32 %v482, 0.0
      %v626 = vmax.f32 %v485, 0.0
      %v627 = vmax.f32 %v487, 0.0
      %v628 = vmax.f32 %v490, 0.0
      %v629 = vmax.f32 %v492, 0.0
      %v630 = vmax.f32 %v495, 0.0
      %v631 = vmax.f32 %v497, 0.0
      %v632 = vmax.f32 %v500, 0.0
      %v633 = vmax.f32 %v502, 0.0
      %v634 = vmax.f32 %v505, 0.0
      %v635 = vmax.f32 %v507, 0.0
      %v636 = vmax.f32 %v510, 0.0
      %v637 = vmax.f32 %v512, 0.0
      %v638 = vmax.f32 %v515, 0.0
      %v639 = vmax.f32 %v517, 0.0
      %640 = vst [vmem:[#allocation2] sm:$0xf] 0
      %641 = vst [vmem:[#allocation2 + $0x4] sm:$0xf] 0
      %642 = vst [vmem:[#allocation2 + $0x8] sm:$0x1] 0
      %s643 = scalar_lea.vmem [#allocation2], 204
      %644 = vst [vmem:[%s643] sm:$0xf] 0
      %645 = vst [vmem:[%s643 + $0x4] sm:$0xf] 0
      %646 = vst [vmem:[%s643 + $0x8] sm:$0x1] 0
      %s647 = scalar_lea.vmem [#allocation2], 12
      %vm648 = vcmask 1040384
      %vm649 = vsmask.f32 256
      %vm650 = vmand %vm648, %vm649
      %v651 = vld [vmem:[%s647] sm:$0x1]
      %v652 = vsel %vm650, 0, %v651
      %653 = vst [vmem:[%s647] sm:$0x1] %v652
      %v654 = vld [vmem:[%s647 + $0xc] sm:$0x1]
      %v655 = vsel %vm650, 0, %v654
      %656 = vst [vmem:[%s647 + $0xc] sm:$0x1] %v655
      %v657 = vld [vmem:[%s647 + $0x18] sm:$0x1]
      %v658 = vsel %vm650, 0, %v657
      %659 = vst [vmem:[%s647 + $0x18] sm:$0x1] %v658
      %v660 = vld [vmem:[%s647 + $0x24] sm:$0x1]
      %v661 = vsel %vm650, 0, %v660
      %662 = vst [vmem:[%s647 + $0x24] sm:$0x1] %v661
      %v663 = vld [vmem:[%s647 + $0x30] sm:$0x1]
      %v664 = vsel %vm650, 0, %v663
      %665 = vst [vmem:[%s647 + $0x30] sm:$0x1] %v664
      %v666 = vld [vmem:[%s647 + $0x3c] sm:$0x1]
      %v667 = vsel %vm650, 0, %v666
      %668 = vst [vmem:[%s647 + $0x3c] sm:$0x1] %v667
      %v669 = vld [vmem:[%s647 + $0x48] sm:$0x1]
      %v670 = vsel %vm650, 0, %v669
      %671 = vst [vmem:[%s647 + $0x48] sm:$0x1] %v670
      %v672 = vld [vmem:[%s647 + $0x54] sm:$0x1]
      %v673 = vsel %vm650, 0, %v672
      %674 = vst [vmem:[%s647 + $0x54] sm:$0x1] %v673
      %v675 = vld [vmem:[%s647 + $0x60] sm:$0x1]
      %v676 = vsel %vm650, 0, %v675
      %677 = vst [vmem:[%s647 + $0x60] sm:$0x1] %v676
      %v678 = vld [vmem:[%s647 + $0x6c] sm:$0x1]
      %v679 = vsel %vm650, 0, %v678
      %680 = vst [vmem:[%s647 + $0x6c] sm:$0x1] %v679
      %v681 = vld [vmem:[%s647 + $0x78] sm:$0x1]
      %v682 = vsel %vm650, 0, %v681
      %683 = vst [vmem:[%s647 + $0x78] sm:$0x1] %v682
      %v684 = vld [vmem:[%s647 + $0x84] sm:$0x1]
      %v685 = vsel %vm650, 0, %v684
      %686 = vst [vmem:[%s647 + $0x84] sm:$0x1] %v685
      %v687 = vld [vmem:[%s647 + $0x90] sm:$0x1]
      %v688 = vsel %vm650, 0, %v687
      %689 = vst [vmem:[%s647 + $0x90] sm:$0x1] %v688
      %v690 = vld [vmem:[%s647 + $0x9c] sm:$0x1]
      %v691 = vsel %vm650, 0, %v690
      %692 = vst [vmem:[%s647 + $0x9c] sm:$0x1] %v691
      %v693 = vld [vmem:[%s647 + $0xa8] sm:$0x1]
      %v694 = vsel %vm650, 0, %v693
      %695 = vst [vmem:[%s647 + $0xa8] sm:$0x1] %v694
      %v696 = vld [vmem:[%s647 + $0xb4] sm:$0x1]
      %v697 = vsel %vm650, 0, %v696
      %698 = vst [vmem:[%s647 + $0xb4] sm:$0x1] %v697
      %vm699 = vsmask.f32 7938
      %vm700 = vmand %vm648, %vm699
      %v701 = vld [vmem:[%s647 + $0x8] sm:$0x1]
      %v702 = vsel %vm700, 0, %v701
      %703 = vst [vmem:[%s647 + $0x8] sm:$0x1] %v702
      %v704 = vld [vmem:[%s647 + $0x14] sm:$0x1]
      %v705 = vsel %vm700, 0, %v704
      %706 = vst [vmem:[%s647 + $0x14] sm:$0x1] %v705
      %v707 = vld [vmem:[%s647 + $0x20] sm:$0x1]
      %v708 = vsel %vm700, 0, %v707
      %709 = vst [vmem:[%s647 + $0x20] sm:$0x1] %v708
      %v710 = vld [vmem:[%s647 + $0x2c] sm:$0x1]
      %v711 = vsel %vm700, 0, %v710
      %712 = vst [vmem:[%s647 + $0x2c] sm:$0x1] %v711
      %v713 = vld [vmem:[%s647 + $0x38] sm:$0x1]
      %v714 = vsel %vm700, 0, %v713
      %715 = vst [vmem:[%s647 + $0x38] sm:$0x1] %v714
      %v716 = vld [vmem:[%s647 + $0x44] sm:$0x1]
      %v717 = vsel %vm700, 0, %v716
      %718 = vst [vmem:[%s647 + $0x44] sm:$0x1] %v717
      %v719 = vld [vmem:[%s647 + $0x50] sm:$0x1]
      %v720 = vsel %vm700, 0, %v719
      %721 = vst [vmem:[%s647 + $0x50] sm:$0x1] %v720
      %v722 = vld [vmem:[%s647 + $0x5c] sm:$0x1]
      %v723 = vsel %vm700, 0, %v722
      %724 = vst [vmem:[%s647 + $0x5c] sm:$0x1] %v723
      %v725 = vld [vmem:[%s647 + $0x68] sm:$0x1]
      %v726 = vsel %vm700, 0, %v725
      %727 = vst [vmem:[%s647 + $0x68] sm:$0x1] %v726
      %v728 = vld [vmem:[%s647 + $0x74] sm:$0x1]
      %v729 = vsel %vm700, 0, %v728
      %730 = vst [vmem:[%s647 + $0x74] sm:$0x1] %v729
      %v731 = vld [vmem:[%s647 + $0x80] sm:$0x1]
      %v732 = vsel %vm700, 0, %v731
      %733 = vst [vmem:[%s647 + $0x80] sm:$0x1] %v732
      %v734 = vld [vmem:[%s647 + $0x8c] sm:$0x1]
      %v735 = vsel %vm700, 0, %v734
      %736 = vst [vmem:[%s647 + $0x8c] sm:$0x1] %v735
      %v737 = vld [vmem:[%s647 + $0x98] sm:$0x1]
      %v738 = vsel %vm700, 0, %v737
      %739 = vst [vmem:[%s647 + $0x98] sm:$0x1] %v738
      %v740 = vld [vmem:[%s647 + $0xa4] sm:$0x1]
      %v741 = vsel %vm700, 0, %v740
      %742 = vst [vmem:[%s647 + $0xa4] sm:$0x1] %v741
      %v743 = vld [vmem:[%s647 + $0xb0] sm:$0x1]
      %v744 = vsel %vm700, 0, %v743
      %745 = vst [vmem:[%s647 + $0xb0] sm:$0x1] %v744
      %v746 = vld [vmem:[%s647 + $0xbc] sm:$0x1]
      %v747 = vsel %vm700, 0, %v746
      %748 = vst [vmem:[%s647 + $0xbc] sm:$0x1] %v747
      %v749 = vpack.c.bf16 %v608, %v608
      %v750 = vpack.c.bf16 %v609, %v609
      %v751 = vpack.c.bf16 %v610, %v610
      %v752 = vpack.c.bf16 %v611, %v611
      %v753 = vpack.c.bf16 %v612, %v612
      %v754 = vpack.c.bf16 %v613, %v613
      %v755 = vpack.c.bf16 %v614, %v614
      %v756 = vpack.c.bf16 %v615, %v615
      %v757 = vpack.c.bf16 %v616, %v616
      %v758 = vpack.c.bf16 %v617, %v617
      %v759 = vpack.c.bf16 %v618, %v618
      %v760 = vpack.c.bf16 %v619, %v619
      %v761 = vpack.c.bf16 %v620, %v620
      %v762 = vpack.c.bf16 %v621, %v621
      %v763 = vpack.c.bf16 %v622, %v622
      %v764 = vpack.c.bf16 %v623, %v623
      %v765 = vpack.c.bf16 %v624, %v624
      %v766 = vpack.c.bf16 %v625, %v625
      %v767 = vpack.c.bf16 %v626, %v626
      %v768 = vpack.c.bf16 %v627, %v627
      %v769 = vpack.c.bf16 %v628, %v628
      %v770 = vpack.c.bf16 %v629, %v629
      %v771 = vpack.c.bf16 %v630, %v630
      %v772 = vpack.c.bf16 %v631, %v631
      %v773 = vpack.c.bf16 %v632, %v632
      %v774 = vpack.c.bf16 %v633, %v633
      %v775 = vpack.c.bf16 %v634, %v634
      %v776 = vpack.c.bf16 %v635, %v635
      %v777 = vpack.c.bf16 %v636, %v636
      %v778 = vpack.c.bf16 %v637, %v637
      %v779 = vpack.c.bf16 %v638, %v638
      %v780 = vpack.c.bf16 %v639, %v639
      %vm781 = vsmask.f32 4368
      %vm782 = vmor %vm649, %vm781
      %v784 = vshrl.u32 %v749, 16
      %v786 = vrot.slane %v784, 7
      %v787 = vshll.u32 %v749, 16
      %v789 = vor.u32 %v786, %v787
      %v790 = vrot.slane %v786, 4
      %v792 = vshrl.u32 %v750, 16
      %v794 = vrot.slane %v792, 7
      %v795 = vshll.u32 %v750, 16
      %v797 = vor.u32 %v794, %v795
      %v798 = vsel %vm782, %v790, %v797
      %v799 = vrot.slane %v794, 4
      %v801 = vshrl.u32 %v751, 16
      %v803 = vrot.slane %v801, 7
      %v804 = vshll.u32 %v751, 16
      %v806 = vor.u32 %v803, %v804
      %v807 = vrot.slane %v803, 4
      %v809 = vshrl.u32 %v752, 16
      %v811 = vrot.slane %v809, 7
      %v812 = vshll.u32 %v752, 16
      %v814 = vor.u32 %v811, %v812
      %v815 = vsel %vm782, %v807, %v814
      %v816 = vrot.slane %v811, 4
      %v818 = vshrl.u32 %v753, 16
      %v820 = vrot.slane %v818, 7
      %v821 = vshll.u32 %v753, 16
      %v823 = vor.u32 %v820, %v821
      %v824 = vrot.slane %v820, 4
      %v826 = vshrl.u32 %v754, 16
      %v828 = vrot.slane %v826, 7
      %v829 = vshll.u32 %v754, 16
      %v831 = vor.u32 %v828, %v829
      %v832 = vsel %vm782, %v824, %v831
      %v833 = vrot.slane %v828, 4
      %v835 = vshrl.u32 %v755, 16
      %v837 = vrot.slane %v835, 7
      %v838 = vshll.u32 %v755, 16
      %v840 = vor.u32 %v837, %v838
      %v841 = vrot.slane %v837, 4
      %v843 = vshrl.u32 %v756, 16
      %v845 = vrot.slane %v843, 7
      %v846 = vshll.u32 %v756, 16
      %v848 = vor.u32 %v845, %v846
      %v849 = vsel %vm782, %v841, %v848
      %v850 = vrot.slane %v845, 4
      %v852 = vshrl.u32 %v757, 16
      %v854 = vrot.slane %v852, 7
      %v855 = vshll.u32 %v757, 16
      %v857 = vor.u32 %v854, %v855
      %v858 = vrot.slane %v854, 4
      %v860 = vshrl.u32 %v758, 16
      %v862 = vrot.slane %v860, 7
      %v863 = vshll.u32 %v758, 16
      %v865 = vor.u32 %v862, %v863
      %v866 = vsel %vm782, %v858, %v865
      %v867 = vrot.slane %v862, 4
      %v869 = vshrl.u32 %v759, 16
      %v871 = vrot.slane %v869, 7
      %v872 = vshll.u32 %v759, 16
      %v874 = vor.u32 %v871, %v872
      %v875 = vrot.slane %v871, 4
      %v877 = vshrl.u32 %v760, 16
      %v879 = vrot.slane %v877, 7
      %v880 = vshll.u32 %v760, 16
      %v882 = vor.u32 %v879, %v880
      %v883 = vsel %vm782, %v875, %v882
      %v884 = vrot.slane %v879, 4
      %v886 = vshrl.u32 %v761, 16
      %v888 = vrot.slane %v886, 7
      %v889 = vshll.u32 %v761, 16
      %v891 = vor.u32 %v888, %v889
      %v892 = vrot.slane %v888, 4
      %v894 = vshrl.u32 %v762, 16
      %v896 = vrot.slane %v894, 7
      %v897 = vshll.u32 %v762, 16
      %v899 = vor.u32 %v896, %v897
      %v900 = vsel %vm782, %v892, %v899
      %v901 = vrot.slane %v896, 4
      %v903 = vshrl.u32 %v763, 16
      %v905 = vrot.slane %v903, 7
      %v906 = vshll.u32 %v763, 16
      %v908 = vor.u32 %v905, %v906
      %v909 = vrot.slane %v905, 4
      %v911 = vshrl.u32 %v764, 16
      %v913 = vrot.slane %v911, 7
      %v914 = vshll.u32 %v764, 16
      %v916 = vor.u32 %v913, %v914
      %v917 = vsel %vm782, %v909, %v916
      %v918 = vrot.slane %v913, 4
      %v920 = vshrl.u32 %v765, 16
      %v922 = vrot.slane %v920, 7
      %v923 = vshll.u32 %v765, 16
      %v925 = vor.u32 %v922, %v923
      %v926 = vrot.slane %v922, 4
      %v928 = vshrl.u32 %v766, 16
      %v930 = vrot.slane %v928, 7
      %v931 = vshll.u32 %v766, 16
      %v933 = vor.u32 %v930, %v931
      %v934 = vsel %vm782, %v926, %v933
      %v935 = vrot.slane %v930, 4
      %v937 = vshrl.u32 %v767, 16
      %v939 = vrot.slane %v937, 7
      %v940 = vshll.u32 %v767, 16
      %v942 = vor.u32 %v939, %v940
      %v943 = vrot.slane %v939, 4
      %v945 = vshrl.u32 %v768, 16
      %v947 = vrot.slane %v945, 7
      %v948 = vshll.u32 %v768, 16
      %v950 = vor.u32 %v947, %v948
      %v951 = vsel %vm782, %v943, %v950
      %v952 = vrot.slane %v947, 4
      %v954 = vshrl.u32 %v769, 16
      %v956 = vrot.slane %v954, 7
      %v957 = vshll.u32 %v769, 16
      %v959 = vor.u32 %v956, %v957
      %v960 = vrot.slane %v956, 4
      %v962 = vshrl.u32 %v770, 16
      %v964 = vrot.slane %v962, 7
      %v965 = vshll.u32 %v770, 16
      %v967 = vor.u32 %v964, %v965
      %v968 = vsel %vm782, %v960, %v967
      %v969 = vrot.slane %v964, 4
      %v971 = vshrl.u32 %v771, 16
      %v973 = vrot.slane %v971, 7
      %v974 = vshll.u32 %v771, 16
      %v976 = vor.u32 %v973, %v974
      %v977 = vrot.slane %v973, 4
      %v979 = vshrl.u32 %v772, 16
      %v981 = vrot.slane %v979, 7
      %v982 = vshll.u32 %v772, 16
      %v984 = vor.u32 %v981, %v982
      %v985 = vsel %vm782, %v977, %v984
      %v986 = vrot.slane %v981, 4
      %v988 = vshrl.u32 %v773, 16
      %v990 = vrot.slane %v988, 7
      %v991 = vshll.u32 %v773, 16
      %v993 = vor.u32 %v990, %v991
      %v994 = vrot.slane %v990, 4
      %v996 = vshrl.u32 %v774, 16
      %v998 = vrot.slane %v996, 7
      %v999 = vshll.u32 %v774, 16
      %v1001 = vor.u32 %v998, %v999
      %v1002 = vsel %vm782, %v994, %v1001
      %v1003 = vrot.slane %v998, 4
      %v1005 = vshrl.u32 %v775, 16
      %v1007 = vrot.slane %v1005, 7
      %v1008 = vshll.u32 %v775, 16
      %v1010 = vor.u32 %v1007, %v1008
      %v1011 = vrot.slane %v1007, 4
      %v1013 = vshrl.u32 %v776, 16
      %v1015 = vrot.slane %v1013, 7
      %v1016 = vshll.u32 %v776, 16
      %v1018 = vor.u32 %v1015, %v1016
      %v1019 = vsel %vm782, %v1011, %v1018
      %v1020 = vrot.slane %v1015, 4
      %v1022 = vshrl.u32 %v777, 16
      %v1024 = vrot.slane %v1022, 7
      %v1025 = vshll.u32 %v777, 16
      %v1027 = vor.u32 %v1024, %v1025
      %v1028 = vrot.slane %v1024, 4
      %v1030 = vshrl.u32 %v778, 16
      %v1032 = vrot.slane %v1030, 7
      %v1033 = vshll.u32 %v778, 16
      %v1035 = vor.u32 %v1032, %v1033
      %v1036 = vsel %vm782, %v1028, %v1035
      %v1037 = vrot.slane %v1032, 4
      %v1039 = vshrl.u32 %v779, 16
      %v1041 = vrot.slane %v1039, 7
      %v1042 = vshll.u32 %v779, 16
      %v1044 = vor.u32 %v1041, %v1042
      %v1045 = vrot.slane %v1041, 4
      %v1047 = vshrl.u32 %v780, 16
      %v1049 = vrot.slane %v1047, 7
      %v1050 = vshll.u32 %v780, 16
      %v1052 = vor.u32 %v1049, %v1050
      %v1053 = vsel %vm782, %v1045, %v1052
      %v1054 = vrot.slane %v1049, 4
      %vm1103 = vcmask 1043456
      %vm1104 = vmand %vm1103, %vm699
      %v1105 = vld [vmem:[%s647] sm:$0xf]
      %v1106 = vsel %vm1104, %v789, %v1105
      %1107 = vst [vmem:[%s647] sm:$0xf] %v1106
      %1108 = vst [vmem:[%s647 + $0x4] sm:$0xf] %v798
      %v1109 = vld [vmem:[%s647 + $0x8] sm:$0x1]
      %v1110 = vsel %vm650, %v799, %v1109
      %1111 = vst [vmem:[%s647 + $0x8] sm:$0x1] %v1110
      %v1112 = vld [vmem:[%s647 + $0xc] sm:$0xf]
      %v1113 = vsel %vm1104, %v806, %v1112
      %1114 = vst [vmem:[%s647 + $0xc] sm:$0xf] %v1113
      %1115 = vst [vmem:[%s647 + $0x10] sm:$0xf] %v815
      %v1116 = vld [vmem:[%s647 + $0x14] sm:$0x1]
      %v1117 = vsel %vm650, %v816, %v1116
      %1118 = vst [vmem:[%s647 + $0x14] sm:$0x1] %v1117
      %v1119 = vld [vmem:[%s647 + $0x18] sm:$0xf]
      %v1120 = vsel %vm1104, %v823, %v1119
      %1121 = vst [vmem:[%s647 + $0x18] sm:$0xf] %v1120
      %1122 = vst [vmem:[%s647 + $0x1c] sm:$0xf] %v832
      %v1123 = vld [vmem:[%s647 + $0x20] sm:$0x1]
      %v1124 = vsel %vm650, %v833, %v1123
      %1125 = vst [vmem:[%s647 + $0x20] sm:$0x1] %v1124
      %v1126 = vld [vmem:[%s647 + $0x24] sm:$0xf]
      %v1127 = vsel %vm1104, %v840, %v1126
      %1128 = vst [vmem:[%s647 + $0x24] sm:$0xf] %v1127
      %1129 = vst [vmem:[%s647 + $0x28] sm:$0xf] %v849
      %v1130 = vld [vmem:[%s647 + $0x2c] sm:$0x1]
      %v1131 = vsel %vm650, %v850, %v1130
      %1132 = vst [vmem:[%s647 + $0x2c] sm:$0x1] %v1131
      %v1133 = vld [vmem:[%s647 + $0x30] sm:$0xf]
      %v1134 = vsel %vm1104, %v857, %v1133
      %1135 = vst [vmem:[%s647 + $0x30] sm:$0xf] %v1134
      %1136 = vst [vmem:[%s647 + $0x34] sm:$0xf] %v866
      %v1137 = vld [vmem:[%s647 + $0x38] sm:$0x1]
      %v1138 = vsel %vm650, %v867, %v1137
      %1139 = vst [vmem:[%s647 + $0x38] sm:$0x1] %v1138
      %v1140 = vld [vmem:[%s647 + $0x3c] sm:$0xf]
      %v1141 = vsel %vm1104, %v874, %v1140
      %1142 = vst [vmem:[%s647 + $0x3c] sm:$0xf] %v1141
      %1143 = vst [vmem:[%s647 + $0x40] sm:$0xf] %v883
      %v1144 = vld [vmem:[%s647 + $0x44] sm:$0x1]
      %v1145 = vsel %vm650, %v884, %v1144
      %1146 = vst [vmem:[%s647 + $0x44] sm:$0x1] %v1145
      %v1147 = vld [vmem:[%s647 + $0x48] sm:$0xf]
      %v1148 = vsel %vm1104, %v891, %v1147
      %1149 = vst [vmem:[%s647 + $0x48] sm:$0xf] %v1148
      %1150 = vst [vmem:[%s647 + $0x4c] sm:$0xf] %v900
      %v1151 = vld [vmem:[%s647 + $0x50] sm:$0x1]
      %v1152 = vsel %vm650, %v901, %v1151
      %1153 = vst [vmem:[%s647 + $0x50] sm:$0x1] %v1152
      %v1154 = vld [vmem:[%s647 + $0x54] sm:$0xf]
      %v1155 = vsel %vm1104, %v908, %v1154
      %1156 = vst [vmem:[%s647 + $0x54] sm:$0xf] %v1155
      %1157 = vst [vmem:[%s647 + $0x58] sm:$0xf] %v917
      %v1158 = vld [vmem:[%s647 + $0x5c] sm:$0x1]
      %v1159 = vsel %vm650, %v918, %v1158
      %1160 = vst [vmem:[%s647 + $0x5c] sm:$0x1] %v1159
      %v1161 = vld [vmem:[%s647 + $0x60] sm:$0xf]
      %v1162 = vsel %vm1104, %v925, %v1161
      %1163 = vst [vmem:[%s647 + $0x60] sm:$0xf] %v1162
      %1164 = vst [vmem:[%s647 + $0x64] sm:$0xf] %v934
      %v1165 = vld [vmem:[%s647 + $0x68] sm:$0x1]
      %v1166 = vsel %vm650, %v935, %v1165
      %1167 = vst [vmem:[%s647 + $0x68] sm:$0x1] %v1166
      %v1168 = vld [vmem:[%s647 + $0x6c] sm:$0xf]
      %v1169 = vsel %vm1104, %v942, %v1168
      %1170 = vst [vmem:[%s647 + $0x6c] sm:$0xf] %v1169
      %1171 = vst [vmem:[%s647 + $0x70] sm:$0xf] %v951
      %v1172 = vld [vmem:[%s647 + $0x74] sm:$0x1]
      %v1173 = vsel %vm650, %v952, %v1172
      %1174 = vst [vmem:[%s647 + $0x74] sm:$0x1] %v1173
      %v1175 = vld [vmem:[%s647 + $0x78] sm:$0xf]
      %v1176 = vsel %vm1104, %v959, %v1175
      %1177 = vst [vmem:[%s647 + $0x78] sm:$0xf] %v1176
      %1178 = vst [vmem:[%s647 + $0x7c] sm:$0xf] %v968
      %v1179 = vld [vmem:[%s647 + $0x80] sm:$0x1]
      %v1180 = vsel %vm650, %v969, %v1179
      %1181 = vst [vmem:[%s647 + $0x80] sm:$0x1] %v1180
      %v1182 = vld [vmem:[%s647 + $0x84] sm:$0xf]
      %v1183 = vsel %vm1104, %v976, %v1182
      %1184 = vst [vmem:[%s647 + $0x84] sm:$0xf] %v1183
      %1185 = vst [vmem:[%s647 + $0x88] sm:$0xf] %v985
      %v1186 = vld [vmem:[%s647 + $0x8c] sm:$0x1]
      %v1187 = vsel %vm650, %v986, %v1186
      %1188 = vst [vmem:[%s647 + $0x8c] sm:$0x1] %v1187
      %v1189 = vld [vmem:[%s647 + $0x90] sm:$0xf]
      %v1190 = vsel %vm1104, %v993, %v1189
      %1191 = vst [vmem:[%s647 + $0x90] sm:$0xf] %v1190
      %1192 = vst [vmem:[%s647 + $0x94] sm:$0xf] %v1002
      %v1193 = vld [vmem:[%s647 + $0x98] sm:$0x1]
      %v1194 = vsel %vm650, %v1003, %v1193
      %1195 = vst [vmem:[%s647 + $0x98] sm:$0x1] %v1194
      %v1196 = vld [vmem:[%s647 + $0x9c] sm:$0xf]
      %v1197 = vsel %vm1104, %v1010, %v1196
      %1198 = vst [vmem:[%s647 + $0x9c] sm:$0xf] %v1197
      %1199 = vst [vmem:[%s647 + $0xa0] sm:$0xf] %v1019
      %v1200 = vld [vmem:[%s647 + $0xa4] sm:$0x1]
      %v1201 = vsel %vm650, %v1020, %v1200
      %1202 = vst [vmem:[%s647 + $0xa4] sm:$0x1] %v1201
      %v1203 = vld [vmem:[%s647 + $0xa8] sm:$0xf]
      %v1204 = vsel %vm1104, %v1027, %v1203
      %1205 = vst [vmem:[%s647 + $0xa8] sm:$0xf] %v1204
      %1206 = vst [vmem:[%s647 + $0xac] sm:$0xf] %v1036
      %v1207 = vld [vmem:[%s647 + $0xb0] sm:$0x1]
      %v1208 = vsel %vm650, %v1037, %v1207
      %1209 = vst [vmem:[%s647 + $0xb0] sm:$0x1] %v1208
      %v1210 = vld [vmem:[%s647 + $0xb4] sm:$0xf]
      %v1211 = vsel %vm1104, %v1044, %v1210
      %1212 = vst [vmem:[%s647 + $0xb4] sm:$0xf] %v1211
      %1213 = vst [vmem:[%s647 + $0xb8] sm:$0xf] %v1053
      %v1214 = vld [vmem:[%s647 + $0xbc] sm:$0x1]
      %v1215 = vsel %vm650, %v1054, %v1214
      %1216 = vst [vmem:[%s647 + $0xbc] sm:$0x1] %v1215
      %v1217 = vld [vmem:[#allocation2] sm:$0xf]
      %v1218 = vld [vmem:[#allocation2 + $0x4] sm:$0xf]
      %v1219 = vld [vmem:[#allocation2 + $0xc] sm:$0xf]
      %v1220 = vld [vmem:[#allocation2 + $0x10] sm:$0xf]
      %v1221 = vld [vmem:[#allocation2 + $0x18] sm:$0xf]
      %v1222 = vld [vmem:[#allocation2 + $0x1c] sm:$0xf]
      %v1223 = vld [vmem:[#allocation2 + $0x24] sm:$0xf]
      %v1224 = vld [vmem:[#allocation2 + $0x28] sm:$0xf]
      %v1225 = vld [vmem:[#allocation2 + $0x30] sm:$0xf]
      %v1226 = vld [vmem:[#allocation2 + $0x34] sm:$0xf]
      %v1227 = vld [vmem:[#allocation2 + $0x3c] sm:$0xf]
      %v1228 = vld [vmem:[#allocation2 + $0x40] sm:$0xf]
      %v1229 = vld [vmem:[#allocation2 + $0x48] sm:$0xf]
      %v1230 = vld [vmem:[#allocation2 + $0x4c] sm:$0xf]
      %v1231 = vld [vmem:[#allocation2 + $0x54] sm:$0xf]
      %v1232 = vld [vmem:[#allocation2 + $0x58] sm:$0xf]
      %v1233 = vld [vmem:[#allocation2 + $0x60] sm:$0xf]
      %v1234 = vld [vmem:[#allocation2 + $0x64] sm:$0xf]
      %v1235 = vld [vmem:[#allocation2 + $0x6c] sm:$0xf]
      %v1236 = vld [vmem:[#allocation2 + $0x70] sm:$0xf]
      %v1237 = vld [vmem:[#allocation2 + $0x78] sm:$0xf]
      %v1238 = vld [vmem:[#allocation2 + $0x7c] sm:$0xf]
      %v1239 = vld [vmem:[#allocation2 + $0x84] sm:$0xf]
      %v1240 = vld [vmem:[#allocation2 + $0x88] sm:$0xf]
      %v1241 = vld [vmem:[#allocation2 + $0x90] sm:$0xf]
      %v1242 = vld [vmem:[#allocation2 + $0x94] sm:$0xf]
      %v1243 = vld [vmem:[#allocation2 + $0x9c] sm:$0xf]
      %v1244 = vld [vmem:[#allocation2 + $0xa0] sm:$0xf]
      %v1245 = vld [vmem:[#allocation2 + $0xa8] sm:$0xf]
      %v1246 = vld [vmem:[#allocation2 + $0xac] sm:$0xf]
      %v1247 = vld [vmem:[#allocation2 + $0xb4] sm:$0xf]
      %v1248 = vld [vmem:[#allocation2 + $0xb8] sm:$0xf]
      %v1249 = vld [vmem:[#allocation2 + $0x8] sm:$0x1]
      %v1250 = vld [vmem:[#allocation2 + $0x14] sm:$0x1]
      %v1251 = vld [vmem:[#allocation2 + $0x20] sm:$0x1]
      %v1252 = vld [vmem:[#allocation2 + $0x2c] sm:$0x1]
      %v1253 = vld [vmem:[#allocation2 + $0x38] sm:$0x1]
      %v1254 = vld [vmem:[#allocation2 + $0x44] sm:$0x1]
      %v1255 = vld [vmem:[#allocation2 + $0x50] sm:$0x1]
      %v1256 = vld [vmem:[#allocation2 + $0x5c] sm:$0x1]
      %v1257 = vld [vmem:[#allocation2 + $0x68] sm:$0x1]
      %v1258 = vld [vmem:[#allocation2 + $0x74] sm:$0x1]
      %v1259 = vld [vmem:[#allocation2 + $0x80] sm:$0x1]
      %v1260 = vld [vmem:[#allocation2 + $0x8c] sm:$0x1]
      %v1261 = vld [vmem:[#allocation2 + $0x98] sm:$0x1]
      %v1262 = vld [vmem:[#allocation2 + $0xa4] sm:$0x1]
      %v1263 = vld [vmem:[#allocation2 + $0xb0] sm:$0x1]
      %v1264 = vld [vmem:[#allocation2 + $0xbc] sm:$0x1]
      %vm1265 = vsmask.f32 3328
      %vm1266 = vsmask.f32 7440
      %vm1267 = vmor %vm1265, %vm1266
      %v1269 = vshrl.u32 %v1217, 16
      %v1271 = vrot.slane %v1269, 4
      %v1272 = vshll.u32 %v1217, 16
      %v1274 = vrot.slane %v1272, 5
      %v1275 = vor.u32 %v1271, %v1274
      %v1276 = vrot.slane %v1275, 4
      %v1278 = vshll.u32 %v1218, 16
      %v1280 = vrot.slane %v1278, 5
      %v1281 = vsel %vm1267, %v1276, %v1280
      %v1282 = vshrl.u32 %v1218, 16
      %v1284 = vrot.slane %v1282, 4
      %v1285 = vor.u32 %v1284, %v1280
      %v1286 = vrot.slane %v1285, 4
      %v1288 = vshll.u32 %v1249, 16
      %v1290 = vrot.slane %v1288, 5
      %v1291 = vsel %vm1267, %v1286, %v1290
      %v1293 = vshrl.u32 %v1219, 16
      %v1295 = vrot.slane %v1293, 4
      %v1296 = vshll.u32 %v1219, 16
      %v1298 = vrot.slane %v1296, 5
      %v1299 = vor.u32 %v1295, %v1298
      %v1300 = vrot.slane %v1299, 4
      %v1302 = vshll.u32 %v1220, 16
      %v1304 = vrot.slane %v1302, 5
      %v1305 = vsel %vm1267, %v1300, %v1304
      %v1306 = vshrl.u32 %v1220, 16
      %v1308 = vrot.slane %v1306, 4
      %v1309 = vor.u32 %v1308, %v1304
      %v1310 = vrot.slane %v1309, 4
      %v1312 = vshll.u32 %v1250, 16
      %v1314 = vrot.slane %v1312, 5
      %v1315 = vsel %vm1267, %v1310, %v1314
      %v1317 = vshrl.u32 %v1221, 16
      %v1319 = vrot.slane %v1317, 4
      %v1320 = vshll.u32 %v1221, 16
      %v1322 = vrot.slane %v1320, 5
      %v1323 = vor.u32 %v1319, %v1322
      %v1324 = vrot.slane %v1323, 4
      %v1326 = vshll.u32 %v1222, 16
      %v1328 = vrot.slane %v1326, 5
      %v1329 = vsel %vm1267, %v1324, %v1328
      %v1330 = vshrl.u32 %v1222, 16
      %v1332 = vrot.slane %v1330, 4
      %v1333 = vor.u32 %v1332, %v1328
      %v1334 = vrot.slane %v1333, 4
      %v1336 = vshll.u32 %v1251, 16
      %v1338 = vrot.slane %v1336, 5
      %v1339 = vsel %vm1267, %v1334, %v1338
      %v1341 = vshrl.u32 %v1223, 16
      %v1343 = vrot.slane %v1341, 4
      %v1344 = vshll.u32 %v1223, 16
      %v1346 = vrot.slane %v1344, 5
      %v1347 = vor.u32 %v1343, %v1346
      %v1348 = vrot.slane %v1347, 4
      %v1350 = vshll.u32 %v1224, 16
      %v1352 = vrot.slane %v1350, 5
      %v1353 = vsel %vm1267, %v1348, %v1352
      %v1354 = vshrl.u32 %v1224, 16
      %v1356 = vrot.slane %v1354, 4
      %v1357 = vor.u32 %v1356, %v1352
      %v1358 = vrot.slane %v1357, 4
      %v1360 = vshll.u32 %v1252, 16
      %v1362 = vrot.slane %v1360, 5
      %v1363 = vsel %vm1267, %v1358, %v1362
      %v1365 = vshrl.u32 %v1225, 16
      %v1367 = vrot.slane %v1365, 4
      %v1368 = vshll.u32 %v1225, 16
      %v1370 = vrot.slane %v1368, 5
      %v1371 = vor.u32 %v1367, %v1370
      %v1372 = vrot.slane %v1371, 4
      %v1374 = vshll.u32 %v1226, 16
      %v1376 = vrot.slane %v1374, 5
      %v1377 = vsel %vm1267, %v1372, %v1376
      %v1378 = vshrl.u32 %v1226, 16
      %v1380 = vrot.slane %v1378, 4
      %v1381 = vor.u32 %v1380, %v1376
      %v1382 = vrot.slane %v1381, 4
      %v1384 = vshll.u32 %v1253, 16
      %v1386 = vrot.slane %v1384, 5
      %v1387 = vsel %vm1267, %v1382, %v1386
      %v1389 = vshrl.u32 %v1227, 16
      %v1391 = vrot.slane %v1389, 4
      %v1392 = vshll.u32 %v1227, 16
      %v1394 = vrot.slane %v1392, 5
      %v1395 = vor.u32 %v1391, %v1394
      %v1396 = vrot.slane %v1395, 4
      %v1398 = vshll.u32 %v1228, 16
      %v1400 = vrot.slane %v1398, 5
      %v1401 = vsel %vm1267, %v1396, %v1400
      %v1402 = vshrl.u32 %v1228, 16
      %v1404 = vrot.slane %v1402, 4
      %v1405 = vor.u32 %v1404, %v1400
      %v1406 = vrot.slane %v1405, 4
      %v1408 = vshll.u32 %v1254, 16
      %v1410 = vrot.slane %v1408, 5
      %v1411 = vsel %vm1267, %v1406, %v1410
      %v1413 = vshrl.u32 %v1229, 16
      %v1415 = vrot.slane %v1413, 4
      %v1416 = vshll.u32 %v1229, 16
      %v1418 = vrot.slane %v1416, 5
      %v1419 = vor.u32 %v1415, %v1418
      %v1420 = vrot.slane %v1419, 4
      %v1422 = vshll.u32 %v1230, 16
      %v1424 = vrot.slane %v1422, 5
      %v1425 = vsel %vm1267, %v1420, %v1424
      %v1426 = vshrl.u32 %v1230, 16
      %v1428 = vrot.slane %v1426, 4
      %v1429 = vor.u32 %v1428, %v1424
      %v1430 = vrot.slane %v1429, 4
      %v1432 = vshll.u32 %v1255, 16
      %v1434 = vrot.slane %v1432, 5
      %v1435 = vsel %vm1267, %v1430, %v1434
      %v1437 = vshrl.u32 %v1231, 16
      %v1439 = vrot.slane %v1437, 4
      %v1440 = vshll.u32 %v1231, 16
      %v1442 = vrot.slane %v1440, 5
      %v1443 = vor.u32 %v1439, %v1442
      %v1444 = vrot.slane %v1443, 4
      %v1446 = vshll.u32 %v1232, 16
      %v1448 = vrot.slane %v1446, 5
      %v1449 = vsel %vm1267, %v1444, %v1448
      %v1450 = vshrl.u32 %v1232, 16
      %v1452 = vrot.slane %v1450, 4
      %v1453 = vor.u32 %v1452, %v1448
      %v1454 = vrot.slane %v1453, 4
      %v1456 = vshll.u32 %v1256, 16
      %v1458 = vrot.slane %v1456, 5
      %v1459 = vsel %vm1267, %v1454, %v1458
      %v1461 = vshrl.u32 %v1233, 16
      %v1463 = vrot.slane %v1461, 4
      %v1464 = vshll.u32 %v1233, 16
      %v1466 = vrot.slane %v1464, 5
      %v1467 = vor.u32 %v1463, %v1466
      %v1468 = vrot.slane %v1467, 4
      %v1470 = vshll.u32 %v1234, 16
      %v1472 = vrot.slane %v1470, 5
      %v1473 = vsel %vm1267, %v1468, %v1472
      %v1474 = vshrl.u32 %v1234, 16
      %v1476 = vrot.slane %v1474, 4
      %v1477 = vor.u32 %v1476, %v1472
      %v1478 = vrot.slane %v1477, 4
      %v1480 = vshll.u32 %v1257, 16
      %v1482 = vrot.slane %v1480, 5
      %v1483 = vsel %vm1267, %v1478, %v1482
      %v1485 = vshrl.u32 %v1235, 16
      %v1487 = vrot.slane %v1485, 4
      %v1488 = vshll.u32 %v1235, 16
      %v1490 = vrot.slane %v1488, 5
      %v1491 = vor.u32 %v1487, %v1490
      %v1492 = vrot.slane %v1491, 4
      %v1494 = vshll.u32 %v1236, 16
      %v1496 = vrot.slane %v1494, 5
      %v1497 = vsel %vm1267, %v1492, %v1496
      %v1498 = vshrl.u32 %v1236, 16
      %v1500 = vrot.slane %v1498, 4
      %v1501 = vor.u32 %v1500, %v1496
      %v1502 = vrot.slane %v1501, 4
      %v1504 = vshll.u32 %v1258, 16
      %v1506 = vrot.slane %v1504, 5
      %v1507 = vsel %vm1267, %v1502, %v1506
      %v1509 = vshrl.u32 %v1237, 16
      %v1511 = vrot.slane %v1509, 4
      %v1512 = vshll.u32 %v1237, 16
      %v1514 = vrot.slane %v1512, 5
      %v1515 = vor.u32 %v1511, %v1514
      %v1516 = vrot.slane %v1515, 4
      %v1518 = vshll.u32 %v1238, 16
      %v1520 = vrot.slane %v1518, 5
      %v1521 = vsel %vm1267, %v1516, %v1520
      %v1522 = vshrl.u32 %v1238, 16
      %v1524 = vrot.slane %v1522, 4
      %v1525 = vor.u32 %v1524, %v1520
      %v1526 = vrot.slane %v1525, 4
      %v1528 = vshll.u32 %v1259, 16
      %v1530 = vrot.slane %v1528, 5
      %v1531 = vsel %vm1267, %v1526, %v1530
      %v1533 = vshrl.u32 %v1239, 16
      %v1535 = vrot.slane %v1533, 4
      %v1536 = vshll.u32 %v1239, 16
      %v1538 = vrot.slane %v1536, 5
      %v1539 = vor.u32 %v1535, %v1538
      %v1540 = vrot.slane %v1539, 4
      %v1542 = vshll.u32 %v1240, 16
      %v1544 = vrot.slane %v1542, 5
      %v1545 = vsel %vm1267, %v1540, %v1544
      %v1546 = vshrl.u32 %v1240, 16
      %v1548 = vrot.slane %v1546, 4
      %v1549 = vor.u32 %v1548, %v1544
      %v1550 = vrot.slane %v1549, 4
      %v1552 = vshll.u32 %v1260, 16
      %v1554 = vrot.slane %v1552, 5
      %v1555 = vsel %vm1267, %v1550, %v1554
      %v1557 = vshrl.u32 %v1241, 16
      %v1559 = vrot.slane %v1557, 4
      %v1560 = vshll.u32 %v1241, 16
      %v1562 = vrot.slane %v1560, 5
      %v1563 = vor.u32 %v1559, %v1562
      %v1564 = vrot.slane %v1563, 4
      %v1566 = vshll.u32 %v1242, 16
      %v1568 = vrot.slane %v1566, 5
      %v1569 = vsel %vm1267, %v1564, %v1568
      %v1570 = vshrl.u32 %v1242, 16
      %v1572 = vrot.slane %v1570, 4
      %v1573 = vor.u32 %v1572, %v1568
      %v1574 = vrot.slane %v1573, 4
      %v1576 = vshll.u32 %v1261, 16
      %v1578 = vrot.slane %v1576, 5
      %v1579 = vsel %vm1267, %v1574, %v1578
      %v1581 = vshrl.u32 %v1243, 16
      %v1583 = vrot.slane %v1581, 4
      %v1584 = vshll.u32 %v1243, 16
      %v1586 = vrot.slane %v1584, 5
      %v1587 = vor.u32 %v1583, %v1586
      %v1588 = vrot.slane %v1587, 4
      %v1590 = vshll.u32 %v1244, 16
      %v1592 = vrot.slane %v1590, 5
      %v1593 = vsel %vm1267, %v1588, %v1592
      %v1594 = vshrl.u32 %v1244, 16
      %v1596 = vrot.slane %v1594, 4
      %v1597 = vor.u32 %v1596, %v1592
      %v1598 = vrot.slane %v1597, 4
      %v1600 = vshll.u32 %v1262, 16
      %v1602 = vrot.slane %v1600, 5
      %v1603 = vsel %vm1267, %v1598, %v1602
      %v1605 = vshrl.u32 %v1245, 16
      %v1607 = vrot.slane %v1605, 4
      %v1608 = vshll.u32 %v1245, 16
      %v1610 = vrot.slane %v1608, 5
      %v1611 = vor.u32 %v1607, %v1610
      %v1612 = vrot.slane %v1611, 4
      %v1614 = vshll.u32 %v1246, 16
      %v1616 = vrot.slane %v1614, 5
      %v1617 = vsel %vm1267, %v1612, %v1616
      %v1618 = vshrl.u32 %v1246, 16
      %v1620 = vrot.slane %v1618, 4
      %v1621 = vor.u32 %v1620, %v1616
      %v1622 = vrot.slane %v1621, 4
      %v1624 = vshll.u32 %v1263, 16
      %v1626 = vrot.slane %v1624, 5
      %v1627 = vsel %vm1267, %v1622, %v1626
      %v1629 = vshrl.u32 %v1247, 16
      %v1631 = vrot.slane %v1629, 4
      %v1632 = vshll.u32 %v1247, 16
      %v1634 = vrot.slane %v1632, 5
      %v1635 = vor.u32 %v1631, %v1634
      %v1636 = vrot.slane %v1635, 4
      %v1638 = vshll.u32 %v1248, 16
      %v1640 = vrot.slane %v1638, 5
      %v1641 = vsel %vm1267, %v1636, %v1640
      %v1642 = vshrl.u32 %v1248, 16
      %v1644 = vrot.slane %v1642, 4
      %v1645 = vor.u32 %v1644, %v1640
      %v1646 = vrot.slane %v1645, 4
      %v1648 = vshll.u32 %v1264, 16
      %v1650 = vrot.slane %v1648, 5
      %v1651 = vsel %vm1267, %v1646, %v1650
      %v1652 = vld [vmem:[#allocation2] sm:$0xe]
      %v1653 = vld [vmem:[#allocation2 + $0xc] sm:$0xe]
      %v1654 = vld [vmem:[#allocation2 + $0x18] sm:$0xe]
      %v1655 = vld [vmem:[#allocation2 + $0x24] sm:$0xe]
      %v1656 = vld [vmem:[#allocation2 + $0x30] sm:$0xe]
      %v1657 = vld [vmem:[#allocation2 + $0x3c] sm:$0xe]
      %v1658 = vld [vmem:[#allocation2 + $0x48] sm:$0xe]
      %v1659 = vld [vmem:[#allocation2 + $0x54] sm:$0xe]
      %v1660 = vld [vmem:[#allocation2 + $0x60] sm:$0xe]
      %v1661 = vld [vmem:[#allocation2 + $0x6c] sm:$0xe]
      %v1662 = vld [vmem:[#allocation2 + $0x78] sm:$0xe]
      %v1663 = vld [vmem:[#allocation2 + $0x84] sm:$0xe]
      %v1664 = vld [vmem:[#allocation2 + $0x90] sm:$0xe]
      %v1665 = vld [vmem:[#allocation2 + $0x9c] sm:$0xe]
      %v1666 = vld [vmem:[#allocation2 + $0xa8] sm:$0xe]
      %v1667 = vld [vmem:[#allocation2 + $0xb4] sm:$0xe]
      %vm1716 = vcmask 1042432
      %vm1717 = vcmask 1046532
      %vm1718 = vmor %vm1716, %vm1717
      %v1719 = vrot.slane %v1652, 5
      %v1720 = vrot.slane %v1719, 4
      %v1721 = vrot.slane %v1218, 5
      %v1722 = vsel %vm1718, %v1720, %v1721
      %v1723 = vrot.slane %v1721, 4
      %v1724 = vrot.slane %v1249, 5
      %v1725 = vsel %vm1718, %v1723, %v1724
      %v1726 = vrot.slane %v1653, 5
      %v1727 = vrot.slane %v1726, 4
      %v1728 = vrot.slane %v1220, 5
      %v1729 = vsel %vm1718, %v1727, %v1728
      %v1730 = vrot.slane %v1728, 4
      %v1731 = vrot.slane %v1250, 5
      %v1732 = vsel %vm1718, %v1730, %v1731
      %v1733 = vrot.slane %v1654, 5
      %v1734 = vrot.slane %v1733, 4
      %v1735 = vrot.slane %v1222, 5
      %v1736 = vsel %vm1718, %v1734, %v1735
      %v1737 = vrot.slane %v1735, 4
      %v1738 = vrot.slane %v1251, 5
      %v1739 = vsel %vm1718, %v1737, %v1738
      %v1740 = vrot.slane %v1655, 5
      %v1741 = vrot.slane %v1740, 4
      %v1742 = vrot.slane %v1224, 5
      %v1743 = vsel %vm1718, %v1741, %v1742
      %v1744 = vrot.slane %v1742, 4
      %v1745 = vrot.slane %v1252, 5
      %v1746 = vsel %vm1718, %v1744, %v1745
      %v1747 = vrot.slane %v1656, 5
      %v1748 = vrot.slane %v1747, 4
      %v1749 = vrot.slane %v1226, 5
      %v1750 = vsel %vm1718, %v1748, %v1749
      %v1751 = vrot.slane %v1749, 4
      %v1752 = vrot.slane %v1253, 5
      %v1753 = vsel %vm1718, %v1751, %v1752
      %v1754 = vrot.slane %v1657, 5
      %v1755 = vrot.slane %v1754, 4
      %v1756 = vrot.slane %v1228, 5
      %v1757 = vsel %vm1718, %v1755, %v1756
      %v1758 = vrot.slane %v1756, 4
      %v1759 = vrot.slane %v1254, 5
      %v1760 = vsel %vm1718, %v1758, %v1759
      %v1761 = vrot.slane %v1658, 5
      %v1762 = vrot.slane %v1761, 4
      %v1763 = vrot.slane %v1230, 5
      %v1764 = vsel %vm1718, %v1762, %v1763
      %v1765 = vrot.slane %v1763, 4
      %v1766 = vrot.slane %v1255, 5
      %v1767 = vsel %vm1718, %v1765, %v1766
      %v1768 = vrot.slane %v1659, 5
      %v1769 = vrot.slane %v1768, 4
      %v1770 = vrot.slane %v1232, 5
      %v1771 = vsel %vm1718, %v1769, %v1770
      %v1772 = vrot.slane %v1770, 4
      %v1773 = vrot.slane %v1256, 5
      %v1774 = vsel %vm1718, %v1772, %v1773
      %v1775 = vrot.slane %v1660, 5
      %v1776 = vrot.slane %v1775, 4
      %v1777 = vrot.slane %v1234, 5
      %v1778 = vsel %vm1718, %v1776, %v1777
      %v1779 = vrot.slane %v1777, 4
      %v1780 = vrot.slane %v1257, 5
      %v1781 = vsel %vm1718, %v1779, %v1780
      %v1782 = vrot.slane %v1661, 5
      %v1783 = vrot.slane %v1782, 4
      %v1784 = vrot.slane %v1236, 5
      %v1785 = vsel %vm1718, %v1783, %v1784
      %v1786 = vrot.slane %v1784, 4
      %v1787 = vrot.slane %v1258, 5
      %v1788 = vsel %vm1718, %v1786, %v1787
      %v1789 = vrot.slane %v1662, 5
      %v1790 = vrot.slane %v1789, 4
      %v1791 = vrot.slane %v1238, 5
      %v1792 = vsel %vm1718, %v1790, %v1791
      %v1793 = vrot.slane %v1791, 4
      %v1794 = vrot.slane %v1259, 5
      %v1795 = vsel %vm1718, %v1793, %v1794
      %v1796 = vrot.slane %v1663, 5
      %v1797 = vrot.slane %v1796, 4
      %v1798 = vrot.slane %v1240, 5
      %v1799 = vsel %vm1718, %v1797, %v1798
      %v1800 = vrot.slane %v1798, 4
      %v1801 = vrot.slane %v1260, 5
      %v1802 = vsel %vm1718, %v1800, %v1801
      %v1803 = vrot.slane %v1664, 5
      %v1804 = vrot.slane %v1803, 4
      %v1805 = vrot.slane %v1242, 5
      %v1806 = vsel %vm1718, %v1804, %v1805
      %v1807 = vrot.slane %v1805, 4
      %v1808 = vrot.slane %v1261, 5
      %v1809 = vsel %vm1718, %v1807, %v1808
      %v1810 = vrot.slane %v1665, 5
      %v1811 = vrot.slane %v1810, 4
      %v1812 = vrot.slane %v1244, 5
      %v1813 = vsel %vm1718, %v1811, %v1812
      %v1814 = vrot.slane %v1812, 4
      %v1815 = vrot.slane %v1262, 5
      %v1816 = vsel %vm1718, %v1814, %v1815
      %v1817 = vrot.slane %v1666, 5
      %v1818 = vrot.slane %v1817, 4
      %v1819 = vrot.slane %v1246, 5
      %v1820 = vsel %vm1718, %v1818, %v1819
      %v1821 = vrot.slane %v1819, 4
      %v1822 = vrot.slane %v1263, 5
      %v1823 = vsel %vm1718, %v1821, %v1822
      %v1824 = vrot.slane %v1667, 5
      %v1825 = vrot.slane %v1824, 4
      %v1826 = vrot.slane %v1248, 5
      %v1827 = vsel %vm1718, %v1825, %v1826
      %v1828 = vrot.slane %v1826, 4
      %v1829 = vrot.slane %v1264, 5
      %v1830 = vsel %vm1718, %v1828, %v1829
      %v1831 = vld [vmem:[%s647] sm:$0xf]
      %v1832 = vld [vmem:[%s647 + $0x4] sm:$0xf]
      %v1833 = vld [vmem:[%s647 + $0xc] sm:$0xf]
      %v1834 = vld [vmem:[%s647 + $0x10] sm:$0xf]
      %v1835 = vld [vmem:[%s647 + $0x18] sm:$0xf]
      %v1836 = vld [vmem:[%s647 + $0x1c] sm:$0xf]
      %v1837 = vld [vmem:[%s647 + $0x24] sm:$0xf]
      %v1838 = vld [vmem:[%s647 + $0x28] sm:$0xf]
      %v1839 = vld [vmem:[%s647 + $0x30] sm:$0xf]
      %v1840 = vld [vmem:[%s647 + $0x34] sm:$0xf]
      %v1841 = vld [vmem:[%s647 + $0x3c] sm:$0xf]
      %v1842 = vld [vmem:[%s647 + $0x40] sm:$0xf]
      %v1843 = vld [vmem:[%s647 + $0x48] sm:$0xf]
      %v1844 = vld [vmem:[%s647 + $0x4c] sm:$0xf]
      %v1845 = vld [vmem:[%s647 + $0x54] sm:$0xf]
      %v1846 = vld [vmem:[%s647 + $0x58] sm:$0xf]
      %v1847 = vld [vmem:[%s647 + $0x60] sm:$0xf]
      %v1848 = vld [vmem:[%s647 + $0x64] sm:$0xf]
      %v1849 = vld [vmem:[%s647 + $0x6c] sm:$0xf]
      %v1850 = vld [vmem:[%s647 + $0x70] sm:$0xf]
      %v1851 = vld [vmem:[%s647 + $0x78] sm:$0xf]
      %v1852 = vld [vmem:[%s647 + $0x7c] sm:$0xf]
      %v1853 = vld [vmem:[%s647 + $0x84] sm:$0xf]
      %v1854 = vld [vmem:[%s647 + $0x88] sm:$0xf]
      %v1855 = vld [vmem:[%s647 + $0x90] sm:$0xf]
      %v1856 = vld [vmem:[%s647 + $0x94] sm:$0xf]
      %v1857 = vld [vmem:[%s647 + $0x9c] sm:$0xf]
      %v1858 = vld [vmem:[%s647 + $0xa0] sm:$0xf]
      %v1859 = vld [vmem:[%s647 + $0xa8] sm:$0xf]
      %v1860 = vld [vmem:[%s647 + $0xac] sm:$0xf]
      %v1861 = vld [vmem:[%s647 + $0xb4] sm:$0xf]
      %v1862 = vld [vmem:[%s647 + $0xb8] sm:$0xf]
      %v1863 = vld [vmem:[%s647 + $0x8] sm:$0x1]
      %v1864 = vld [vmem:[%s647 + $0x14] sm:$0x1]
      %v1865 = vld [vmem:[%s647 + $0x20] sm:$0x1]
      %v1866 = vld [vmem:[%s647 + $0x2c] sm:$0x1]
      %v1867 = vld [vmem:[%s647 + $0x38] sm:$0x1]
      %v1868 = vld [vmem:[%s647 + $0x44] sm:$0x1]
      %v1869 = vld [vmem:[%s647 + $0x50] sm:$0x1]
      %v1870 = vld [vmem:[%s647 + $0x5c] sm:$0x1]
      %v1871 = vld [vmem:[%s647 + $0x68] sm:$0x1]
      %v1872 = vld [vmem:[%s647 + $0x74] sm:$0x1]
      %v1873 = vld [vmem:[%s647 + $0x80] sm:$0x1]
      %v1874 = vld [vmem:[%s647 + $0x8c] sm:$0x1]
      %v1875 = vld [vmem:[%s647 + $0x98] sm:$0x1]
      %v1876 = vld [vmem:[%s647 + $0xa4] sm:$0x1]
      %v1877 = vld [vmem:[%s647 + $0xb0] sm:$0x1]
      %v1878 = vld [vmem:[%s647 + $0xbc] sm:$0x1]
      %v1880 = vshrl.u32 %v1831, 16
      %v1882 = vrot.slane %v1880, 4
      %v1883 = vshll.u32 %v1831, 16
      %v1885 = vrot.slane %v1883, 5
      %v1886 = vor.u32 %v1882, %v1885
      %v1887 = vrot.slane %v1886, 4
      %v1889 = vshll.u32 %v1832, 16
      %v1891 = vrot.slane %v1889, 5
      %v1892 = vsel %vm1267, %v1887, %v1891
      %v1893 = vshrl.u32 %v1832, 16
      %v1895 = vrot.slane %v1893, 4
      %v1896 = vor.u32 %v1895, %v1891
      %v1897 = vrot.slane %v1896, 4
      %v1899 = vshll.u32 %v1863, 16
      %v1901 = vrot.slane %v1899, 5
      %v1902 = vsel %vm1267, %v1897, %v1901
      %v1904 = vshrl.u32 %v1833, 16
      %v1906 = vrot.slane %v1904, 4
      %v1907 = vshll.u32 %v1833, 16
      %v1909 = vrot.slane %v1907, 5
      %v1910 = vor.u32 %v1906, %v1909
      %v1911 = vrot.slane %v1910, 4
      %v1913 = vshll.u32 %v1834, 16
      %v1915 = vrot.slane %v1913, 5
      %v1916 = vsel %vm1267, %v1911, %v1915
      %v1917 = vshrl.u32 %v1834, 16
      %v1919 = vrot.slane %v1917, 4
      %v1920 = vor.u32 %v1919, %v1915
      %v1921 = vrot.slane %v1920, 4
      %v1923 = vshll.u32 %v1864, 16
      %v1925 = vrot.slane %v1923, 5
      %v1926 = vsel %vm1267, %v1921, %v1925
      %v1928 = vshrl.u32 %v1835, 16
      %v1930 = vrot.slane %v1928, 4
      %v1931 = vshll.u32 %v1835, 16
      %v1933 = vrot.slane %v1931, 5
      %v1934 = vor.u32 %v1930, %v1933
      %v1935 = vrot.slane %v1934, 4
      %v1937 = vshll.u32 %v1836, 16
      %v1939 = vrot.slane %v1937, 5
      %v1940 = vsel %vm1267, %v1935, %v1939
      %v1941 = vshrl.u32 %v1836, 16
      %v1943 = vrot.slane %v1941, 4
      %v1944 = vor.u32 %v1943, %v1939
      %v1945 = vrot.slane %v1944, 4
      %v1947 = vshll.u32 %v1865, 16
      %v1949 = vrot.slane %v1947, 5
      %v1950 = vsel %vm1267, %v1945, %v1949
      %v1952 = vshrl.u32 %v1837, 16
      %v1954 = vrot.slane %v1952, 4
      %v1955 = vshll.u32 %v1837, 16
      %v1957 = vrot.slane %v1955, 5
      %v1958 = vor.u32 %v1954, %v1957
      %v1959 = vrot.slane %v1958, 4
      %v1961 = vshll.u32 %v1838, 16
      %v1963 = vrot.slane %v1961, 5
      %v1964 = vsel %vm1267, %v1959, %v1963
      %v1965 = vshrl.u32 %v1838, 16
      %v1967 = vrot.slane %v1965, 4
      %v1968 = vor.u32 %v1967, %v1963
      %v1969 = vrot.slane %v1968, 4
      %v1971 = vshll.u32 %v1866, 16
      %v1973 = vrot.slane %v1971, 5
      %v1974 = vsel %vm1267, %v1969, %v1973
      %v1976 = vshrl.u32 %v1839, 16
      %v1978 = vrot.slane %v1976, 4
      %v1979 = vshll.u32 %v1839, 16
      %v1981 = vrot.slane %v1979, 5
      %v1982 = vor.u32 %v1978, %v1981
      %v1983 = vrot.slane %v1982, 4
      %v1985 = vshll.u32 %v1840, 16
      %v1987 = vrot.slane %v1985, 5
      %v1988 = vsel %vm1267, %v1983, %v1987
      %v1989 = vshrl.u32 %v1840, 16
      %v1991 = vrot.slane %v1989, 4
      %v1992 = vor.u32 %v1991, %v1987
      %v1993 = vrot.slane %v1992, 4
      %v1995 = vshll.u32 %v1867, 16
      %v1997 = vrot.slane %v1995, 5
      %v1998 = vsel %vm1267, %v1993, %v1997
      %v2000 = vshrl.u32 %v1841, 16
      %v2002 = vrot.slane %v2000, 4
      %v2003 = vshll.u32 %v1841, 16
      %v2005 = vrot.slane %v2003, 5
      %v2006 = vor.u32 %v2002, %v2005
      %v2007 = vrot.slane %v2006, 4
      %v2009 = vshll.u32 %v1842, 16
      %v2011 = vrot.slane %v2009, 5
      %v2012 = vsel %vm1267, %v2007, %v2011
      %v2013 = vshrl.u32 %v1842, 16
      %v2015 = vrot.slane %v2013, 4
      %v2016 = vor.u32 %v2015, %v2011
      %v2017 = vrot.slane %v2016, 4
      %v2019 = vshll.u32 %v1868, 16
      %v2021 = vrot.slane %v2019, 5
      %v2022 = vsel %vm1267, %v2017, %v2021
      %v2024 = vshrl.u32 %v1843, 16
      %v2026 = vrot.slane %v2024, 4
      %v2027 = vshll.u32 %v1843, 16
      %v2029 = vrot.slane %v2027, 5
      %v2030 = vor.u32 %v2026, %v2029
      %v2031 = vrot.slane %v2030, 4
      %v2033 = vshll.u32 %v1844, 16
      %v2035 = vrot.slane %v2033, 5
      %v2036 = vsel %vm1267, %v2031, %v2035
      %v2037 = vshrl.u32 %v1844, 16
      %v2039 = vrot.slane %v2037, 4
      %v2040 = vor.u32 %v2039, %v2035
      %v2041 = vrot.slane %v2040, 4
      %v2043 = vshll.u32 %v1869, 16
      %v2045 = vrot.slane %v2043, 5
      %v2046 = vsel %vm1267, %v2041, %v2045
      %v2048 = vshrl.u32 %v1845, 16
      %v2050 = vrot.slane %v2048, 4
      %v2051 = vshll.u32 %v1845, 16
      %v2053 = vrot.slane %v2051, 5
      %v2054 = vor.u32 %v2050, %v2053
      %v2055 = vrot.slane %v2054, 4
      %v2057 = vshll.u32 %v1846, 16
      %v2059 = vrot.slane %v2057, 5
      %v2060 = vsel %vm1267, %v2055, %v2059
      %v2061 = vshrl.u32 %v1846, 16
      %v2063 = vrot.slane %v2061, 4
      %v2064 = vor.u32 %v2063, %v2059
      %v2065 = vrot.slane %v2064, 4
      %v2067 = vshll.u32 %v1870, 16
      %v2069 = vrot.slane %v2067, 5
      %v2070 = vsel %vm1267, %v2065, %v2069
      %v2072 = vshrl.u32 %v1847, 16
      %v2074 = vrot.slane %v2072, 4
      %v2075 = vshll.u32 %v1847, 16
      %v2077 = vrot.slane %v2075, 5
      %v2078 = vor.u32 %v2074, %v2077
      %v2079 = vrot.slane %v2078, 4
      %v2081 = vshll.u32 %v1848, 16
      %v2083 = vrot.slane %v2081, 5
      %v2084 = vsel %vm1267, %v2079, %v2083
      %v2085 = vshrl.u32 %v1848, 16
      %v2087 = vrot.slane %v2085, 4
      %v2088 = vor.u32 %v2087, %v2083
      %v2089 = vrot.slane %v2088, 4
      %v2091 = vshll.u32 %v1871, 16
      %v2093 = vrot.slane %v2091, 5
      %v2094 = vsel %vm1267, %v2089, %v2093
      %v2096 = vshrl.u32 %v1849, 16
      %v2098 = vrot.slane %v2096, 4
      %v2099 = vshll.u32 %v1849, 16
      %v2101 = vrot.slane %v2099, 5
      %v2102 = vor.u32 %v2098, %v2101
      %v2103 = vrot.slane %v2102, 4
      %v2105 = vshll.u32 %v1850, 16
      %v2107 = vrot.slane %v2105, 5
      %v2108 = vsel %vm1267, %v2103, %v2107
      %v2109 = vshrl.u32 %v1850, 16
      %v2111 = vrot.slane %v2109, 4
      %v2112 = vor.u32 %v2111, %v2107
      %v2113 = vrot.slane %v2112, 4
      %v2115 = vshll.u32 %v1872, 16
      %v2117 = vrot.slane %v2115, 5
      %v2118 = vsel %vm1267, %v2113, %v2117
      %v2120 = vshrl.u32 %v1851, 16
      %v2122 = vrot.slane %v2120, 4
      %v2123 = vshll.u32 %v1851, 16
      %v2125 = vrot.slane %v2123, 5
      %v2126 = vor.u32 %v2122, %v2125
      %v2127 = vrot.slane %v2126, 4
      %v2129 = vshll.u32 %v1852, 16
      %v2131 = vrot.slane %v2129, 5
      %v2132 = vsel %vm1267, %v2127, %v2131
      %v2133 = vshrl.u32 %v1852, 16
      %v2135 = vrot.slane %v2133, 4
      %v2136 = vor.u32 %v2135, %v2131
      %v2137 = vrot.slane %v2136, 4
      %v2139 = vshll.u32 %v1873, 16
      %v2141 = vrot.slane %v2139, 5
      %v2142 = vsel %vm1267, %v2137, %v2141
      %v2144 = vshrl.u32 %v1853, 16
      %v2146 = vrot.slane %v2144, 4
      %v2147 = vshll.u32 %v1853, 16
      %v2149 = vrot.slane %v2147, 5
      %v2150 = vor.u32 %v2146, %v2149
      %v2151 = vrot.slane %v2150, 4
      %v2153 = vshll.u32 %v1854, 16
      %v2155 = vrot.slane %v2153, 5
      %v2156 = vsel %vm1267, %v2151, %v2155
      %v2157 = vshrl.u32 %v1854, 16
      %v2159 = vrot.slane %v2157, 4
      %v2160 = vor.u32 %v2159, %v2155
      %v2161 = vrot.slane %v2160, 4
      %v2163 = vshll.u32 %v1874, 16
      %v2165 = vrot.slane %v2163, 5
      %v2166 = vsel %vm1267, %v2161, %v2165
      %v2168 = vshrl.u32 %v1855, 16
      %v2170 = vrot.slane %v2168, 4
      %v2171 = vshll.u32 %v1855, 16
      %v2173 = vrot.slane %v2171, 5
      %v2174 = vor.u32 %v2170, %v2173
      %v2175 = vrot.slane %v2174, 4
      %v2177 = vshll.u32 %v1856, 16
      %v2179 = vrot.slane %v2177, 5
      %v2180 = vsel %vm1267, %v2175, %v2179
      %v2181 = vshrl.u32 %v1856, 16
      %v2183 = vrot.slane %v2181, 4
      %v2184 = vor.u32 %v2183, %v2179
      %v2185 = vrot.slane %v2184, 4
      %v2187 = vshll.u32 %v1875, 16
      %v2189 = vrot.slane %v2187, 5
      %v2190 = vsel %vm1267, %v2185, %v2189
      %v2192 = vshrl.u32 %v1857, 16
      %v2194 = vrot.slane %v2192, 4
      %v2195 = vshll.u32 %v1857, 16
      %v2197 = vrot.slane %v2195, 5
      %v2198 = vor.u32 %v2194, %v2197
      %v2199 = vrot.slane %v2198, 4
      %v2201 = vshll.u32 %v1858, 16
      %v2203 = vrot.slane %v2201, 5
      %v2204 = vsel %vm1267, %v2199, %v2203
      %v2205 = vshrl.u32 %v1858, 16
      %v2207 = vrot.slane %v2205, 4
      %v2208 = vor.u32 %v2207, %v2203
      %v2209 = vrot.slane %v2208, 4
      %v2211 = vshll.u32 %v1876, 16
      %v2213 = vrot.slane %v2211, 5
      %v2214 = vsel %vm1267, %v2209, %v2213
      %v2216 = vshrl.u32 %v1859, 16
      %v2218 = vrot.slane %v2216, 4
      %v2219 = vshll.u32 %v1859, 16
      %v2221 = vrot.slane %v2219, 5
      %v2222 = vor.u32 %v2218, %v2221
      %v2223 = vrot.slane %v2222, 4
      %v2225 = vshll.u32 %v1860, 16
      %v2227 = vrot.slane %v2225, 5
      %v2228 = vsel %vm1267, %v2223, %v2227
      %v2229 = vshrl.u32 %v1860, 16
      %v2231 = vrot.slane %v2229, 4
      %v2232 = vor.u32 %v2231, %v2227
      %v2233 = vrot.slane %v2232, 4
      %v2235 = vshll.u32 %v1877, 16
      %v2237 = vrot.slane %v2235, 5
      %v2238 = vsel %vm1267, %v2233, %v2237
      %v2240 = vshrl.u32 %v1861, 16
      %v2242 = vrot.slane %v2240, 4
      %v2243 = vshll.u32 %v1861, 16
      %v2245 = vrot.slane %v2243, 5
      %v2246 = vor.u32 %v2242, %v2245
      %v2247 = vrot.slane %v2246, 4
      %v2249 = vshll.u32 %v1862, 16
      %v2251 = vrot.slane %v2249, 5
      %v2252 = vsel %vm1267, %v2247, %v2251
      %v2253 = vshrl.u32 %v1862, 16
      %v2255 = vrot.slane %v2253, 4
      %v2256 = vor.u32 %v2255, %v2251
      %v2257 = vrot.slane %v2256, 4
      %v2259 = vshll.u32 %v1878, 16
      %v2261 = vrot.slane %v2259, 5
      %v2262 = vsel %vm1267, %v2257, %v2261
      %v2263 = vld [vmem:[%s647] sm:$0xe]
      %v2264 = vld [vmem:[%s647 + $0xc] sm:$0xe]
      %v2265 = vld [vmem:[%s647 + $0x18] sm:$0xe]
      %v2266 = vld [vmem:[%s647 + $0x24] sm:$0xe]
      %v2267 = vld [vmem:[%s647 + $0x30] sm:$0xe]
      %v2268 = vld [vmem:[%s647 + $0x3c] sm:$0xe]
      %v2269 = vld [vmem:[%s647 + $0x48] sm:$0xe]
      %v2270 = vld [vmem:[%s647 + $0x54] sm:$0xe]
      %v2271 = vld [vmem:[%s647 + $0x60] sm:$0xe]
      %v2272 = vld [vmem:[%s647 + $0x6c] sm:$0xe]
      %v2273 = vld [vmem:[%s647 + $0x78] sm:$0xe]
      %v2274 = vld [vmem:[%s647 + $0x84] sm:$0xe]
      %v2275 = vld [vmem:[%s647 + $0x90] sm:$0xe]
      %v2276 = vld [vmem:[%s647 + $0x9c] sm:$0xe]
      %v2277 = vld [vmem:[%s647 + $0xa8] sm:$0xe]
      %v2278 = vld [vmem:[%s647 + $0xb4] sm:$0xe]
      %v2327 = vrot.slane %v2263, 5
      %v2328 = vrot.slane %v2327, 4
      %v2329 = vrot.slane %v1832, 5
      %v2330 = vsel %vm1718, %v2328, %v2329
      %v2331 = vrot.slane %v2329, 4
      %v2332 = vrot.slane %v1863, 5
      %v2333 = vsel %vm1718, %v2331, %v2332
      %v2334 = vrot.slane %v2264, 5
      %v2335 = vrot.slane %v2334, 4
      %v2336 = vrot.slane %v1834, 5
      %v2337 = vsel %vm1718, %v2335, %v2336
      %v2338 = vrot.slane %v2336, 4
      %v2339 = vrot.slane %v1864, 5
      %v2340 = vsel %vm1718, %v2338, %v2339
      %v2341 = vrot.slane %v2265, 5
      %v2342 = vrot.slane %v2341, 4
      %v2343 = vrot.slane %v1836, 5
      %v2344 = vsel %vm1718, %v2342, %v2343
      %v2345 = vrot.slane %v2343, 4
      %v2346 = vrot.slane %v1865, 5
      %v2347 = vsel %vm1718, %v2345, %v2346
      %v2348 = vrot.slane %v2266, 5
      %v2349 = vrot.slane %v2348, 4
      %v2350 = vrot.slane %v1838, 5
      %v2351 = vsel %vm1718, %v2349, %v2350
      %v2352 = vrot.slane %v2350, 4
      %v2353 = vrot.slane %v1866, 5
      %v2354 = vsel %vm1718, %v2352, %v2353
      %v2355 = vrot.slane %v2267, 5
      %v2356 = vrot.slane %v2355, 4
      %v2357 = vrot.slane %v1840, 5
      %v2358 = vsel %vm1718, %v2356, %v2357
      %v2359 = vrot.slane %v2357, 4
      %v2360 = vrot.slane %v1867, 5
      %v2361 = vsel %vm1718, %v2359, %v2360
      %v2362 = vrot.slane %v2268, 5
      %v2363 = vrot.slane %v2362, 4
      %v2364 = vrot.slane %v1842, 5
      %v2365 = vsel %vm1718, %v2363, %v2364
      %v2366 = vrot.slane %v2364, 4
      %v2367 = vrot.slane %v1868, 5
      %v2368 = vsel %vm1718, %v2366, %v2367
      %v2369 = vrot.slane %v2269, 5
      %v2370 = vrot.slane %v2369, 4
      %v2371 = vrot.slane %v1844, 5
      %v2372 = vsel %vm1718, %v2370, %v2371
      %v2373 = vrot.slane %v2371, 4
      %v2374 = vrot.slane %v1869, 5
      %v2375 = vsel %vm1718, %v2373, %v2374
      %v2376 = vrot.slane %v2270, 5
      %v2377 = vrot.slane %v2376, 4
      %v2378 = vrot.slane %v1846, 5
      %v2379 = vsel %vm1718, %v2377, %v2378
      %v2380 = vrot.slane %v2378, 4
      %v2381 = vrot.slane %v1870, 5
      %v2382 = vsel %vm1718, %v2380, %v2381
      %v2383 = vrot.slane %v2271, 5
      %v2384 = vrot.slane %v2383, 4
      %v2385 = vrot.slane %v1848, 5
      %v2386 = vsel %vm1718, %v2384, %v2385
      %v2387 = vrot.slane %v2385, 4
      %v2388 = vrot.slane %v1871, 5
      %v2389 = vsel %vm1718, %v2387, %v2388
      %v2390 = vrot.slane %v2272, 5
      %v2391 = vrot.slane %v2390, 4
      %v2392 = vrot.slane %v1850, 5
      %v2393 = vsel %vm1718, %v2391, %v2392
      %v2394 = vrot.slane %v2392, 4
      %v2395 = vrot.slane %v1872, 5
      %v2396 = vsel %vm1718, %v2394, %v2395
      %v2397 = vrot.slane %v2273, 5
      %v2398 = vrot.slane %v2397, 4
      %v2399 = vrot.slane %v1852, 5
      %v2400 = vsel %vm1718, %v2398, %v2399
      %v2401 = vrot.slane %v2399, 4
      %v2402 = vrot.slane %v1873, 5
      %v2403 = vsel %vm1718, %v2401, %v2402
      %v2404 = vrot.slane %v2274, 5
      %v2405 = vrot.slane %v2404, 4
      %v2406 = vrot.slane %v1854, 5
      %v2407 = vsel %vm1718, %v2405, %v2406
      %v2408 = vrot.slane %v2406, 4
      %v2409 = vrot.slane %v1874, 5
      %v2410 = vsel %vm1718, %v2408, %v2409
      %v2411 = vrot.slane %v2275, 5
      %v2412 = vrot.slane %v2411, 4
      %v2413 = vrot.slane %v1856, 5
      %v2414 = vsel %vm1718, %v2412, %v2413
      %v2415 = vrot.slane %v2413, 4
      %v2416 = vrot.slane %v1875, 5
      %v2417 = vsel %vm1718, %v2415, %v2416
      %v2418 = vrot.slane %v2276, 5
      %v2419 = vrot.slane %v2418, 4
      %v2420 = vrot.slane %v1858, 5
      %v2421 = vsel %vm1718, %v2419, %v2420
      %v2422 = vrot.slane %v2420, 4
      %v2423 = vrot.slane %v1876, 5
      %v2424 = vsel %vm1718, %v2422, %v2423
      %v2425 = vrot.slane %v2277, 5
      %v2426 = vrot.slane %v2425, 4
      %v2427 = vrot.slane %v1860, 5
      %v2428 = vsel %vm1718, %v2426, %v2427
      %v2429 = vrot.slane %v2427, 4
      %v2430 = vrot.slane %v1877, 5
      %v2431 = vsel %vm1718, %v2429, %v2430
      %v2432 = vrot.slane %v2278, 5
      %v2433 = vrot.slane %v2432, 4
      %v2434 = vrot.slane %v1862, 5
      %v2435 = vsel %vm1718, %v2433, %v2434
      %v2436 = vrot.slane %v2434, 4
      %v2437 = vrot.slane %v1878, 5
      %v2438 = vsel %vm1718, %v2436, %v2437
      %s2439 = scalar_lea.vmem [#allocation2], 24
      %v2440 = vld [vmem:[%s2439] sm:$0xf]
      %v2441 = vld [vmem:[%s2439 + $0x4] sm:$0xf]
      %v2442 = vld [vmem:[%s2439 + $0xc] sm:$0xf]
      %v2443 = vld [vmem:[%s2439 + $0x10] sm:$0xf]
      %v2444 = vld [vmem:[%s2439 + $0x18] sm:$0xf]
      %v2445 = vld [vmem:[%s2439 + $0x1c] sm:$0xf]
      %v2446 = vld [vmem:[%s2439 + $0x24] sm:$0xf]
      %v2447 = vld [vmem:[%s2439 + $0x28] sm:$0xf]
      %v2448 = vld [vmem:[%s2439 + $0x30] sm:$0xf]
      %v2449 = vld [vmem:[%s2439 + $0x34] sm:$0xf]
      %v2450 = vld [vmem:[%s2439 + $0x3c] sm:$0xf]
      %v2451 = vld [vmem:[%s2439 + $0x40] sm:$0xf]
      %v2452 = vld [vmem:[%s2439 + $0x48] sm:$0xf]
      %v2453 = vld [vmem:[%s2439 + $0x4c] sm:$0xf]
      %v2454 = vld [vmem:[%s2439 + $0x54] sm:$0xf]
      %v2455 = vld [vmem:[%s2439 + $0x58] sm:$0xf]
      %v2456 = vld [vmem:[%s2439 + $0x60] sm:$0xf]
      %v2457 = vld [vmem:[%s2439 + $0x64] sm:$0xf]
      %v2458 = vld [vmem:[%s2439 + $0x6c] sm:$0xf]
      %v2459 = vld [vmem:[%s2439 + $0x70] sm:$0xf]
      %v2460 = vld [vmem:[%s2439 + $0x78] sm:$0xf]
      %v2461 = vld [vmem:[%s2439 + $0x7c] sm:$0xf]
      %v2462 = vld [vmem:[%s2439 + $0x84] sm:$0xf]
      %v2463 = vld [vmem:[%s2439 + $0x88] sm:$0xf]
      %v2464 = vld [vmem:[%s2439 + $0x90] sm:$0xf]
      %v2465 = vld [vmem:[%s2439 + $0x94] sm:$0xf]
      %v2466 = vld [vmem:[%s2439 + $0x9c] sm:$0xf]
      %v2467 = vld [vmem:[%s2439 + $0xa0] sm:$0xf]
      %v2468 = vld [vmem:[%s2439 + $0xa8] sm:$0xf]
      %v2469 = vld [vmem:[%s2439 + $0xac] sm:$0xf]
      %v2470 = vld [vmem:[%s2439 + $0xb4] sm:$0xf]
      %v2471 = vld [vmem:[%s2439 + $0xb8] sm:$0xf]
      %v2472 = vld [vmem:[%s2439 + $0x8] sm:$0x1]
      %v2473 = vld [vmem:[%s2439 + $0x14] sm:$0x1]
      %v2474 = vld [vmem:[%s2439 + $0x20] sm:$0x1]
      %v2475 = vld [vmem:[%s2439 + $0x2c] sm:$0x1]
      %v2476 = vld [vmem:[%s2439 + $0x38] sm:$0x1]
      %v2477 = vld [vmem:[%s2439 + $0x44] sm:$0x1]
      %v2478 = vld [vmem:[%s2439 + $0x50] sm:$0x1]
      %v2479 = vld [vmem:[%s2439 + $0x5c] sm:$0x1]
      %v2480 = vld [vmem:[%s2439 + $0x68] sm:$0x1]
      %v2481 = vld [vmem:[%s2439 + $0x74] sm:$0x1]
      %v2482 = vld [vmem:[%s2439 + $0x80] sm:$0x1]
      %v2483 = vld [vmem:[%s2439 + $0x8c] sm:$0x1]
      %v2484 = vld [vmem:[%s2439 + $0x98] sm:$0x1]
      %v2485 = vld [vmem:[%s2439 + $0xa4] sm:$0x1]
      %v2486 = vld [vmem:[%s2439 + $0xb0] sm:$0x1]
      %v2487 = vld [vmem:[%s2439 + $0xbc] sm:$0x1]
      %v2489 = vshrl.u32 %v2440, 16
      %v2491 = vrot.slane %v2489, 4
      %v2492 = vshll.u32 %v2440, 16
      %v2494 = vrot.slane %v2492, 5
      %v2495 = vor.u32 %v2491, %v2494
      %v2496 = vrot.slane %v2495, 4
      %v2498 = vshll.u32 %v2441, 16
      %v2500 = vrot.slane %v2498, 5
      %v2501 = vsel %vm1267, %v2496, %v2500
      %v2502 = vshrl.u32 %v2441, 16
      %v2504 = vrot.slane %v2502, 4
      %v2505 = vor.u32 %v2504, %v2500
      %v2506 = vrot.slane %v2505, 4
      %v2508 = vshll.u32 %v2472, 16
      %v2510 = vrot.slane %v2508, 5
      %v2511 = vsel %vm1267, %v2506, %v2510
      %v2513 = vshrl.u32 %v2442, 16
      %v2515 = vrot.slane %v2513, 4
      %v2516 = vshll.u32 %v2442, 16
      %v2518 = vrot.slane %v2516, 5
      %v2519 = vor.u32 %v2515, %v2518
      %v2520 = vrot.slane %v2519, 4
      %v2522 = vshll.u32 %v2443, 16
      %v2524 = vrot.slane %v2522, 5
      %v2525 = vsel %vm1267, %v2520, %v2524
      %v2526 = vshrl.u32 %v2443, 16
      %v2528 = vrot.slane %v2526, 4
      %v2529 = vor.u32 %v2528, %v2524
      %v2530 = vrot.slane %v2529, 4
      %v2532 = vshll.u32 %v2473, 16
      %v2534 = vrot.slane %v2532, 5
      %v2535 = vsel %vm1267, %v2530, %v2534
      %v2537 = vshrl.u32 %v2444, 16
      %v2539 = vrot.slane %v2537, 4
      %v2540 = vshll.u32 %v2444, 16
      %v2542 = vrot.slane %v2540, 5
      %v2543 = vor.u32 %v2539, %v2542
      %v2544 = vrot.slane %v2543, 4
      %v2546 = vshll.u32 %v2445, 16
      %v2548 = vrot.slane %v2546, 5
      %v2549 = vsel %vm1267, %v2544, %v2548
      %v2550 = vshrl.u32 %v2445, 16
      %v2552 = vrot.slane %v2550, 4
      %v2553 = vor.u32 %v2552, %v2548
      %v2554 = vrot.slane %v2553, 4
      %v2556 = vshll.u32 %v2474, 16
      %v2558 = vrot.slane %v2556, 5
      %v2559 = vsel %vm1267, %v2554, %v2558
      %v2561 = vshrl.u32 %v2446, 16
      %v2563 = vrot.slane %v2561, 4
      %v2564 = vshll.u32 %v2446, 16
      %v2566 = vrot.slane %v2564, 5
      %v2567 = vor.u32 %v2563, %v2566
      %v2568 = vrot.slane %v2567, 4
      %v2570 = vshll.u32 %v2447, 16
      %v2572 = vrot.slane %v2570, 5
      %v2573 = vsel %vm1267, %v2568, %v2572
      %v2574 = vshrl.u32 %v2447, 16
      %v2576 = vrot.slane %v2574, 4
      %v2577 = vor.u32 %v2576, %v2572
      %v2578 = vrot.slane %v2577, 4
      %v2580 = vshll.u32 %v2475, 16
      %v2582 = vrot.slane %v2580, 5
      %v2583 = vsel %vm1267, %v2578, %v2582
      %v2585 = vshrl.u32 %v2448, 16
      %v2587 = vrot.slane %v2585, 4
      %v2588 = vshll.u32 %v2448, 16
      %v2590 = vrot.slane %v2588, 5
      %v2591 = vor.u32 %v2587, %v2590
      %v2592 = vrot.slane %v2591, 4
      %v2594 = vshll.u32 %v2449, 16
      %v2596 = vrot.slane %v2594, 5
      %v2597 = vsel %vm1267, %v2592, %v2596
      %v2598 = vshrl.u32 %v2449, 16
      %v2600 = vrot.slane %v2598, 4
      %v2601 = vor.u32 %v2600, %v2596
      %v2602 = vrot.slane %v2601, 4
      %v2604 = vshll.u32 %v2476, 16
      %v2606 = vrot.slane %v2604, 5
      %v2607 = vsel %vm1267, %v2602, %v2606
      %v2609 = vshrl.u32 %v2450, 16
      %v2611 = vrot.slane %v2609, 4
      %v2612 = vshll.u32 %v2450, 16
      %v2614 = vrot.slane %v2612, 5
      %v2615 = vor.u32 %v2611, %v2614
      %v2616 = vrot.slane %v2615, 4
      %v2618 = vshll.u32 %v2451, 16
      %v2620 = vrot.slane %v2618, 5
      %v2621 = vsel %vm1267, %v2616, %v2620
      %v2622 = vshrl.u32 %v2451, 16
      %v2624 = vrot.slane %v2622, 4
      %v2625 = vor.u32 %v2624, %v2620
      %v2626 = vrot.slane %v2625, 4
      %v2628 = vshll.u32 %v2477, 16
      %v2630 = vrot.slane %v2628, 5
      %v2631 = vsel %vm1267, %v2626, %v2630
      %v2633 = vshrl.u32 %v2452, 16
      %v2635 = vrot.slane %v2633, 4
      %v2636 = vshll.u32 %v2452, 16
      %v2638 = vrot.slane %v2636, 5
      %v2639 = vor.u32 %v2635, %v2638
      %v2640 = vrot.slane %v2639, 4
      %v2642 = vshll.u32 %v2453, 16
      %v2644 = vrot.slane %v2642, 5
      %v2645 = vsel %vm1267, %v2640, %v2644
      %v2646 = vshrl.u32 %v2453, 16
      %v2648 = vrot.slane %v2646, 4
      %v2649 = vor.u32 %v2648, %v2644
      %v2650 = vrot.slane %v2649, 4
      %v2652 = vshll.u32 %v2478, 16
      %v2654 = vrot.slane %v2652, 5
      %v2655 = vsel %vm1267, %v2650, %v2654
      %v2657 = vshrl.u32 %v2454, 16
      %v2659 = vrot.slane %v2657, 4
      %v2660 = vshll.u32 %v2454, 16
      %v2662 = vrot.slane %v2660, 5
      %v2663 = vor.u32 %v2659, %v2662
      %v2664 = vrot.slane %v2663, 4
      %v2666 = vshll.u32 %v2455, 16
      %v2668 = vrot.slane %v2666, 5
      %v2669 = vsel %vm1267, %v2664, %v2668
      %v2670 = vshrl.u32 %v2455, 16
      %v2672 = vrot.slane %v2670, 4
      %v2673 = vor.u32 %v2672, %v2668
      %v2674 = vrot.slane %v2673, 4
      %v2676 = vshll.u32 %v2479, 16
      %v2678 = vrot.slane %v2676, 5
      %v2679 = vsel %vm1267, %v2674, %v2678
      %v2681 = vshrl.u32 %v2456, 16
      %v2683 = vrot.slane %v2681, 4
      %v2684 = vshll.u32 %v2456, 16
      %v2686 = vrot.slane %v2684, 5
      %v2687 = vor.u32 %v2683, %v2686
      %v2688 = vrot.slane %v2687, 4
      %v2690 = vshll.u32 %v2457, 16
      %v2692 = vrot.slane %v2690, 5
      %v2693 = vsel %vm1267, %v2688, %v2692
      %v2694 = vshrl.u32 %v2457, 16
      %v2696 = vrot.slane %v2694, 4
      %v2697 = vor.u32 %v2696, %v2692
      %v2698 = vrot.slane %v2697, 4
      %v2700 = vshll.u32 %v2480, 16
      %v2702 = vrot.slane %v2700, 5
      %v2703 = vsel %vm1267, %v2698, %v2702
      %v2705 = vshrl.u32 %v2458, 16
      %v2707 = vrot.slane %v2705, 4
      %v2708 = vshll.u32 %v2458, 16
      %v2710 = vrot.slane %v2708, 5
      %v2711 = vor.u32 %v2707, %v2710
      %v2712 = vrot.slane %v2711, 4
      %v2714 = vshll.u32 %v2459, 16
      %v2716 = vrot.slane %v2714, 5
      %v2717 = vsel %vm1267, %v2712, %v2716
      %v2718 = vshrl.u32 %v2459, 16
      %v2720 = vrot.slane %v2718, 4
      %v2721 = vor.u32 %v2720, %v2716
      %v2722 = vrot.slane %v2721, 4
      %v2724 = vshll.u32 %v2481, 16
      %v2726 = vrot.slane %v2724, 5
      %v2727 = vsel %vm1267, %v2722, %v2726
      %v2729 = vshrl.u32 %v2460, 16
      %v2731 = vrot.slane %v2729, 4
      %v2732 = vshll.u32 %v2460, 16
      %v2734 = vrot.slane %v2732, 5
      %v2735 = vor.u32 %v2731, %v2734
      %v2736 = vrot.slane %v2735, 4
      %v2738 = vshll.u32 %v2461, 16
      %v2740 = vrot.slane %v2738, 5
      %v2741 = vsel %vm1267, %v2736, %v2740
      %v2742 = vshrl.u32 %v2461, 16
      %v2744 = vrot.slane %v2742, 4
      %v2745 = vor.u32 %v2744, %v2740
      %v2746 = vrot.slane %v2745, 4
      %v2748 = vshll.u32 %v2482, 16
      %v2750 = vrot.slane %v2748, 5
      %v2751 = vsel %vm1267, %v2746, %v2750
      %v2753 = vshrl.u32 %v2462, 16
      %v2755 = vrot.slane %v2753, 4
      %v2756 = vshll.u32 %v2462, 16
      %v2758 = vrot.slane %v2756, 5
      %v2759 = vor.u32 %v2755, %v2758
      %v2760 = vrot.slane %v2759, 4
      %v2762 = vshll.u32 %v2463, 16
      %v2764 = vrot.slane %v2762, 5
      %v2765 = vsel %vm1267, %v2760, %v2764
      %v2766 = vshrl.u32 %v2463, 16
      %v2768 = vrot.slane %v2766, 4
      %v2769 = vor.u32 %v2768, %v2764
      %v2770 = vrot.slane %v2769, 4
      %v2772 = vshll.u32 %v2483, 16
      %v2774 = vrot.slane %v2772, 5
      %v2775 = vsel %vm1267, %v2770, %v2774
      %v2777 = vshrl.u32 %v2464, 16
      %v2779 = vrot.slane %v2777, 4
      %v2780 = vshll.u32 %v2464, 16
      %v2782 = vrot.slane %v2780, 5
      %v2783 = vor.u32 %v2779, %v2782
      %v2784 = vrot.slane %v2783, 4
      %v2786 = vshll.u32 %v2465, 16
      %v2788 = vrot.slane %v2786, 5
      %v2789 = vsel %vm1267, %v2784, %v2788
      %v2790 = vshrl.u32 %v2465, 16
      %v2792 = vrot.slane %v2790, 4
      %v2793 = vor.u32 %v2792, %v2788
      %v2794 = vrot.slane %v2793, 4
      %v2796 = vshll.u32 %v2484, 16
      %v2798 = vrot.slane %v2796, 5
      %v2799 = vsel %vm1267, %v2794, %v2798
      %v2801 = vshrl.u32 %v2466, 16
      %v2803 = vrot.slane %v2801, 4
      %v2804 = vshll.u32 %v2466, 16
      %v2806 = vrot.slane %v2804, 5
      %v2807 = vor.u32 %v2803, %v2806
      %v2808 = vrot.slane %v2807, 4
      %v2810 = vshll.u32 %v2467, 16
      %v2812 = vrot.slane %v2810, 5
      %v2813 = vsel %vm1267, %v2808, %v2812
      %v2814 = vshrl.u32 %v2467, 16
      %v2816 = vrot.slane %v2814, 4
      %v2817 = vor.u32 %v2816, %v2812
      %v2818 = vrot.slane %v2817, 4
      %v2820 = vshll.u32 %v2485, 16
      %v2822 = vrot.slane %v2820, 5
      %v2823 = vsel %vm1267, %v2818, %v2822
      %v2825 = vshrl.u32 %v2468, 16
      %v2827 = vrot.slane %v2825, 4
      %v2828 = vshll.u32 %v2468, 16
      %v2830 = vrot.slane %v2828, 5
      %v2831 = vor.u32 %v2827, %v2830
      %v2832 = vrot.slane %v2831, 4
      %v2834 = vshll.u32 %v2469, 16
      %v2836 = vrot.slane %v2834, 5
      %v2837 = vsel %vm1267, %v2832, %v2836
      %v2838 = vshrl.u32 %v2469, 16
      %v2840 = vrot.slane %v2838, 4
      %v2841 = vor.u32 %v2840, %v2836
      %v2842 = vrot.slane %v2841, 4
      %v2844 = vshll.u32 %v2486, 16
      %v2846 = vrot.slane %v2844, 5
      %v2847 = vsel %vm1267, %v2842, %v2846
      %v2849 = vshrl.u32 %v2470, 16
      %v2851 = vrot.slane %v2849, 4
      %v2852 = vshll.u32 %v2470, 16
      %v2854 = vrot.slane %v2852, 5
      %v2855 = vor.u32 %v2851, %v2854
      %v2856 = vrot.slane %v2855, 4
      %v2858 = vshll.u32 %v2471, 16
      %v2860 = vrot.slane %v2858, 5
      %v2861 = vsel %vm1267, %v2856, %v2860
      %v2862 = vshrl.u32 %v2471, 16
      %v2864 = vrot.slane %v2862, 4
      %v2865 = vor.u32 %v2864, %v2860
      %v2866 = vrot.slane %v2865, 4
      %v2868 = vshll.u32 %v2487, 16
      %v2870 = vrot.slane %v2868, 5
      %v2871 = vsel %vm1267, %v2866, %v2870
      %v2872 = vld [vmem:[%s2439] sm:$0xe]
      %v2873 = vld [vmem:[%s2439 + $0xc] sm:$0xe]
      %v2874 = vld [vmem:[%s2439 + $0x18] sm:$0xe]
      %v2875 = vld [vmem:[%s2439 + $0x24] sm:$0xe]
      %v2876 = vld [vmem:[%s2439 + $0x30] sm:$0xe]
      %v2877 = vld [vmem:[%s2439 + $0x3c] sm:$0xe]
      %v2878 = vld [vmem:[%s2439 + $0x48] sm:$0xe]
      %v2879 = vld [vmem:[%s2439 + $0x54] sm:$0xe]
      %v2880 = vld [vmem:[%s2439 + $0x60] sm:$0xe]
      %v2881 = vld [vmem:[%s2439 + $0x6c] sm:$0xe]
      %v2882 = vld [vmem:[%s2439 + $0x78] sm:$0xe]
      %v2883 = vld [vmem:[%s2439 + $0x84] sm:$0xe]
      %v2884 = vld [vmem:[%s2439 + $0x90] sm:$0xe]
      %v2885 = vld [vmem:[%s2439 + $0x9c] sm:$0xe]
      %v2886 = vld [vmem:[%s2439 + $0xa8] sm:$0xe]
      %v2887 = vld [vmem:[%s2439 + $0xb4] sm:$0xe]
      %v2936 = vrot.slane %v2872, 5
      %v2937 = vrot.slane %v2936, 4
      %v2938 = vrot.slane %v2441, 5
      %v2939 = vsel %vm1718, %v2937, %v2938
      %v2940 = vrot.slane %v2938, 4
      %v2941 = vrot.slane %v2472, 5
      %v2942 = vsel %vm1718, %v2940, %v2941
      %v2943 = vrot.slane %v2873, 5
      %v2944 = vrot.slane %v2943, 4
      %v2945 = vrot.slane %v2443, 5
      %v2946 = vsel %vm1718, %v2944, %v2945
      %v2947 = vrot.slane %v2945, 4
      %v2948 = vrot.slane %v2473, 5
      %v2949 = vsel %vm1718, %v2947, %v2948
      %v2950 = vrot.slane %v2874, 5
      %v2951 = vrot.slane %v2950, 4
      %v2952 = vrot.slane %v2445, 5
      %v2953 = vsel %vm1718, %v2951, %v2952
      %v2954 = vrot.slane %v2952, 4
      %v2955 = vrot.slane %v2474, 5
      %v2956 = vsel %vm1718, %v2954, %v2955
      %v2957 = vrot.slane %v2875, 5
      %v2958 = vrot.slane %v2957, 4
      %v2959 = vrot.slane %v2447, 5
      %v2960 = vsel %vm1718, %v2958, %v2959
      %v2961 = vrot.slane %v2959, 4
      %v2962 = vrot.slane %v2475, 5
      %v2963 = vsel %vm1718, %v2961, %v2962
      %v2964 = vrot.slane %v2876, 5
      %v2965 = vrot.slane %v2964, 4
      %v2966 = vrot.slane %v2449, 5
      %v2967 = vsel %vm1718, %v2965, %v2966
      %v2968 = vrot.slane %v2966, 4
      %v2969 = vrot.slane %v2476, 5
      %v2970 = vsel %vm1718, %v2968, %v2969
      %v2971 = vrot.slane %v2877, 5
      %v2972 = vrot.slane %v2971, 4
      %v2973 = vrot.slane %v2451, 5
      %v2974 = vsel %vm1718, %v2972, %v2973
      %v2975 = vrot.slane %v2973, 4
      %v2976 = vrot.slane %v2477, 5
      %v2977 = vsel %vm1718, %v2975, %v2976
      %v2978 = vrot.slane %v2878, 5
      %v2979 = vrot.slane %v2978, 4
      %v2980 = vrot.slane %v2453, 5
      %v2981 = vsel %vm1718, %v2979, %v2980
      %v2982 = vrot.slane %v2980, 4
      %v2983 = vrot.slane %v2478, 5
      %v2984 = vsel %vm1718, %v2982, %v2983
      %v2985 = vrot.slane %v2879, 5
      %v2986 = vrot.slane %v2985, 4
      %v2987 = vrot.slane %v2455, 5
      %v2988 = vsel %vm1718, %v2986, %v2987
      %v2989 = vrot.slane %v2987, 4
      %v2990 = vrot.slane %v2479, 5
      %v2991 = vsel %vm1718, %v2989, %v2990
      %v2992 = vrot.slane %v2880, 5
      %v2993 = vrot.slane %v2992, 4
      %v2994 = vrot.slane %v2457, 5
      %v2995 = vsel %vm1718, %v2993, %v2994
      %v2996 = vrot.slane %v2994, 4
      %v2997 = vrot.slane %v2480, 5
      %v2998 = vsel %vm1718, %v2996, %v2997
      %v2999 = vrot.slane %v2881, 5
      %v3000 = vrot.slane %v2999, 4
      %v3001 = vrot.slane %v2459, 5
      %v3002 = vsel %vm1718, %v3000, %v3001
      %v3003 = vrot.slane %v3001, 4
      %v3004 = vrot.slane %v2481, 5
      %v3005 = vsel %vm1718, %v3003, %v3004
      %v3006 = vrot.slane %v2882, 5
      %v3007 = vrot.slane %v3006, 4
      %v3008 = vrot.slane %v2461, 5
      %v3009 = vsel %vm1718, %v3007, %v3008
      %v3010 = vrot.slane %v3008, 4
      %v3011 = vrot.slane %v2482, 5
      %v3012 = vsel %vm1718, %v3010, %v3011
      %v3013 = vrot.slane %v2883, 5
      %v3014 = vrot.slane %v3013, 4
      %v3015 = vrot.slane %v2463, 5
      %v3016 = vsel %vm1718, %v3014, %v3015
      %v3017 = vrot.slane %v3015, 4
      %v3018 = vrot.slane %v2483, 5
      %v3019 = vsel %vm1718, %v3017, %v3018
      %v3020 = vrot.slane %v2884, 5
      %v3021 = vrot.slane %v3020, 4
      %v3022 = vrot.slane %v2465, 5
      %v3023 = vsel %vm1718, %v3021, %v3022
      %v3024 = vrot.slane %v3022, 4
      %v3025 = vrot.slane %v2484, 5
      %v3026 = vsel %vm1718, %v3024, %v3025
      %v3027 = vrot.slane %v2885, 5
      %v3028 = vrot.slane %v3027, 4
      %v3029 = vrot.slane %v2467, 5
      %v3030 = vsel %vm1718, %v3028, %v3029
      %v3031 = vrot.slane %v3029, 4
      %v3032 = vrot.slane %v2485, 5
      %v3033 = vsel %vm1718, %v3031, %v3032
      %v3034 = vrot.slane %v2886, 5
      %v3035 = vrot.slane %v3034, 4
      %v3036 = vrot.slane %v2469, 5
      %v3037 = vsel %vm1718, %v3035, %v3036
      %v3038 = vrot.slane %v3036, 4
      %v3039 = vrot.slane %v2486, 5
      %v3040 = vsel %vm1718, %v3038, %v3039
      %v3041 = vrot.slane %v2887, 5
      %v3042 = vrot.slane %v3041, 4
      %v3043 = vrot.slane %v2471, 5
      %v3044 = vsel %vm1718, %v3042, %v3043
      %v3045 = vrot.slane %v3043, 4
      %v3046 = vrot.slane %v2487, 5
      %v3047 = vsel %vm1718, %v3045, %v3046
      %v3064 = vunpack.c.l.b16 %v1217
      %v3065 = vunpack.c.l.b16 %v1218
      %v3066 = vunpack.c.l.b16 %v1219
      %v3067 = vunpack.c.l.b16 %v1220
      %v3068 = vunpack.c.l.b16 %v1221
      %v3069 = vunpack.c.l.b16 %v1222
      %v3070 = vunpack.c.l.b16 %v1223
      %v3071 = vunpack.c.l.b16 %v1224
      %v3072 = vunpack.c.l.b16 %v1225
      %v3073 = vunpack.c.l.b16 %v1226
      %v3074 = vunpack.c.l.b16 %v1227
      %v3075 = vunpack.c.l.b16 %v1228
      %v3076 = vunpack.c.l.b16 %v1229
      %v3077 = vunpack.c.l.b16 %v1230
      %v3078 = vunpack.c.l.b16 %v1231
      %v3079 = vunpack.c.l.b16 %v1232
      %v3080 = vunpack.c.l.b16 %v1233
      %v3081 = vunpack.c.l.b16 %v1234
      %v3082 = vunpack.c.l.b16 %v1235
      %v3083 = vunpack.c.l.b16 %v1236
      %v3084 = vunpack.c.l.b16 %v1237
      %v3085 = vunpack.c.l.b16 %v1238
      %v3086 = vunpack.c.l.b16 %v1239
      %v3087 = vunpack.c.l.b16 %v1240
      %v3088 = vunpack.c.l.b16 %v1241
      %v3089 = vunpack.c.l.b16 %v1242
      %v3090 = vunpack.c.l.b16 %v1243
      %v3091 = vunpack.c.l.b16 %v1244
      %v3092 = vunpack.c.l.b16 %v1245
      %v3093 = vunpack.c.l.b16 %v1246
      %v3094 = vunpack.c.l.b16 %v1247
      %v3095 = vunpack.c.l.b16 %v1248
      %v3096 = vpack.c.b16 %v3065, %v3064
      %v3097 = vpack.c.b16 %v3067, %v3066
      %v3098 = vpack.c.b16 %v3069, %v3068
      %v3099 = vpack.c.b16 %v3071, %v3070
      %v3100 = vpack.c.b16 %v3073, %v3072
      %v3101 = vpack.c.b16 %v3075, %v3074
      %v3102 = vpack.c.b16 %v3077, %v3076
      %v3103 = vpack.c.b16 %v3079, %v3078
      %v3104 = vpack.c.b16 %v3081, %v3080
      %v3105 = vpack.c.b16 %v3083, %v3082
      %v3106 = vpack.c.b16 %v3085, %v3084
      %v3107 = vpack.c.b16 %v3087, %v3086
      %v3108 = vpack.c.b16 %v3089, %v3088
      %v3109 = vpack.c.b16 %v3091, %v3090
      %v3110 = vpack.c.b16 %v3093, %v3092
      %v3111 = vpack.c.b16 %v3095, %v3094
      %v3128 = vunpack.c.l.b16 %v1281
      %v3129 = vunpack.c.l.b16 %v1291
      %v3130 = vunpack.c.l.b16 %v1305
      %v3131 = vunpack.c.l.b16 %v1315
      %v3132 = vunpack.c.l.b16 %v1329
      %v3133 = vunpack.c.l.b16 %v1339
      %v3134 = vunpack.c.l.b16 %v1353
      %v3135 = vunpack.c.l.b16 %v1363
      %v3136 = vunpack.c.l.b16 %v1377
      %v3137 = vunpack.c.l.b16 %v1387
      %v3138 = vunpack.c.l.b16 %v1401
      %v3139 = vunpack.c.l.b16 %v1411
      %v3140 = vunpack.c.l.b16 %v1425
      %v3141 = vunpack.c.l.b16 %v1435
      %v3142 = vunpack.c.l.b16 %v1449
      %v3143 = vunpack.c.l.b16 %v1459
      %v3144 = vunpack.c.l.b16 %v1473
      %v3145 = vunpack.c.l.b16 %v1483
      %v3146 = vunpack.c.l.b16 %v1497
      %v3147 = vunpack.c.l.b16 %v1507
      %v3148 = vunpack.c.l.b16 %v1521
      %v3149 = vunpack.c.l.b16 %v1531
      %v3150 = vunpack.c.l.b16 %v1545
      %v3151 = vunpack.c.l.b16 %v1555
      %v3152 = vunpack.c.l.b16 %v1569
      %v3153 = vunpack.c.l.b16 %v1579
      %v3154 = vunpack.c.l.b16 %v1593
      %v3155 = vunpack.c.l.b16 %v1603
      %v3156 = vunpack.c.l.b16 %v1617
      %v3157 = vunpack.c.l.b16 %v1627
      %v3158 = vunpack.c.l.b16 %v1641
      %v3159 = vunpack.c.l.b16 %v1651
      %v3160 = vpack.c.b16 %v3129, %v3128
      %v3161 = vpack.c.b16 %v3131, %v3130
      %v3162 = vpack.c.b16 %v3133, %v3132
      %v3163 = vpack.c.b16 %v3135, %v3134
      %v3164 = vpack.c.b16 %v3137, %v3136
      %v3165 = vpack.c.b16 %v3139, %v3138
      %v3166 = vpack.c.b16 %v3141, %v3140
      %v3167 = vpack.c.b16 %v3143, %v3142
      %v3168 = vpack.c.b16 %v3145, %v3144
      %v3169 = vpack.c.b16 %v3147, %v3146
      %v3170 = vpack.c.b16 %v3149, %v3148
      %v3171 = vpack.c.b16 %v3151, %v3150
      %v3172 = vpack.c.b16 %v3153, %v3152
      %v3173 = vpack.c.b16 %v3155, %v3154
      %v3174 = vpack.c.b16 %v3157, %v3156
      %v3175 = vpack.c.b16 %v3159, %v3158
      %v3192 = vunpack.c.l.b16 %v1722
      %v3193 = vunpack.c.l.b16 %v1725
      %v3194 = vunpack.c.l.b16 %v1729
      %v3195 = vunpack.c.l.b16 %v1732
      %v3196 = vunpack.c.l.b16 %v1736
      %v3197 = vunpack.c.l.b16 %v1739
      %v3198 = vunpack.c.l.b16 %v1743
      %v3199 = vunpack.c.l.b16 %v1746
      %v3200 = vunpack.c.l.b16 %v1750
      %v3201 = vunpack.c.l.b16 %v1753
      %v3202 = vunpack.c.l.b16 %v1757
      %v3203 = vunpack.c.l.b16 %v1760
      %v3204 = vunpack.c.l.b16 %v1764
      %v3205 = vunpack.c.l.b16 %v1767
      %v3206 = vunpack.c.l.b16 %v1771
      %v3207 = vunpack.c.l.b16 %v1774
      %v3208 = vunpack.c.l.b16 %v1778
      %v3209 = vunpack.c.l.b16 %v1781
      %v3210 = vunpack.c.l.b16 %v1785
      %v3211 = vunpack.c.l.b16 %v1788
      %v3212 = vunpack.c.l.b16 %v1792
      %v3213 = vunpack.c.l.b16 %v1795
      %v3214 = vunpack.c.l.b16 %v1799
      %v3215 = vunpack.c.l.b16 %v1802
      %v3216 = vunpack.c.l.b16 %v1806
      %v3217 = vunpack.c.l.b16 %v1809
      %v3218 = vunpack.c.l.b16 %v1813
      %v3219 = vunpack.c.l.b16 %v1816
      %v3220 = vunpack.c.l.b16 %v1820
      %v3221 = vunpack.c.l.b16 %v1823
      %v3222 = vunpack.c.l.b16 %v1827
      %v3223 = vunpack.c.l.b16 %v1830
      %v3224 = vpack.c.b16 %v3193, %v3192
      %v3225 = vpack.c.b16 %v3195, %v3194
      %v3226 = vpack.c.b16 %v3197, %v3196
      %v3227 = vpack.c.b16 %v3199, %v3198
      %v3228 = vpack.c.b16 %v3201, %v3200
      %v3229 = vpack.c.b16 %v3203, %v3202
      %v3230 = vpack.c.b16 %v3205, %v3204
      %v3231 = vpack.c.b16 %v3207, %v3206
      %v3232 = vpack.c.b16 %v3209, %v3208
      %v3233 = vpack.c.b16 %v3211, %v3210
      %v3234 = vpack.c.b16 %v3213, %v3212
      %v3235 = vpack.c.b16 %v3215, %v3214
      %v3236 = vpack.c.b16 %v3217, %v3216
      %v3237 = vpack.c.b16 %v3219, %v3218
      %v3238 = vpack.c.b16 %v3221, %v3220
      %v3239 = vpack.c.b16 %v3223, %v3222
      %v3272 = vunpack.c.l.b16 %v1831
      %v3273 = vunpack.c.l.b16 %v1832
      %v3274 = vunpack.c.l.b16 %v1833
      %v3275 = vunpack.c.l.b16 %v1834
      %v3276 = vunpack.c.l.b16 %v1835
      %v3277 = vunpack.c.l.b16 %v1836
      %v3278 = vunpack.c.l.b16 %v1837
      %v3279 = vunpack.c.l.b16 %v1838
      %v3280 = vunpack.c.l.b16 %v1839
      %v3281 = vunpack.c.l.b16 %v1840
      %v3282 = vunpack.c.l.b16 %v1841
      %v3283 = vunpack.c.l.b16 %v1842
      %v3284 = vunpack.c.l.b16 %v1843
      %v3285 = vunpack.c.l.b16 %v1844
      %v3286 = vunpack.c.l.b16 %v1845
      %v3287 = vunpack.c.l.b16 %v1846
      %v3288 = vunpack.c.l.b16 %v1847
      %v3289 = vunpack.c.l.b16 %v1848
      %v3290 = vunpack.c.l.b16 %v1849
      %v3291 = vunpack.c.l.b16 %v1850
      %v3292 = vunpack.c.l.b16 %v1851
      %v3293 = vunpack.c.l.b16 %v1852
      %v3294 = vunpack.c.l.b16 %v1853
      %v3295 = vunpack.c.l.b16 %v1854
      %v3296 = vunpack.c.l.b16 %v1855
      %v3297 = vunpack.c.l.b16 %v1856
      %v3298 = vunpack.c.l.b16 %v1857
      %v3299 = vunpack.c.l.b16 %v1858
      %v3300 = vunpack.c.l.b16 %v1859
      %v3301 = vunpack.c.l.b16 %v1860
      %v3302 = vunpack.c.l.b16 %v1861
      %v3303 = vunpack.c.l.b16 %v1862
      %v3304 = vpack.c.b16 %v3273, %v3272
      %v3305 = vpack.c.b16 %v3275, %v3274
      %v3306 = vpack.c.b16 %v3277, %v3276
      %v3307 = vpack.c.b16 %v3279, %v3278
      %v3308 = vpack.c.b16 %v3281, %v3280
      %v3309 = vpack.c.b16 %v3283, %v3282
      %v3310 = vpack.c.b16 %v3285, %v3284
      %v3311 = vpack.c.b16 %v3287, %v3286
      %v3312 = vpack.c.b16 %v3289, %v3288
      %v3313 = vpack.c.b16 %v3291, %v3290
      %v3314 = vpack.c.b16 %v3293, %v3292
      %v3315 = vpack.c.b16 %v3295, %v3294
      %v3316 = vpack.c.b16 %v3297, %v3296
      %v3317 = vpack.c.b16 %v3299, %v3298
      %v3318 = vpack.c.b16 %v3301, %v3300
      %v3319 = vpack.c.b16 %v3303, %v3302
      %v3336 = vunpack.c.l.b16 %v1892
      %v3337 = vunpack.c.l.b16 %v1902
      %v3338 = vunpack.c.l.b16 %v1916
      %v3339 = vunpack.c.l.b16 %v1926
      %v3340 = vunpack.c.l.b16 %v1940
      %v3341 = vunpack.c.l.b16 %v1950
      %v3342 = vunpack.c.l.b16 %v1964
      %v3343 = vunpack.c.l.b16 %v1974
      %v3344 = vunpack.c.l.b16 %v1988
      %v3345 = vunpack.c.l.b16 %v1998
      %v3346 = vunpack.c.l.b16 %v2012
      %v3347 = vunpack.c.l.b16 %v2022
      %v3348 = vunpack.c.l.b16 %v2036
      %v3349 = vunpack.c.l.b16 %v2046
      %v3350 = vunpack.c.l.b16 %v2060
      %v3351 = vunpack.c.l.b16 %v2070
      %v3352 = vunpack.c.l.b16 %v2084
      %v3353 = vunpack.c.l.b16 %v2094
      %v3354 = vunpack.c.l.b16 %v2108
      %v3355 = vunpack.c.l.b16 %v2118
      %v3356 = vunpack.c.l.b16 %v2132
      %v3357 = vunpack.c.l.b16 %v2142
      %v3358 = vunpack.c.l.b16 %v2156
      %v3359 = vunpack.c.l.b16 %v2166
      %v3360 = vunpack.c.l.b16 %v2180
      %v3361 = vunpack.c.l.b16 %v2190
      %v3362 = vunpack.c.l.b16 %v2204
      %v3363 = vunpack.c.l.b16 %v2214
      %v3364 = vunpack.c.l.b16 %v2228
      %v3365 = vunpack.c.l.b16 %v2238
      %v3366 = vunpack.c.l.b16 %v2252
      %v3367 = vunpack.c.l.b16 %v2262
      %v3368 = vpack.c.b16 %v3337, %v3336
      %v3369 = vpack.c.b16 %v3339, %v3338
      %v3370 = vpack.c.b16 %v3341, %v3340
      %v3371 = vpack.c.b16 %v3343, %v3342
      %v3372 = vpack.c.b16 %v3345, %v3344
      %v3373 = vpack.c.b16 %v3347, %v3346
      %v3374 = vpack.c.b16 %v3349, %v3348
      %v3375 = vpack.c.b16 %v3351, %v3350
      %v3376 = vpack.c.b16 %v3353, %v3352
      %v3377 = vpack.c.b16 %v3355, %v3354
      %v3378 = vpack.c.b16 %v3357, %v3356
      %v3379 = vpack.c.b16 %v3359, %v3358
      %v3380 = vpack.c.b16 %v3361, %v3360
      %v3381 = vpack.c.b16 %v3363, %v3362
      %v3382 = vpack.c.b16 %v3365, %v3364
      %v3383 = vpack.c.b16 %v3367, %v3366
      %v3400 = vunpack.c.l.b16 %v2330
      %v3401 = vunpack.c.l.b16 %v2333
      %v3402 = vunpack.c.l.b16 %v2337
      %v3403 = vunpack.c.l.b16 %v2340
      %v3404 = vunpack.c.l.b16 %v2344
      %v3405 = vunpack.c.l.b16 %v2347
      %v3406 = vunpack.c.l.b16 %v2351
      %v3407 = vunpack.c.l.b16 %v2354
      %v3408 = vunpack.c.l.b16 %v2358
      %v3409 = vunpack.c.l.b16 %v2361
      %v3410 = vunpack.c.l.b16 %v2365
      %v3411 = vunpack.c.l.b16 %v2368
      %v3412 = vunpack.c.l.b16 %v2372
      %v3413 = vunpack.c.l.b16 %v2375
      %v3414 = vunpack.c.l.b16 %v2379
      %v3415 = vunpack.c.l.b16 %v2382
      %v3416 = vunpack.c.l.b16 %v2386
      %v3417 = vunpack.c.l.b16 %v2389
      %v3418 = vunpack.c.l.b16 %v2393
      %v3419 = vunpack.c.l.b16 %v2396
      %v3420 = vunpack.c.l.b16 %v2400
      %v3421 = vunpack.c.l.b16 %v2403
      %v3422 = vunpack.c.l.b16 %v2407
      %v3423 = vunpack.c.l.b16 %v2410
      %v3424 = vunpack.c.l.b16 %v2414
      %v3425 = vunpack.c.l.b16 %v2417
      %v3426 = vunpack.c.l.b16 %v2421
      %v3427 = vunpack.c.l.b16 %v2424
      %v3428 = vunpack.c.l.b16 %v2428
      %v3429 = vunpack.c.l.b16 %v2431
      %v3430 = vunpack.c.l.b16 %v2435
      %v3431 = vunpack.c.l.b16 %v2438
      %v3432 = vpack.c.b16 %v3401, %v3400
      %v3433 = vpack.c.b16 %v3403, %v3402
      %v3434 = vpack.c.b16 %v3405, %v3404
      %v3435 = vpack.c.b16 %v3407, %v3406
      %v3436 = vpack.c.b16 %v3409, %v3408
      %v3437 = vpack.c.b16 %v3411, %v3410
      %v3438 = vpack.c.b16 %v3413, %v3412
      %v3439 = vpack.c.b16 %v3415, %v3414
      %v3440 = vpack.c.b16 %v3417, %v3416
      %v3441 = vpack.c.b16 %v3419, %v3418
      %v3442 = vpack.c.b16 %v3421, %v3420
      %v3443 = vpack.c.b16 %v3423, %v3422
      %v3444 = vpack.c.b16 %v3425, %v3424
      %v3445 = vpack.c.b16 %v3427, %v3426
      %v3446 = vpack.c.b16 %v3429, %v3428
      %v3447 = vpack.c.b16 %v3431, %v3430
      %v3480 = vunpack.c.l.b16 %v2440
      %v3481 = vunpack.c.l.b16 %v2441
      %v3482 = vunpack.c.l.b16 %v2442
      %v3483 = vunpack.c.l.b16 %v2443
      %v3484 = vunpack.c.l.b16 %v2444
      %v3485 = vunpack.c.l.b16 %v2445
      %v3486 = vunpack.c.l.b16 %v2446
      %v3487 = vunpack.c.l.b16 %v2447
      %v3488 = vunpack.c.l.b16 %v2448
      %v3489 = vunpack.c.l.b16 %v2449
      %v3490 = vunpack.c.l.b16 %v2450
      %v3491 = vunpack.c.l.b16 %v2451
      %v3492 = vunpack.c.l.b16 %v2452
      %v3493 = vunpack.c.l.b16 %v2453
      %v3494 = vunpack.c.l.b16 %v2454
      %v3495 = vunpack.c.l.b16 %v2455
      %v3496 = vunpack.c.l.b16 %v2456
      %v3497 = vunpack.c.l.b16 %v2457
      %v3498 = vunpack.c.l.b16 %v2458
      %v3499 = vunpack.c.l.b16 %v2459
      %v3500 = vunpack.c.l.b16 %v2460
      %v3501 = vunpack.c.l.b16 %v2461
      %v3502 = vunpack.c.l.b16 %v2462
      %v3503 = vunpack.c.l.b16 %v2463
      %v3504 = vunpack.c.l.b16 %v2464
      %v3505 = vunpack.c.l.b16 %v2465
      %v3506 = vunpack.c.l.b16 %v2466
      %v3507 = vunpack.c.l.b16 %v2467
      %v3508 = vunpack.c.l.b16 %v2468
      %v3509 = vunpack.c.l.b16 %v2469
      %v3510 = vunpack.c.l.b16 %v2470
      %v3511 = vunpack.c.l.b16 %v2471
      %v3512 = vpack.c.b16 %v3481, %v3480
      %v3513 = vpack.c.b16 %v3483, %v3482
      %v3514 = vpack.c.b16 %v3485, %v3484
      %v3515 = vpack.c.b16 %v3487, %v3486
      %v3516 = vpack.c.b16 %v3489, %v3488
      %v3517 = vpack.c.b16 %v3491, %v3490
      %v3518 = vpack.c.b16 %v3493, %v3492
      %v3519 = vpack.c.b16 %v3495, %v3494
      %v3520 = vpack.c.b16 %v3497, %v3496
      %v3521 = vpack.c.b16 %v3499, %v3498
      %v3522 = vpack.c.b16 %v3501, %v3500
      %v3523 = vpack.c.b16 %v3503, %v3502
      %v3524 = vpack.c.b16 %v3505, %v3504
      %v3525 = vpack.c.b16 %v3507, %v3506
      %v3526 = vpack.c.b16 %v3509, %v3508
      %v3527 = vpack.c.b16 %v3511, %v3510
      %v3544 = vunpack.c.l.b16 %v2501
      %v3545 = vunpack.c.l.b16 %v2511
      %v3546 = vunpack.c.l.b16 %v2525
      %v3547 = vunpack.c.l.b16 %v2535
      %v3548 = vunpack.c.l.b16 %v2549
      %v3549 = vunpack.c.l.b16 %v2559
      %v3550 = vunpack.c.l.b16 %v2573
      %v3551 = vunpack.c.l.b16 %v2583
      %v3552 = vunpack.c.l.b16 %v2597
      %v3553 = vunpack.c.l.b16 %v2607
      %v3554 = vunpack.c.l.b16 %v2621
      %v3555 = vunpack.c.l.b16 %v2631
      %v3556 = vunpack.c.l.b16 %v2645
      %v3557 = vunpack.c.l.b16 %v2655
      %v3558 = vunpack.c.l.b16 %v2669
      %v3559 = vunpack.c.l.b16 %v2679
      %v3560 = vunpack.c.l.b16 %v2693
      %v3561 = vunpack.c.l.b16 %v2703
      %v3562 = vunpack.c.l.b16 %v2717
      %v3563 = vunpack.c.l.b16 %v2727
      %v3564 = vunpack.c.l.b16 %v2741
      %v3565 = vunpack.c.l.b16 %v2751
      %v3566 = vunpack.c.l.b16 %v2765
      %v3567 = vunpack.c.l.b16 %v2775
      %v3568 = vunpack.c.l.b16 %v2789
      %v3569 = vunpack.c.l.b16 %v2799
      %v3570 = vunpack.c.l.b16 %v2813
      %v3571 = vunpack.c.l.b16 %v2823
      %v3572 = vunpack.c.l.b16 %v2837
      %v3573 = vunpack.c.l.b16 %v2847
      %v3574 = vunpack.c.l.b16 %v2861
      %v3575 = vunpack.c.l.b16 %v2871
      %v3576 = vpack.c.b16 %v3545, %v3544
      %v3577 = vpack.c.b16 %v3547, %v3546
      %v3578 = vpack.c.b16 %v3549, %v3548
      %v3579 = vpack.c.b16 %v3551, %v3550
      %v3580 = vpack.c.b16 %v3553, %v3552
      %v3581 = vpack.c.b16 %v3555, %v3554
      %v3582 = vpack.c.b16 %v3557, %v3556
      %v3583 = vpack.c.b16 %v3559, %v3558
      %v3584 = vpack.c.b16 %v3561, %v3560
      %v3585 = vpack.c.b16 %v3563, %v3562
      %v3586 = vpack.c.b16 %v3565, %v3564
      %v3587 = vpack.c.b16 %v3567, %v3566
      %v3588 = vpack.c.b16 %v3569, %v3568
      %v3589 = vpack.c.b16 %v3571, %v3570
      %v3590 = vpack.c.b16 %v3573, %v3572
      %v3591 = vpack.c.b16 %v3575, %v3574
      %v3608 = vunpack.c.l.b16 %v2939
      %v3609 = vunpack.c.l.b16 %v2942
      %v3610 = vunpack.c.l.b16 %v2946
      %v3611 = vunpack.c.l.b16 %v2949
      %v3612 = vunpack.c.l.b16 %v2953
      %v3613 = vunpack.c.l.b16 %v2956
      %v3614 = vunpack.c.l.b16 %v2960
      %v3615 = vunpack.c.l.b16 %v2963
      %v3616 = vunpack.c.l.b16 %v2967
      %v3617 = vunpack.c.l.b16 %v2970
      %v3618 = vunpack.c.l.b16 %v2974
      %v3619 = vunpack.c.l.b16 %v2977
      %v3620 = vunpack.c.l.b16 %v2981
      %v3621 = vunpack.c.l.b16 %v2984
      %v3622 = vunpack.c.l.b16 %v2988
      %v3623 = vunpack.c.l.b16 %v2991
      %v3624 = vunpack.c.l.b16 %v2995
      %v3625 = vunpack.c.l.b16 %v2998
      %v3626 = vunpack.c.l.b16 %v3002
      %v3627 = vunpack.c.l.b16 %v3005
      %v3628 = vunpack.c.l.b16 %v3009
      %v3629 = vunpack.c.l.b16 %v3012
      %v3630 = vunpack.c.l.b16 %v3016
      %v3631 = vunpack.c.l.b16 %v3019
      %v3632 = vunpack.c.l.b16 %v3023
      %v3633 = vunpack.c.l.b16 %v3026
      %v3634 = vunpack.c.l.b16 %v3030
      %v3635 = vunpack.c.l.b16 %v3033
      %v3636 = vunpack.c.l.b16 %v3037
      %v3637 = vunpack.c.l.b16 %v3040
      %v3638 = vunpack.c.l.b16 %v3044
      %v3639 = vunpack.c.l.b16 %v3047
      %v3640 = vpack.c.b16 %v3609, %v3608
      %v3641 = vpack.c.b16 %v3611, %v3610
      %v3642 = vpack.c.b16 %v3613, %v3612
      %v3643 = vpack.c.b16 %v3615, %v3614
      %v3644 = vpack.c.b16 %v3617, %v3616
      %v3645 = vpack.c.b16 %v3619, %v3618
      %v3646 = vpack.c.b16 %v3621, %v3620
      %v3647 = vpack.c.b16 %v3623, %v3622
      %v3648 = vpack.c.b16 %v3625, %v3624
      %v3649 = vpack.c.b16 %v3627, %v3626
      %v3650 = vpack.c.b16 %v3629, %v3628
      %v3651 = vpack.c.b16 %v3631, %v3630
      %v3652 = vpack.c.b16 %v3633, %v3632
      %v3653 = vpack.c.b16 %v3635, %v3634
      %v3654 = vpack.c.b16 %v3637, %v3636
      %v3655 = vpack.c.b16 %v3639, %v3638
      %v3672 = vld [vmem:[%s3] sm:$0xf]
      %v3673 = vld [vmem:[%s3 + $0x4] sm:$0xf]
      %v3674 = vld [vmem:[%s3 + $0x8] sm:$0xf]
      %v3675 = vld [vmem:[%s3 + $0xc] sm:$0xf]
      %v3676 = vld [vmem:[%s3 + $0x10] sm:$0xf]
      %v3677 = vld [vmem:[%s3 + $0x14] sm:$0xf]
      %v3678 = vld [vmem:[%s3 + $0x18] sm:$0xf]
      %v3679 = vld [vmem:[%s3 + $0x1c] sm:$0xf]
      %v3680 = vld [vmem:[%s3 + $0x20] sm:$0xf]
      %v3681 = vld [vmem:[%s3 + $0x24] sm:$0xf]
      %v3682 = vld [vmem:[%s3 + $0x28] sm:$0xf]
      %v3683 = vld [vmem:[%s3 + $0x2c] sm:$0xf]
      %v3684 = vld [vmem:[%s3 + $0x30] sm:$0xf]
      %v3685 = vld [vmem:[%s3 + $0x34] sm:$0xf]
      %v3686 = vld [vmem:[%s3 + $0x38] sm:$0xf]
      %v3687 = vld [vmem:[%s3 + $0x3c] sm:$0xf]
      %v3688 = vld [vmem:[%s3 + $0x40] sm:$0xf]
      %v3689 = vld [vmem:[%s3 + $0x44] sm:$0xf]
      %v3690 = vld [vmem:[%s3 + $0x48] sm:$0xf]
      %v3691 = vld [vmem:[%s3 + $0x4c] sm:$0xf]
      %v3692 = vld [vmem:[%s3 + $0x50] sm:$0xf]
      %v3693 = vld [vmem:[%s3 + $0x54] sm:$0xf]
      %v3694 = vld [vmem:[%s3 + $0x58] sm:$0xf]
      %v3695 = vld [vmem:[%s3 + $0x5c] sm:$0xf]
      %v3696 = vld [vmem:[%s3 + $0x60] sm:$0xf]
      %v3697 = vld [vmem:[%s3 + $0x64] sm:$0xf]
      %v3698 = vld [vmem:[%s3 + $0x68] sm:$0xf]
      %v3699 = vld [vmem:[%s3 + $0x6c] sm:$0xf]
      %v3700 = vld [vmem:[%s3 + $0x70] sm:$0xf]
      %v3701 = vld [vmem:[%s3 + $0x74] sm:$0xf]
      %v3702 = vld [vmem:[%s3 + $0x78] sm:$0xf]
      %v3703 = vld [vmem:[%s3 + $0x7c] sm:$0xf]
      %v3704 = vld [vmem:[%s3 + $0x80] sm:$0xf]
      %v3705 = vld [vmem:[%s3 + $0x84] sm:$0xf]
      %v3706 = vld [vmem:[%s3 + $0x88] sm:$0xf]
      %v3707 = vld [vmem:[%s3 + $0x8c] sm:$0xf]
      %v3708 = vld [vmem:[%s3 + $0x90] sm:$0xf]
      %v3709 = vld [vmem:[%s3 + $0x94] sm:$0xf]
      %v3710 = vld [vmem:[%s3 + $0x98] sm:$0xf]
      %v3711 = vld [vmem:[%s3 + $0x9c] sm:$0xf]
      %v3712 = vld [vmem:[%s3 + $0xa0] sm:$0xf]
      %v3713 = vld [vmem:[%s3 + $0xa4] sm:$0xf]
      %v3714 = vld [vmem:[%s3 + $0xa8] sm:$0xf]
      %v3715 = vld [vmem:[%s3 + $0xac] sm:$0xf]
      %v3716 = vld [vmem:[%s3 + $0xb0] sm:$0xf]
      %v3717 = vld [vmem:[%s3 + $0xb4] sm:$0xf]
      %v3718 = vld [vmem:[%s3 + $0xb8] sm:$0xf]
      %v3719 = vld [vmem:[%s3 + $0xbc] sm:$0xf]
      %v3720 = vld [vmem:[%s3 + $0xc0] sm:$0xf]
      %v3721 = vld [vmem:[%s3 + $0xc4] sm:$0xf]
      %v3722 = vld [vmem:[%s3 + $0xc8] sm:$0xf]
      %v3723 = vld [vmem:[%s3 + $0xcc] sm:$0xf]
      %v3724 = vld [vmem:[%s3 + $0xd0] sm:$0xf]
      %v3725 = vld [vmem:[%s3 + $0xd4] sm:$0xf]
      %v3726 = vld [vmem:[%s3 + $0xd8] sm:$0xf]
      %v3727 = vld [vmem:[%s3 + $0xdc] sm:$0xf]
      %v3728 = vld [vmem:[%s3 + $0xe0] sm:$0xf]
      %v3729 = vld [vmem:[%s3 + $0xe4] sm:$0xf]
      %v3730 = vld [vmem:[%s3 + $0xe8] sm:$0xf]
      %v3731 = vld [vmem:[%s3 + $0xec] sm:$0xf]
      %v3732 = vld [vmem:[%s3 + $0xf0] sm:$0xf]
      %v3733 = vld [vmem:[%s3 + $0xf4] sm:$0xf]
      %v3734 = vld [vmem:[%s3 + $0xf8] sm:$0xf]
      %v3735 = vld [vmem:[%s3 + $0xfc] sm:$0xf]
      %v3736 = vld [vmem:[%s3 + $0x100] sm:$0xf]
      %v3737 = vld [vmem:[%s3 + $0x104] sm:$0xf]
      %v3738 = vld [vmem:[%s3 + $0x108] sm:$0xf]
      %v3739 = vld [vmem:[%s3 + $0x10c] sm:$0xf]
      %v3740 = vld [vmem:[%s3 + $0x110] sm:$0xf]
      %v3741 = vld [vmem:[%s3 + $0x114] sm:$0xf]
      %v3742 = vld [vmem:[%s3 + $0x118] sm:$0xf]
      %v3743 = vld [vmem:[%s3 + $0x11c] sm:$0xf]
      %v3744 = vld [vmem:[%s3 + $0x120] sm:$0xf]
      %v3745 = vld [vmem:[%s3 + $0x124] sm:$0xf]
      %v3746 = vld [vmem:[%s3 + $0x128] sm:$0xf]
      %v3747 = vld [vmem:[%s3 + $0x12c] sm:$0xf]
      %v3748 = vld [vmem:[%s3 + $0x130] sm:$0xf]
      %v3749 = vld [vmem:[%s3 + $0x134] sm:$0xf]
      %v3750 = vld [vmem:[%s3 + $0x138] sm:$0xf]
      %v3751 = vld [vmem:[%s3 + $0x13c] sm:$0xf]
      %v3752 = vld [vmem:[%s3 + $0x140] sm:$0xf]
      %v3753 = vld [vmem:[%s3 + $0x144] sm:$0xf]
      %v3754 = vld [vmem:[%s3 + $0x148] sm:$0xf]
      %v3755 = vld [vmem:[%s3 + $0x14c] sm:$0xf]
      %v3756 = vld [vmem:[%s3 + $0x150] sm:$0xf]
      %v3757 = vld [vmem:[%s3 + $0x154] sm:$0xf]
      %v3758 = vld [vmem:[%s3 + $0x158] sm:$0xf]
      %v3759 = vld [vmem:[%s3 + $0x15c] sm:$0xf]
      %v3760 = vld [vmem:[%s3 + $0x160] sm:$0xf]
      %v3761 = vld [vmem:[%s3 + $0x164] sm:$0xf]
      %v3762 = vld [vmem:[%s3 + $0x168] sm:$0xf]
      %v3763 = vld [vmem:[%s3 + $0x16c] sm:$0xf]
      %v3764 = vld [vmem:[%s3 + $0x170] sm:$0xf]
      %v3765 = vld [vmem:[%s3 + $0x174] sm:$0xf]
      %v3766 = vld [vmem:[%s3 + $0x178] sm:$0xf]
      %v3767 = vld [vmem:[%s3 + $0x17c] sm:$0xf]
      %v3768 = vld [vmem:[%s3 + $0x180] sm:$0xf]
      %v3769 = vld [vmem:[%s3 + $0x184] sm:$0xf]
      %v3770 = vld [vmem:[%s3 + $0x188] sm:$0xf]
      %v3771 = vld [vmem:[%s3 + $0x18c] sm:$0xf]
      %v3772 = vld [vmem:[%s3 + $0x190] sm:$0xf]
      %v3773 = vld [vmem:[%s3 + $0x194] sm:$0xf]
      %v3774 = vld [vmem:[%s3 + $0x198] sm:$0xf]
      %v3775 = vld [vmem:[%s3 + $0x19c] sm:$0xf]
      %v3776 = vld [vmem:[%s3 + $0x1a0] sm:$0xf]
      %v3777 = vld [vmem:[%s3 + $0x1a4] sm:$0xf]
      %v3778 = vld [vmem:[%s3 + $0x1a8] sm:$0xf]
      %v3779 = vld [vmem:[%s3 + $0x1ac] sm:$0xf]
      %v3780 = vld [vmem:[%s3 + $0x1b0] sm:$0xf]
      %v3781 = vld [vmem:[%s3 + $0x1b4] sm:$0xf]
      %v3782 = vld [vmem:[%s3 + $0x1b8] sm:$0xf]
      %v3783 = vld [vmem:[%s3 + $0x1bc] sm:$0xf]
      %v3784 = vld [vmem:[%s3 + $0x1c0] sm:$0xf]
      %v3785 = vld [vmem:[%s3 + $0x1c4] sm:$0xf]
      %v3786 = vld [vmem:[%s3 + $0x1c8] sm:$0xf]
      %v3787 = vld [vmem:[%s3 + $0x1cc] sm:$0xf]
      %v3788 = vld [vmem:[%s3 + $0x1d0] sm:$0xf]
      %v3789 = vld [vmem:[%s3 + $0x1d4] sm:$0xf]
      %v3790 = vld [vmem:[%s3 + $0x1d8] sm:$0xf]
      %v3791 = vld [vmem:[%s3 + $0x1dc] sm:$0xf]
      %v3792 = vld [vmem:[%s3 + $0x1e0] sm:$0xf]
      %v3793 = vld [vmem:[%s3 + $0x1e4] sm:$0xf]
      %v3794 = vld [vmem:[%s3 + $0x1e8] sm:$0xf]
      %v3795 = vld [vmem:[%s3 + $0x1ec] sm:$0xf]
      %v3796 = vld [vmem:[%s3 + $0x1f0] sm:$0xf]
      %v3797 = vld [vmem:[%s3 + $0x1f4] sm:$0xf]
      %v3798 = vld [vmem:[%s3 + $0x1f8] sm:$0xf]
      %v3799 = vld [vmem:[%s3 + $0x1fc] sm:$0xf]
      %v3800 = vld [vmem:[%s3 + $0x200] sm:$0xf]
      %v3801 = vld [vmem:[%s3 + $0x204] sm:$0xf]
      %v3802 = vld [vmem:[%s3 + $0x208] sm:$0xf]
      %v3803 = vld [vmem:[%s3 + $0x20c] sm:$0xf]
      %v3804 = vld [vmem:[%s3 + $0x210] sm:$0xf]
      %v3805 = vld [vmem:[%s3 + $0x214] sm:$0xf]
      %v3806 = vld [vmem:[%s3 + $0x218] sm:$0xf]
      %v3807 = vld [vmem:[%s3 + $0x21c] sm:$0xf]
      %v3808 = vld [vmem:[%s3 + $0x220] sm:$0xf]
      %v3809 = vld [vmem:[%s3 + $0x224] sm:$0xf]
      %v3810 = vld [vmem:[%s3 + $0x228] sm:$0xf]
      %v3811 = vld [vmem:[%s3 + $0x22c] sm:$0xf]
      %v3812 = vld [vmem:[%s3 + $0x230] sm:$0xf]
      %v3813 = vld [vmem:[%s3 + $0x234] sm:$0xf]
      %v3814 = vld [vmem:[%s3 + $0x238] sm:$0xf]
      %v3815 = vld [vmem:[%s3 + $0x23c] sm:$0xf]
      %v3816 = vld [vmem:[%s4] sm:$0x1]
      %v3818 = vperm.slane %v3816, 0
      %v3964 = vunpack.c.l.b16 %v3672
      %v3965 = vunpack.c.l.b16 %v3673
      %v3966 = vunpack.c.l.b16 %v3674
      %v3967 = vunpack.c.l.b16 %v3675
      %v3968 = vunpack.c.l.b16 %v3676
      %v3969 = vunpack.c.l.b16 %v3677
      %v3970 = vunpack.c.l.b16 %v3678
      %v3971 = vunpack.c.l.b16 %v3679
      %v3972 = vunpack.c.l.b16 %v3680
      %v3973 = vunpack.c.l.b16 %v3681
      %v3974 = vunpack.c.l.b16 %v3682
      %v3975 = vunpack.c.l.b16 %v3683
      %v3976 = vunpack.c.l.b16 %v3684
      %v3977 = vunpack.c.l.b16 %v3685
      %v3978 = vunpack.c.l.b16 %v3686
      %v3979 = vunpack.c.l.b16 %v3687
      %v3980 = vunpack.c.l.b16 %v3688
      %v3981 = vunpack.c.l.b16 %v3689
      %v3982 = vunpack.c.l.b16 %v3690
      %v3983 = vunpack.c.l.b16 %v3691
      %v3984 = vunpack.c.l.b16 %v3692
      %v3985 = vunpack.c.l.b16 %v3693
      %v3986 = vunpack.c.l.b16 %v3694
      %v3987 = vunpack.c.l.b16 %v3695
      %v3988 = vunpack.c.l.b16 %v3696
      %v3989 = vunpack.c.l.b16 %v3697
      %v3990 = vunpack.c.l.b16 %v3698
      %v3991 = vunpack.c.l.b16 %v3699
      %v3992 = vunpack.c.l.b16 %v3700
      %v3993 = vunpack.c.l.b16 %v3701
      %v3994 = vunpack.c.l.b16 %v3702
      %v3995 = vunpack.c.l.b16 %v3703
      %v3996 = vunpack.c.l.b16 %v3704
      %v3997 = vunpack.c.l.b16 %v3705
      %v3998 = vunpack.c.l.b16 %v3706
      %v3999 = vunpack.c.l.b16 %v3707
      %v4000 = vunpack.c.l.b16 %v3708
      %v4001 = vunpack.c.l.b16 %v3709
      %v4002 = vunpack.c.l.b16 %v3710
      %v4003 = vunpack.c.l.b16 %v3711
      %v4004 = vunpack.c.l.b16 %v3712
      %v4005 = vunpack.c.l.b16 %v3713
      %v4006 = vunpack.c.l.b16 %v3714
      %v4007 = vunpack.c.l.b16 %v3715
      %v4008 = vunpack.c.l.b16 %v3716
      %v4009 = vunpack.c.l.b16 %v3717
      %v4010 = vunpack.c.l.b16 %v3718
      %v4011 = vunpack.c.l.b16 %v3719
      %v4012 = vunpack.c.l.b16 %v3720
      %v4013 = vunpack.c.l.b16 %v3721
      %v4014 = vunpack.c.l.b16 %v3722
      %v4015 = vunpack.c.l.b16 %v3723
      %v4016 = vunpack.c.l.b16 %v3724
      %v4017 = vunpack.c.l.b16 %v3725
      %v4018 = vunpack.c.l.b16 %v3726
      %v4019 = vunpack.c.l.b16 %v3727
      %v4020 = vunpack.c.l.b16 %v3728
      %v4021 = vunpack.c.l.b16 %v3729
      %v4022 = vunpack.c.l.b16 %v3730
      %v4023 = vunpack.c.l.b16 %v3731
      %v4024 = vunpack.c.l.b16 %v3732
      %v4025 = vunpack.c.l.b16 %v3733
      %v4026 = vunpack.c.l.b16 %v3734
      %v4027 = vunpack.c.l.b16 %v3735
      %v4028 = vunpack.c.l.b16 %v3736
      %v4029 = vunpack.c.l.b16 %v3737
      %v4030 = vunpack.c.l.b16 %v3738
      %v4031 = vunpack.c.l.b16 %v3739
      %v4032 = vunpack.c.l.b16 %v3740
      %v4033 = vunpack.c.l.b16 %v3741
      %v4034 = vunpack.c.l.b16 %v3742
      %v4035 = vunpack.c.l.b16 %v3743
      %v4036 = vunpack.c.l.b16 %v3744
      %v4037 = vunpack.c.l.b16 %v3745
      %v4038 = vunpack.c.l.b16 %v3746
      %v4039 = vunpack.c.l.b16 %v3747
      %v4040 = vunpack.c.l.b16 %v3748
      %v4041 = vunpack.c.l.b16 %v3749
      %v4042 = vunpack.c.l.b16 %v3750
      %v4043 = vunpack.c.l.b16 %v3751
      %v4044 = vunpack.c.l.b16 %v3752
      %v4045 = vunpack.c.l.b16 %v3753
      %v4046 = vunpack.c.l.b16 %v3754
      %v4047 = vunpack.c.l.b16 %v3755
      %v4048 = vunpack.c.l.b16 %v3756
      %v4049 = vunpack.c.l.b16 %v3757
      %v4050 = vunpack.c.l.b16 %v3758
      %v4051 = vunpack.c.l.b16 %v3759
      %v4052 = vunpack.c.l.b16 %v3760
      %v4053 = vunpack.c.l.b16 %v3761
      %v4054 = vunpack.c.l.b16 %v3762
      %v4055 = vunpack.c.l.b16 %v3763
      %v4056 = vunpack.c.l.b16 %v3764
      %v4057 = vunpack.c.l.b16 %v3765
      %v4058 = vunpack.c.l.b16 %v3766
      %v4059 = vunpack.c.l.b16 %v3767
      %v4060 = vunpack.c.l.b16 %v3768
      %v4061 = vunpack.c.l.b16 %v3769
      %v4062 = vunpack.c.l.b16 %v3770
      %v4063 = vunpack.c.l.b16 %v3771
      %v4064 = vunpack.c.l.b16 %v3772
      %v4065 = vunpack.c.l.b16 %v3773
      %v4066 = vunpack.c.l.b16 %v3774
      %v4067 = vunpack.c.l.b16 %v3775
      %v4068 = vunpack.c.l.b16 %v3776
      %v4069 = vunpack.c.l.b16 %v3777
      %v4070 = vunpack.c.l.b16 %v3778
      %v4071 = vunpack.c.l.b16 %v3779
      %v4072 = vunpack.c.l.b16 %v3780
      %v4073 = vunpack.c.l.b16 %v3781
      %v4074 = vunpack.c.l.b16 %v3782
      %v4075 = vunpack.c.l.b16 %v3783
      %v4076 = vunpack.c.l.b16 %v3784
      %v4077 = vunpack.c.l.b16 %v3785
      %v4078 = vunpack.c.l.b16 %v3786
      %v4079 = vunpack.c.l.b16 %v3787
      %v4080 = vunpack.c.l.b16 %v3788
      %v4081 = vunpack.c.l.b16 %v3789
      %v4082 = vunpack.c.l.b16 %v3790
      %v4083 = vunpack.c.l.b16 %v3791
      %v4084 = vunpack.c.l.b16 %v3792
      %v4085 = vunpack.c.l.b16 %v3793
      %v4086 = vunpack.c.l.b16 %v3794
      %v4087 = vunpack.c.l.b16 %v3795
      %v4088 = vunpack.c.l.b16 %v3796
      %v4089 = vunpack.c.l.b16 %v3797
      %v4090 = vunpack.c.l.b16 %v3798
      %v4091 = vunpack.c.l.b16 %v3799
      %v4092 = vunpack.c.l.b16 %v3800
      %v4093 = vunpack.c.l.b16 %v3801
      %v4094 = vunpack.c.l.b16 %v3802
      %v4095 = vunpack.c.l.b16 %v3803
      %v4096 = vunpack.c.l.b16 %v3804
      %v4097 = vunpack.c.l.b16 %v3805
      %v4098 = vunpack.c.l.b16 %v3806
      %v4099 = vunpack.c.l.b16 %v3807
      %v4100 = vunpack.c.l.b16 %v3808
      %v4101 = vunpack.c.l.b16 %v3809
      %v4102 = vunpack.c.l.b16 %v3810
      %v4103 = vunpack.c.l.b16 %v3811
      %v4104 = vunpack.c.l.b16 %v3812
      %v4105 = vunpack.c.l.b16 %v3813
      %v4106 = vunpack.c.l.b16 %v3814
      %v4107 = vunpack.c.l.b16 %v3815
      %v4108 = vpack.c.b16 %v3965, %v3964
      %v4109 = vpack.c.b16 %v3967, %v3966
      %v4110 = vpack.c.b16 %v3969, %v3968
      %v4111 = vpack.c.b16 %v3971, %v3970
      %v4112 = vpack.c.b16 %v3973, %v3972
      %v4113 = vpack.c.b16 %v3975, %v3974
      %v4114 = vpack.c.b16 %v3977, %v3976
      %v4115 = vpack.c.b16 %v3979, %v3978
      %v4116 = vpack.c.b16 %v3981, %v3980
      %v4117 = vpack.c.b16 %v3983, %v3982
      %v4118 = vpack.c.b16 %v3985, %v3984
      %v4119 = vpack.c.b16 %v3987, %v3986
      %v4120 = vpack.c.b16 %v3989, %v3988
      %v4121 = vpack.c.b16 %v3991, %v3990
      %v4122 = vpack.c.b16 %v3993, %v3992
      %v4123 = vpack.c.b16 %v3995, %v3994
      %v4124 = vpack.c.b16 %v3997, %v3996
      %v4125 = vpack.c.b16 %v3999, %v3998
      %v4126 = vpack.c.b16 %v4001, %v4000
      %v4127 = vpack.c.b16 %v4003, %v4002
      %v4128 = vpack.c.b16 %v4005, %v4004
      %v4129 = vpack.c.b16 %v4007, %v4006
      %v4130 = vpack.c.b16 %v4009, %v4008
      %v4131 = vpack.c.b16 %v4011, %v4010
      %v4132 = vpack.c.b16 %v4013, %v4012
      %v4133 = vpack.c.b16 %v4015, %v4014
      %v4134 = vpack.c.b16 %v4017, %v4016
      %v4135 = vpack.c.b16 %v4019, %v4018
      %v4136 = vpack.c.b16 %v4021, %v4020
      %v4137 = vpack.c.b16 %v4023, %v4022
      %v4138 = vpack.c.b16 %v4025, %v4024
      %v4139 = vpack.c.b16 %v4027, %v4026
      %v4140 = vpack.c.b16 %v4029, %v4028
      %v4141 = vpack.c.b16 %v4031, %v4030
      %v4142 = vpack.c.b16 %v4033, %v4032
      %v4143 = vpack.c.b16 %v4035, %v4034
      %v4144 = vpack.c.b16 %v4037, %v4036
      %v4145 = vpack.c.b16 %v4039, %v4038
      %v4146 = vpack.c.b16 %v4041, %v4040
      %v4147 = vpack.c.b16 %v4043, %v4042
      %v4148 = vpack.c.b16 %v4045, %v4044
      %v4149 = vpack.c.b16 %v4047, %v4046
      %v4150 = vpack.c.b16 %v4049, %v4048
      %v4151 = vpack.c.b16 %v4051, %v4050
      %v4152 = vpack.c.b16 %v4053, %v4052
      %v4153 = vpack.c.b16 %v4055, %v4054
      %v4154 = vpack.c.b16 %v4057, %v4056
      %v4155 = vpack.c.b16 %v4059, %v4058
      %v4156 = vpack.c.b16 %v4061, %v4060
      %v4157 = vpack.c.b16 %v4063, %v4062
      %v4158 = vpack.c.b16 %v4065, %v4064
      %v4159 = vpack.c.b16 %v4067, %v4066
      %v4160 = vpack.c.b16 %v4069, %v4068
      %v4161 = vpack.c.b16 %v4071, %v4070
      %v4162 = vpack.c.b16 %v4073, %v4072
      %v4163 = vpack.c.b16 %v4075, %v4074
      %v4164 = vpack.c.b16 %v4077, %v4076
      %v4165 = vpack.c.b16 %v4079, %v4078
      %v4166 = vpack.c.b16 %v4081, %v4080
      %v4167 = vpack.c.b16 %v4083, %v4082
      %v4168 = vpack.c.b16 %v4085, %v4084
      %v4169 = vpack.c.b16 %v4087, %v4086
      %v4170 = vpack.c.b16 %v4089, %v4088
      %v4171 = vpack.c.b16 %v4091, %v4090
      %v4172 = vpack.c.b16 %v4093, %v4092
      %v4173 = vpack.c.b16 %v4095, %v4094
      %v4174 = vpack.c.b16 %v4097, %v4096
      %v4175 = vpack.c.b16 %v4099, %v4098
      %v4176 = vpack.c.b16 %v4101, %v4100
      %v4177 = vpack.c.b16 %v4103, %v4102
      %v4178 = vpack.c.b16 %v4105, %v4104
      %v4179 = vpack.c.b16 %v4107, %v4106
      %4252 = vmatpush.bf16.msra.mxu0 %v4115
      %4253 = vmatpush.bf16.msra.mxu0 %v4114
      %4254 = vmatpush.bf16.msra.mxu0 %v4113
      %4255 = vmatpush.bf16.msra.mxu0 %v4112
      %4256 = vmatpush.bf16.msra.mxu0 %v4111
      %4257 = vmatpush.bf16.msra.mxu0 %v4110
      %4258 = vmatpush.bf16.msra.mxu0 %v4109
      %4259 = vmatpush.bf16.msra.mxu0 %v4108
      %4260 = vmatmul.bf16.gmra.mxu0 %v3096
      %v4261 = vpop.f32.mrf.mxu0
      %v4262 = vadd.f32 %v3818, %v4261
      %v4263 = vpop.f32.mrf.mxu0
      %v4264 = vadd.f32 %v3818, %v4263
      %4265 = vmatmul.bf16.gmra.mxu0 %v3097
      %v4266 = vpop.f32.mrf.mxu0
      %v4267 = vadd.f32 %v3818, %v4266
      %v4268 = vpop.f32.mrf.mxu0
      %v4269 = vadd.f32 %v3818, %v4268
      %4270 = vmatmul.bf16.gmra.mxu0 %v3098
      %v4271 = vpop.f32.mrf.mxu0
      %v4272 = vadd.f32 %v3818, %v4271
      %v4273 = vpop.f32.mrf.mxu0
      %v4274 = vadd.f32 %v3818, %v4273
      %4275 = vmatmul.bf16.gmra.mxu0 %v3099
      %v4276 = vpop.f32.mrf.mxu0
      %v4277 = vadd.f32 %v3818, %v4276
      %v4278 = vpop.f32.mrf.mxu0
      %v4279 = vadd.f32 %v3818, %v4278
      %4280 = vmatmul.bf16.gmra.mxu0 %v3100
      %v4281 = vpop.f32.mrf.mxu0
      %v4282 = vadd.f32 %v3818, %v4281
      %v4283 = vpop.f32.mrf.mxu0
      %v4284 = vadd.f32 %v3818, %v4283
      %4285 = vmatmul.bf16.gmra.mxu0 %v3101
      %v4286 = vpop.f32.mrf.mxu0
      %v4287 = vadd.f32 %v3818, %v4286
      %v4288 = vpop.f32.mrf.mxu0
      %v4289 = vadd.f32 %v3818, %v4288
      %4290 = vmatmul.bf16.gmra.mxu0 %v3102
      %v4291 = vpop.f32.mrf.mxu0
      %v4292 = vadd.f32 %v3818, %v4291
      %v4293 = vpop.f32.mrf.mxu0
      %v4294 = vadd.f32 %v3818, %v4293
      %4295 = vmatmul.bf16.gmra.mxu0 %v3103
      %v4296 = vpop.f32.mrf.mxu0
      %v4297 = vadd.f32 %v3818, %v4296
      %v4298 = vpop.f32.mrf.mxu0
      %v4299 = vadd.f32 %v3818, %v4298
      %4300 = vmatmul.bf16.gmra.mxu0 %v3104
      %v4301 = vpop.f32.mrf.mxu0
      %v4302 = vadd.f32 %v3818, %v4301
      %v4303 = vpop.f32.mrf.mxu0
      %v4304 = vadd.f32 %v3818, %v4303
      %4305 = vmatmul.bf16.gmra.mxu0 %v3105
      %v4306 = vpop.f32.mrf.mxu0
      %v4307 = vadd.f32 %v3818, %v4306
      %v4308 = vpop.f32.mrf.mxu0
      %v4309 = vadd.f32 %v3818, %v4308
      %4310 = vmatmul.bf16.gmra.mxu0 %v3106
      %v4311 = vpop.f32.mrf.mxu0
      %v4312 = vadd.f32 %v3818, %v4311
      %v4313 = vpop.f32.mrf.mxu0
      %v4314 = vadd.f32 %v3818, %v4313
      %4315 = vmatmul.bf16.gmra.mxu0 %v3107
      %v4316 = vpop.f32.mrf.mxu0
      %v4317 = vadd.f32 %v3818, %v4316
      %v4318 = vpop.f32.mrf.mxu0
      %v4319 = vadd.f32 %v3818, %v4318
      %4320 = vmatmul.bf16.gmra.mxu0 %v3108
      %v4321 = vpop.f32.mrf.mxu0
      %v4322 = vadd.f32 %v3818, %v4321
      %v4323 = vpop.f32.mrf.mxu0
      %v4324 = vadd.f32 %v3818, %v4323
      %4325 = vmatmul.bf16.gmra.mxu0 %v3109
      %v4326 = vpop.f32.mrf.mxu0
      %v4327 = vadd.f32 %v3818, %v4326
      %v4328 = vpop.f32.mrf.mxu0
      %v4329 = vadd.f32 %v3818, %v4328
      %4330 = vmatmul.bf16.gmra.mxu0 %v3110
      %v4331 = vpop.f32.mrf.mxu0
      %v4332 = vadd.f32 %v3818, %v4331
      %v4333 = vpop.f32.mrf.mxu0
      %v4334 = vadd.f32 %v3818, %v4333
      %4335 = vmatmul.bf16.gmra.mxu0 %v3111
      %v4336 = vpop.f32.mrf.mxu0
      %v4337 = vadd.f32 %v3818, %v4336
      %v4338 = vpop.f32.mrf.mxu0
      %v4339 = vadd.f32 %v3818, %v4338
      %4340 = vdwg.mxu0
      %4341 = vmatpush.bf16.msra.mxu0 %v4123
      %4342 = vmatpush.bf16.msra.mxu0 %v4122
      %4343 = vmatpush.bf16.msra.mxu0 %v4121
      %4344 = vmatpush.bf16.msra.mxu0 %v4120
      %4345 = vmatpush.bf16.msra.mxu0 %v4119
      %4346 = vmatpush.bf16.msra.mxu0 %v4118
      %4347 = vmatpush.bf16.msra.mxu0 %v4117
      %4348 = vmatpush.bf16.msra.mxu0 %v4116
      %4349 = vmatmul.bf16.gmra.mxu0 %v3160
      %v4350 = vpop.f32.mrf.mxu0
      %v4351 = vadd.f32 %v4262, %v4350
      %v4352 = vpop.f32.mrf.mxu0
      %v4353 = vadd.f32 %v4264, %v4352
      %4354 = vmatmul.bf16.gmra.mxu0 %v3161
      %v4355 = vpop.f32.mrf.mxu0
      %v4356 = vadd.f32 %v4267, %v4355
      %v4357 = vpop.f32.mrf.mxu0
      %v4358 = vadd.f32 %v4269, %v4357
      %4359 = vmatmul.bf16.gmra.mxu0 %v3162
      %v4360 = vpop.f32.mrf.mxu0
      %v4361 = vadd.f32 %v4272, %v4360
      %v4362 = vpop.f32.mrf.mxu0
      %v4363 = vadd.f32 %v4274, %v4362
      %4364 = vmatmul.bf16.gmra.mxu0 %v3163
      %v4365 = vpop.f32.mrf.mxu0
      %v4366 = vadd.f32 %v4277, %v4365
      %v4367 = vpop.f32.mrf.mxu0
      %v4368 = vadd.f32 %v4279, %v4367
      %4369 = vmatmul.bf16.gmra.mxu0 %v3164
      %v4370 = vpop.f32.mrf.mxu0
      %v4371 = vadd.f32 %v4282, %v4370
      %v4372 = vpop.f32.mrf.mxu0
      %v4373 = vadd.f32 %v4284, %v4372
      %4374 = vmatmul.bf16.gmra.mxu0 %v3165
      %v4375 = vpop.f32.mrf.mxu0
      %v4376 = vadd.f32 %v4287, %v4375
      %v4377 = vpop.f32.mrf.mxu0
      %v4378 = vadd.f32 %v4289, %v4377
      %4379 = vmatmul.bf16.gmra.mxu0 %v3166
      %v4380 = vpop.f32.mrf.mxu0
      %v4381 = vadd.f32 %v4292, %v4380
      %v4382 = vpop.f32.mrf.mxu0
      %v4383 = vadd.f32 %v4294, %v4382
      %4384 = vmatmul.bf16.gmra.mxu0 %v3167
      %v4385 = vpop.f32.mrf.mxu0
      %v4386 = vadd.f32 %v4297, %v4385
      %v4387 = vpop.f32.mrf.mxu0
      %v4388 = vadd.f32 %v4299, %v4387
      %4389 = vmatmul.bf16.gmra.mxu0 %v3168
      %v4390 = vpop.f32.mrf.mxu0
      %v4391 = vadd.f32 %v4302, %v4390
      %v4392 = vpop.f32.mrf.mxu0
      %v4393 = vadd.f32 %v4304, %v4392
      %4394 = vmatmul.bf16.gmra.mxu0 %v3169
      %v4395 = vpop.f32.mrf.mxu0
      %v4396 = vadd.f32 %v4307, %v4395
      %v4397 = vpop.f32.mrf.mxu0
      %v4398 = vadd.f32 %v4309, %v4397
      %4399 = vmatmul.bf16.gmra.mxu0 %v3170
      %v4400 = vpop.f32.mrf.mxu0
      %v4401 = vadd.f32 %v4312, %v4400
      %v4402 = vpop.f32.mrf.mxu0
      %v4403 = vadd.f32 %v4314, %v4402
      %4404 = vmatmul.bf16.gmra.mxu0 %v3171
      %v4405 = vpop.f32.mrf.mxu0
      %v4406 = vadd.f32 %v4317, %v4405
      %v4407 = vpop.f32.mrf.mxu0
      %v4408 = vadd.f32 %v4319, %v4407
      %4409 = vmatmul.bf16.gmra.mxu0 %v3172
      %v4410 = vpop.f32.mrf.mxu0
      %v4411 = vadd.f32 %v4322, %v4410
      %v4412 = vpop.f32.mrf.mxu0
      %v4413 = vadd.f32 %v4324, %v4412
      %4414 = vmatmul.bf16.gmra.mxu0 %v3173
      %v4415 = vpop.f32.mrf.mxu0
      %v4416 = vadd.f32 %v4327, %v4415
      %v4417 = vpop.f32.mrf.mxu0
      %v4418 = vadd.f32 %v4329, %v4417
      %4419 = vmatmul.bf16.gmra.mxu0 %v3174
      %v4420 = vpop.f32.mrf.mxu0
      %v4421 = vadd.f32 %v4332, %v4420
      %v4422 = vpop.f32.mrf.mxu0
      %v4423 = vadd.f32 %v4334, %v4422
      %4424 = vmatmul.bf16.gmra.mxu0 %v3175
      %v4425 = vpop.f32.mrf.mxu0
      %v4426 = vadd.f32 %v4337, %v4425
      %v4427 = vpop.f32.mrf.mxu0
      %v4428 = vadd.f32 %v4339, %v4427
      %4429 = vdwg.mxu0
      %4430 = vmatpush.bf16.msra.mxu0 %v4131
      %4431 = vmatpush.bf16.msra.mxu0 %v4130
      %4432 = vmatpush.bf16.msra.mxu0 %v4129
      %4433 = vmatpush.bf16.msra.mxu0 %v4128
      %4434 = vmatpush.bf16.msra.mxu0 %v4127
      %4435 = vmatpush.bf16.msra.mxu0 %v4126
      %4436 = vmatpush.bf16.msra.mxu0 %v4125
      %4437 = vmatpush.bf16.msra.mxu0 %v4124
      %4438 = vmatmul.bf16.gmra.mxu0 %v3224
      %v4439 = vpop.f32.mrf.mxu0
      %v4440 = vadd.f32 %v4351, %v4439
      %v4441 = vpop.f32.mrf.mxu0
      %v4442 = vadd.f32 %v4353, %v4441
      %4443 = vmatmul.bf16.gmra.mxu0 %v3225
      %v4444 = vpop.f32.mrf.mxu0
      %v4445 = vadd.f32 %v4356, %v4444
      %v4446 = vpop.f32.mrf.mxu0
      %v4447 = vadd.f32 %v4358, %v4446
      %4448 = vmatmul.bf16.gmra.mxu0 %v3226
      %v4449 = vpop.f32.mrf.mxu0
      %v4450 = vadd.f32 %v4361, %v4449
      %v4451 = vpop.f32.mrf.mxu0
      %v4452 = vadd.f32 %v4363, %v4451
      %4453 = vmatmul.bf16.gmra.mxu0 %v3227
      %v4454 = vpop.f32.mrf.mxu0
      %v4455 = vadd.f32 %v4366, %v4454
      %v4456 = vpop.f32.mrf.mxu0
      %v4457 = vadd.f32 %v4368, %v4456
      %4458 = vmatmul.bf16.gmra.mxu0 %v3228
      %v4459 = vpop.f32.mrf.mxu0
      %v4460 = vadd.f32 %v4371, %v4459
      %v4461 = vpop.f32.mrf.mxu0
      %v4462 = vadd.f32 %v4373, %v4461
      %4463 = vmatmul.bf16.gmra.mxu0 %v3229
      %v4464 = vpop.f32.mrf.mxu0
      %v4465 = vadd.f32 %v4376, %v4464
      %v4466 = vpop.f32.mrf.mxu0
      %v4467 = vadd.f32 %v4378, %v4466
      %4468 = vmatmul.bf16.gmra.mxu0 %v3230
      %v4469 = vpop.f32.mrf.mxu0
      %v4470 = vadd.f32 %v4381, %v4469
      %v4471 = vpop.f32.mrf.mxu0
      %v4472 = vadd.f32 %v4383, %v4471
      %4473 = vmatmul.bf16.gmra.mxu0 %v3231
      %v4474 = vpop.f32.mrf.mxu0
      %v4475 = vadd.f32 %v4386, %v4474
      %v4476 = vpop.f32.mrf.mxu0
      %v4477 = vadd.f32 %v4388, %v4476
      %4478 = vmatmul.bf16.gmra.mxu0 %v3232
      %v4479 = vpop.f32.mrf.mxu0
      %v4480 = vadd.f32 %v4391, %v4479
      %v4481 = vpop.f32.mrf.mxu0
      %v4482 = vadd.f32 %v4393, %v4481
      %4483 = vmatmul.bf16.gmra.mxu0 %v3233
      %v4484 = vpop.f32.mrf.mxu0
      %v4485 = vadd.f32 %v4396, %v4484
      %v4486 = vpop.f32.mrf.mxu0
      %v4487 = vadd.f32 %v4398, %v4486
      %4488 = vmatmul.bf16.gmra.mxu0 %v3234
      %v4489 = vpop.f32.mrf.mxu0
      %v4490 = vadd.f32 %v4401, %v4489
      %v4491 = vpop.f32.mrf.mxu0
      %v4492 = vadd.f32 %v4403, %v4491
      %4493 = vmatmul.bf16.gmra.mxu0 %v3235
      %v4494 = vpop.f32.mrf.mxu0
      %v4495 = vadd.f32 %v4406, %v4494
      %v4496 = vpop.f32.mrf.mxu0
      %v4497 = vadd.f32 %v4408, %v4496
      %4498 = vmatmul.bf16.gmra.mxu0 %v3236
      %v4499 = vpop.f32.mrf.mxu0
      %v4500 = vadd.f32 %v4411, %v4499
      %v4501 = vpop.f32.mrf.mxu0
      %v4502 = vadd.f32 %v4413, %v4501
      %4503 = vmatmul.bf16.gmra.mxu0 %v3237
      %v4504 = vpop.f32.mrf.mxu0
      %v4505 = vadd.f32 %v4416, %v4504
      %v4506 = vpop.f32.mrf.mxu0
      %v4507 = vadd.f32 %v4418, %v4506
      %4508 = vmatmul.bf16.gmra.mxu0 %v3238
      %v4509 = vpop.f32.mrf.mxu0
      %v4510 = vadd.f32 %v4421, %v4509
      %v4511 = vpop.f32.mrf.mxu0
      %v4512 = vadd.f32 %v4423, %v4511
      %4513 = vmatmul.bf16.gmra.mxu0 %v3239
      %v4514 = vpop.f32.mrf.mxu0
      %v4515 = vadd.f32 %v4426, %v4514
      %v4516 = vpop.f32.mrf.mxu0
      %v4517 = vadd.f32 %v4428, %v4516
      %4518 = vdwg.mxu0
      %4519 = vmatpush.bf16.msra.mxu0 %v4139
      %4520 = vmatpush.bf16.msra.mxu0 %v4138
      %4521 = vmatpush.bf16.msra.mxu0 %v4137
      %4522 = vmatpush.bf16.msra.mxu0 %v4136
      %4523 = vmatpush.bf16.msra.mxu0 %v4135
      %4524 = vmatpush.bf16.msra.mxu0 %v4134
      %4525 = vmatpush.bf16.msra.mxu0 %v4133
      %4526 = vmatpush.bf16.msra.mxu0 %v4132
      %4527 = vmatmul.bf16.gmra.mxu0 %v3304
      %v4528 = vpop.f32.mrf.mxu0
      %v4529 = vadd.f32 %v4440, %v4528
      %v4530 = vpop.f32.mrf.mxu0
      %v4531 = vadd.f32 %v4442, %v4530
      %4532 = vmatmul.bf16.gmra.mxu0 %v3305
      %v4533 = vpop.f32.mrf.mxu0
      %v4534 = vadd.f32 %v4445, %v4533
      %v4535 = vpop.f32.mrf.mxu0
      %v4536 = vadd.f32 %v4447, %v4535
      %4537 = vmatmul.bf16.gmra.mxu0 %v3306
      %v4538 = vpop.f32.mrf.mxu0
      %v4539 = vadd.f32 %v4450, %v4538
      %v4540 = vpop.f32.mrf.mxu0
      %v4541 = vadd.f32 %v4452, %v4540
      %4542 = vmatmul.bf16.gmra.mxu0 %v3307
      %v4543 = vpop.f32.mrf.mxu0
      %v4544 = vadd.f32 %v4455, %v4543
      %v4545 = vpop.f32.mrf.mxu0
      %v4546 = vadd.f32 %v4457, %v4545
      %4547 = vmatmul.bf16.gmra.mxu0 %v3308
      %v4548 = vpop.f32.mrf.mxu0
      %v4549 = vadd.f32 %v4460, %v4548
      %v4550 = vpop.f32.mrf.mxu0
      %v4551 = vadd.f32 %v4462, %v4550
      %4552 = vmatmul.bf16.gmra.mxu0 %v3309
      %v4553 = vpop.f32.mrf.mxu0
      %v4554 = vadd.f32 %v4465, %v4553
      %v4555 = vpop.f32.mrf.mxu0
      %v4556 = vadd.f32 %v4467, %v4555
      %4557 = vmatmul.bf16.gmra.mxu0 %v3310
      %v4558 = vpop.f32.mrf.mxu0
      %v4559 = vadd.f32 %v4470, %v4558
      %v4560 = vpop.f32.mrf.mxu0
      %v4561 = vadd.f32 %v4472, %v4560
      %4562 = vmatmul.bf16.gmra.mxu0 %v3311
      %v4563 = vpop.f32.mrf.mxu0
      %v4564 = vadd.f32 %v4475, %v4563
      %v4565 = vpop.f32.mrf.mxu0
      %v4566 = vadd.f32 %v4477, %v4565
      %4567 = vmatmul.bf16.gmra.mxu0 %v3312
      %v4568 = vpop.f32.mrf.mxu0
      %v4569 = vadd.f32 %v4480, %v4568
      %v4570 = vpop.f32.mrf.mxu0
      %v4571 = vadd.f32 %v4482, %v4570
      %4572 = vmatmul.bf16.gmra.mxu0 %v3313
      %v4573 = vpop.f32.mrf.mxu0
      %v4574 = vadd.f32 %v4485, %v4573
      %v4575 = vpop.f32.mrf.mxu0
      %v4576 = vadd.f32 %v4487, %v4575
      %4577 = vmatmul.bf16.gmra.mxu0 %v3314
      %v4578 = vpop.f32.mrf.mxu0
      %v4579 = vadd.f32 %v4490, %v4578
      %v4580 = vpop.f32.mrf.mxu0
      %v4581 = vadd.f32 %v4492, %v4580
      %4582 = vmatmul.bf16.gmra.mxu0 %v3315
      %v4583 = vpop.f32.mrf.mxu0
      %v4584 = vadd.f32 %v4495, %v4583
      %v4585 = vpop.f32.mrf.mxu0
      %v4586 = vadd.f32 %v4497, %v4585
      %4587 = vmatmul.bf16.gmra.mxu0 %v3316
      %v4588 = vpop.f32.mrf.mxu0
      %v4589 = vadd.f32 %v4500, %v4588
      %v4590 = vpop.f32.mrf.mxu0
      %v4591 = vadd.f32 %v4502, %v4590
      %4592 = vmatmul.bf16.gmra.mxu0 %v3317
      %v4593 = vpop.f32.mrf.mxu0
      %v4594 = vadd.f32 %v4505, %v4593
      %v4595 = vpop.f32.mrf.mxu0
      %v4596 = vadd.f32 %v4507, %v4595
      %4597 = vmatmul.bf16.gmra.mxu0 %v3318
      %v4598 = vpop.f32.mrf.mxu0
      %v4599 = vadd.f32 %v4510, %v4598
      %v4600 = vpop.f32.mrf.mxu0
      %v4601 = vadd.f32 %v4512, %v4600
      %4602 = vmatmul.bf16.gmra.mxu0 %v3319
      %v4603 = vpop.f32.mrf.mxu0
      %v4604 = vadd.f32 %v4515, %v4603
      %v4605 = vpop.f32.mrf.mxu0
      %v4606 = vadd.f32 %v4517, %v4605
      %4607 = vdwg.mxu0
      %4608 = vmatpush.bf16.msra.mxu0 %v4147
      %4609 = vmatpush.bf16.msra.mxu0 %v4146
      %4610 = vmatpush.bf16.msra.mxu0 %v4145
      %4611 = vmatpush.bf16.msra.mxu0 %v4144
      %4612 = vmatpush.bf16.msra.mxu0 %v4143
      %4613 = vmatpush.bf16.msra.mxu0 %v4142
      %4614 = vmatpush.bf16.msra.mxu0 %v4141
      %4615 = vmatpush.bf16.msra.mxu0 %v4140
      %4616 = vmatmul.bf16.gmra.mxu0 %v3368
      %v4617 = vpop.f32.mrf.mxu0
      %v4618 = vadd.f32 %v4529, %v4617
      %v4619 = vpop.f32.mrf.mxu0
      %v4620 = vadd.f32 %v4531, %v4619
      %4621 = vmatmul.bf16.gmra.mxu0 %v3369
      %v4622 = vpop.f32.mrf.mxu0
      %v4623 = vadd.f32 %v4534, %v4622
      %v4624 = vpop.f32.mrf.mxu0
      %v4625 = vadd.f32 %v4536, %v4624
      %4626 = vmatmul.bf16.gmra.mxu0 %v3370
      %v4627 = vpop.f32.mrf.mxu0
      %v4628 = vadd.f32 %v4539, %v4627
      %v4629 = vpop.f32.mrf.mxu0
      %v4630 = vadd.f32 %v4541, %v4629
      %4631 = vmatmul.bf16.gmra.mxu0 %v3371
      %v4632 = vpop.f32.mrf.mxu0
      %v4633 = vadd.f32 %v4544, %v4632
      %v4634 = vpop.f32.mrf.mxu0
      %v4635 = vadd.f32 %v4546, %v4634
      %4636 = vmatmul.bf16.gmra.mxu0 %v3372
      %v4637 = vpop.f32.mrf.mxu0
      %v4638 = vadd.f32 %v4549, %v4637
      %v4639 = vpop.f32.mrf.mxu0
      %v4640 = vadd.f32 %v4551, %v4639
      %4641 = vmatmul.bf16.gmra.mxu0 %v3373
      %v4642 = vpop.f32.mrf.mxu0
      %v4643 = vadd.f32 %v4554, %v4642
      %v4644 = vpop.f32.mrf.mxu0
      %v4645 = vadd.f32 %v4556, %v4644
      %4646 = vmatmul.bf16.gmra.mxu0 %v3374
      %v4647 = vpop.f32.mrf.mxu0
      %v4648 = vadd.f32 %v4559, %v4647
      %v4649 = vpop.f32.mrf.mxu0
      %v4650 = vadd.f32 %v4561, %v4649
      %4651 = vmatmul.bf16.gmra.mxu0 %v3375
      %v4652 = vpop.f32.mrf.mxu0
      %v4653 = vadd.f32 %v4564, %v4652
      %v4654 = vpop.f32.mrf.mxu0
      %v4655 = vadd.f32 %v4566, %v4654
      %4656 = vmatmul.bf16.gmra.mxu0 %v3376
      %v4657 = vpop.f32.mrf.mxu0
      %v4658 = vadd.f32 %v4569, %v4657
      %v4659 = vpop.f32.mrf.mxu0
      %v4660 = vadd.f32 %v4571, %v4659
      %4661 = vmatmul.bf16.gmra.mxu0 %v3377
      %v4662 = vpop.f32.mrf.mxu0
      %v4663 = vadd.f32 %v4574, %v4662
      %v4664 = vpop.f32.mrf.mxu0
      %v4665 = vadd.f32 %v4576, %v4664
      %4666 = vmatmul.bf16.gmra.mxu0 %v3378
      %v4667 = vpop.f32.mrf.mxu0
      %v4668 = vadd.f32 %v4579, %v4667
      %v4669 = vpop.f32.mrf.mxu0
      %v4670 = vadd.f32 %v4581, %v4669
      %4671 = vmatmul.bf16.gmra.mxu0 %v3379
      %v4672 = vpop.f32.mrf.mxu0
      %v4673 = vadd.f32 %v4584, %v4672
      %v4674 = vpop.f32.mrf.mxu0
      %v4675 = vadd.f32 %v4586, %v4674
      %4676 = vmatmul.bf16.gmra.mxu0 %v3380
      %v4677 = vpop.f32.mrf.mxu0
      %v4678 = vadd.f32 %v4589, %v4677
      %v4679 = vpop.f32.mrf.mxu0
      %v4680 = vadd.f32 %v4591, %v4679
      %4681 = vmatmul.bf16.gmra.mxu0 %v3381
      %v4682 = vpop.f32.mrf.mxu0
      %v4683 = vadd.f32 %v4594, %v4682
      %v4684 = vpop.f32.mrf.mxu0
      %v4685 = vadd.f32 %v4596, %v4684
      %4686 = vmatmul.bf16.gmra.mxu0 %v3382
      %v4687 = vpop.f32.mrf.mxu0
      %v4688 = vadd.f32 %v4599, %v4687
      %v4689 = vpop.f32.mrf.mxu0
      %v4690 = vadd.f32 %v4601, %v4689
      %4691 = vmatmul.bf16.gmra.mxu0 %v3383
      %v4692 = vpop.f32.mrf.mxu0
      %v4693 = vadd.f32 %v4604, %v4692
      %v4694 = vpop.f32.mrf.mxu0
      %v4695 = vadd.f32 %v4606, %v4694
      %4696 = vdwg.mxu0
      %4697 = vmatpush.bf16.msra.mxu0 %v4155
      %4698 = vmatpush.bf16.msra.mxu0 %v4154
      %4699 = vmatpush.bf16.msra.mxu0 %v4153
      %4700 = vmatpush.bf16.msra.mxu0 %v4152
      %4701 = vmatpush.bf16.msra.mxu0 %v4151
      %4702 = vmatpush.bf16.msra.mxu0 %v4150
      %4703 = vmatpush.bf16.msra.mxu0 %v4149
      %4704 = vmatpush.bf16.msra.mxu0 %v4148
      %4705 = vmatmul.bf16.gmra.mxu0 %v3432
      %v4706 = vpop.f32.mrf.mxu0
      %v4707 = vadd.f32 %v4618, %v4706
      %v4708 = vpop.f32.mrf.mxu0
      %v4709 = vadd.f32 %v4620, %v4708
      %4710 = vmatmul.bf16.gmra.mxu0 %v3433
      %v4711 = vpop.f32.mrf.mxu0
      %v4712 = vadd.f32 %v4623, %v4711
      %v4713 = vpop.f32.mrf.mxu0
      %v4714 = vadd.f32 %v4625, %v4713
      %4715 = vmatmul.bf16.gmra.mxu0 %v3434
      %v4716 = vpop.f32.mrf.mxu0
      %v4717 = vadd.f32 %v4628, %v4716
      %v4718 = vpop.f32.mrf.mxu0
      %v4719 = vadd.f32 %v4630, %v4718
      %4720 = vmatmul.bf16.gmra.mxu0 %v3435
      %v4721 = vpop.f32.mrf.mxu0
      %v4722 = vadd.f32 %v4633, %v4721
      %v4723 = vpop.f32.mrf.mxu0
      %v4724 = vadd.f32 %v4635, %v4723
      %4725 = vmatmul.bf16.gmra.mxu0 %v3436
      %v4726 = vpop.f32.mrf.mxu0
      %v4727 = vadd.f32 %v4638, %v4726
      %v4728 = vpop.f32.mrf.mxu0
      %v4729 = vadd.f32 %v4640, %v4728
      %4730 = vmatmul.bf16.gmra.mxu0 %v3437
      %v4731 = vpop.f32.mrf.mxu0
      %v4732 = vadd.f32 %v4643, %v4731
      %v4733 = vpop.f32.mrf.mxu0
      %v4734 = vadd.f32 %v4645, %v4733
      %4735 = vmatmul.bf16.gmra.mxu0 %v3438
      %v4736 = vpop.f32.mrf.mxu0
      %v4737 = vadd.f32 %v4648, %v4736
      %v4738 = vpop.f32.mrf.mxu0
      %v4739 = vadd.f32 %v4650, %v4738
      %4740 = vmatmul.bf16.gmra.mxu0 %v3439
      %v4741 = vpop.f32.mrf.mxu0
      %v4742 = vadd.f32 %v4653, %v4741
      %v4743 = vpop.f32.mrf.mxu0
      %v4744 = vadd.f32 %v4655, %v4743
      %4745 = vmatmul.bf16.gmra.mxu0 %v3440
      %v4746 = vpop.f32.mrf.mxu0
      %v4747 = vadd.f32 %v4658, %v4746
      %v4748 = vpop.f32.mrf.mxu0
      %v4749 = vadd.f32 %v4660, %v4748
      %4750 = vmatmul.bf16.gmra.mxu0 %v3441
      %v4751 = vpop.f32.mrf.mxu0
      %v4752 = vadd.f32 %v4663, %v4751
      %v4753 = vpop.f32.mrf.mxu0
      %v4754 = vadd.f32 %v4665, %v4753
      %4755 = vmatmul.bf16.gmra.mxu0 %v3442
      %v4756 = vpop.f32.mrf.mxu0
      %v4757 = vadd.f32 %v4668, %v4756
      %v4758 = vpop.f32.mrf.mxu0
      %v4759 = vadd.f32 %v4670, %v4758
      %4760 = vmatmul.bf16.gmra.mxu0 %v3443
      %v4761 = vpop.f32.mrf.mxu0
      %v4762 = vadd.f32 %v4673, %v4761
      %v4763 = vpop.f32.mrf.mxu0
      %v4764 = vadd.f32 %v4675, %v4763
      %4765 = vmatmul.bf16.gmra.mxu0 %v3444
      %v4766 = vpop.f32.mrf.mxu0
      %v4767 = vadd.f32 %v4678, %v4766
      %v4768 = vpop.f32.mrf.mxu0
      %v4769 = vadd.f32 %v4680, %v4768
      %4770 = vmatmul.bf16.gmra.mxu0 %v3445
      %v4771 = vpop.f32.mrf.mxu0
      %v4772 = vadd.f32 %v4683, %v4771
      %v4773 = vpop.f32.mrf.mxu0
      %v4774 = vadd.f32 %v4685, %v4773
      %4775 = vmatmul.bf16.gmra.mxu0 %v3446
      %v4776 = vpop.f32.mrf.mxu0
      %v4777 = vadd.f32 %v4688, %v4776
      %v4778 = vpop.f32.mrf.mxu0
      %v4779 = vadd.f32 %v4690, %v4778
      %4780 = vmatmul.bf16.gmra.mxu0 %v3447
      %v4781 = vpop.f32.mrf.mxu0
      %v4782 = vadd.f32 %v4693, %v4781
      %v4783 = vpop.f32.mrf.mxu0
      %v4784 = vadd.f32 %v4695, %v4783
      %4785 = vdwg.mxu0
      %4786 = vmatpush.bf16.msra.mxu0 %v4163
      %4787 = vmatpush.bf16.msra.mxu0 %v4162
      %4788 = vmatpush.bf16.msra.mxu0 %v4161
      %4789 = vmatpush.bf16.msra.mxu0 %v4160
      %4790 = vmatpush.bf16.msra.mxu0 %v4159
      %4791 = vmatpush.bf16.msra.mxu0 %v4158
      %4792 = vmatpush.bf16.msra.mxu0 %v4157
      %4793 = vmatpush.bf16.msra.mxu0 %v4156
      %4794 = vmatmul.bf16.gmra.mxu0 %v3512
      %v4795 = vpop.f32.mrf.mxu0
      %v4796 = vadd.f32 %v4707, %v4795
      %v4797 = vpop.f32.mrf.mxu0
      %v4798 = vadd.f32 %v4709, %v4797
      %4799 = vmatmul.bf16.gmra.mxu0 %v3513
      %v4800 = vpop.f32.mrf.mxu0
      %v4801 = vadd.f32 %v4712, %v4800
      %v4802 = vpop.f32.mrf.mxu0
      %v4803 = vadd.f32 %v4714, %v4802
      %4804 = vmatmul.bf16.gmra.mxu0 %v3514
      %v4805 = vpop.f32.mrf.mxu0
      %v4806 = vadd.f32 %v4717, %v4805
      %v4807 = vpop.f32.mrf.mxu0
      %v4808 = vadd.f32 %v4719, %v4807
      %4809 = vmatmul.bf16.gmra.mxu0 %v3515
      %v4810 = vpop.f32.mrf.mxu0
      %v4811 = vadd.f32 %v4722, %v4810
      %v4812 = vpop.f32.mrf.mxu0
      %v4813 = vadd.f32 %v4724, %v4812
      %4814 = vmatmul.bf16.gmra.mxu0 %v3516
      %v4815 = vpop.f32.mrf.mxu0
      %v4816 = vadd.f32 %v4727, %v4815
      %v4817 = vpop.f32.mrf.mxu0
      %v4818 = vadd.f32 %v4729, %v4817
      %4819 = vmatmul.bf16.gmra.mxu0 %v3517
      %v4820 = vpop.f32.mrf.mxu0
      %v4821 = vadd.f32 %v4732, %v4820
      %v4822 = vpop.f32.mrf.mxu0
      %v4823 = vadd.f32 %v4734, %v4822
      %4824 = vmatmul.bf16.gmra.mxu0 %v3518
      %v4825 = vpop.f32.mrf.mxu0
      %v4826 = vadd.f32 %v4737, %v4825
      %v4827 = vpop.f32.mrf.mxu0
      %v4828 = vadd.f32 %v4739, %v4827
      %4829 = vmatmul.bf16.gmra.mxu0 %v3519
      %v4830 = vpop.f32.mrf.mxu0
      %v4831 = vadd.f32 %v4742, %v4830
      %v4832 = vpop.f32.mrf.mxu0
      %v4833 = vadd.f32 %v4744, %v4832
      %4834 = vmatmul.bf16.gmra.mxu0 %v3520
      %v4835 = vpop.f32.mrf.mxu0
      %v4836 = vadd.f32 %v4747, %v4835
      %v4837 = vpop.f32.mrf.mxu0
      %v4838 = vadd.f32 %v4749, %v4837
      %4839 = vmatmul.bf16.gmra.mxu0 %v3521
      %v4840 = vpop.f32.mrf.mxu0
      %v4841 = vadd.f32 %v4752, %v4840
      %v4842 = vpop.f32.mrf.mxu0
      %v4843 = vadd.f32 %v4754, %v4842
      %4844 = vmatmul.bf16.gmra.mxu0 %v3522
      %v4845 = vpop.f32.mrf.mxu0
      %v4846 = vadd.f32 %v4757, %v4845
      %v4847 = vpop.f32.mrf.mxu0
      %v4848 = vadd.f32 %v4759, %v4847
      %4849 = vmatmul.bf16.gmra.mxu0 %v3523
      %v4850 = vpop.f32.mrf.mxu0
      %v4851 = vadd.f32 %v4762, %v4850
      %v4852 = vpop.f32.mrf.mxu0
      %v4853 = vadd.f32 %v4764, %v4852
      %4854 = vmatmul.bf16.gmra.mxu0 %v3524
      %v4855 = vpop.f32.mrf.mxu0
      %v4856 = vadd.f32 %v4767, %v4855
      %v4857 = vpop.f32.mrf.mxu0
      %v4858 = vadd.f32 %v4769, %v4857
      %4859 = vmatmul.bf16.gmra.mxu0 %v3525
      %v4860 = vpop.f32.mrf.mxu0
      %v4861 = vadd.f32 %v4772, %v4860
      %v4862 = vpop.f32.mrf.mxu0
      %v4863 = vadd.f32 %v4774, %v4862
      %4864 = vmatmul.bf16.gmra.mxu0 %v3526
      %v4865 = vpop.f32.mrf.mxu0
      %v4866 = vadd.f32 %v4777, %v4865
      %v4867 = vpop.f32.mrf.mxu0
      %v4868 = vadd.f32 %v4779, %v4867
      %4869 = vmatmul.bf16.gmra.mxu0 %v3527
      %v4870 = vpop.f32.mrf.mxu0
      %v4871 = vadd.f32 %v4782, %v4870
      %v4872 = vpop.f32.mrf.mxu0
      %v4873 = vadd.f32 %v4784, %v4872
      %4874 = vdwg.mxu0
      %4875 = vmatpush.bf16.msra.mxu0 %v4171
      %4876 = vmatpush.bf16.msra.mxu0 %v4170
      %4877 = vmatpush.bf16.msra.mxu0 %v4169
      %4878 = vmatpush.bf16.msra.mxu0 %v4168
      %4879 = vmatpush.bf16.msra.mxu0 %v4167
      %4880 = vmatpush.bf16.msra.mxu0 %v4166
      %4881 = vmatpush.bf16.msra.mxu0 %v4165
      %4882 = vmatpush.bf16.msra.mxu0 %v4164
      %4883 = vmatmul.bf16.gmra.mxu0 %v3576
      %v4884 = vpop.f32.mrf.mxu0
      %v4885 = vadd.f32 %v4796, %v4884
      %v4886 = vpop.f32.mrf.mxu0
      %v4887 = vadd.f32 %v4798, %v4886
      %4888 = vmatmul.bf16.gmra.mxu0 %v3577
      %v4889 = vpop.f32.mrf.mxu0
      %v4890 = vadd.f32 %v4801, %v4889
      %v4891 = vpop.f32.mrf.mxu0
      %v4892 = vadd.f32 %v4803, %v4891
      %4893 = vmatmul.bf16.gmra.mxu0 %v3578
      %v4894 = vpop.f32.mrf.mxu0
      %v4895 = vadd.f32 %v4806, %v4894
      %v4896 = vpop.f32.mrf.mxu0
      %v4897 = vadd.f32 %v4808, %v4896
      %4898 = vmatmul.bf16.gmra.mxu0 %v3579
      %v4899 = vpop.f32.mrf.mxu0
      %v4900 = vadd.f32 %v4811, %v4899
      %v4901 = vpop.f32.mrf.mxu0
      %v4902 = vadd.f32 %v4813, %v4901
      %4903 = vmatmul.bf16.gmra.mxu0 %v3580
      %v4904 = vpop.f32.mrf.mxu0
      %v4905 = vadd.f32 %v4816, %v4904
      %v4906 = vpop.f32.mrf.mxu0
      %v4907 = vadd.f32 %v4818, %v4906
      %4908 = vmatmul.bf16.gmra.mxu0 %v3581
      %v4909 = vpop.f32.mrf.mxu0
      %v4910 = vadd.f32 %v4821, %v4909
      %v4911 = vpop.f32.mrf.mxu0
      %v4912 = vadd.f32 %v4823, %v4911
      %4913 = vmatmul.bf16.gmra.mxu0 %v3582
      %v4914 = vpop.f32.mrf.mxu0
      %v4915 = vadd.f32 %v4826, %v4914
      %v4916 = vpop.f32.mrf.mxu0
      %v4917 = vadd.f32 %v4828, %v4916
      %4918 = vmatmul.bf16.gmra.mxu0 %v3583
      %v4919 = vpop.f32.mrf.mxu0
      %v4920 = vadd.f32 %v4831, %v4919
      %v4921 = vpop.f32.mrf.mxu0
      %v4922 = vadd.f32 %v4833, %v4921
      %4923 = vmatmul.bf16.gmra.mxu0 %v3584
      %v4924 = vpop.f32.mrf.mxu0
      %v4925 = vadd.f32 %v4836, %v4924
      %v4926 = vpop.f32.mrf.mxu0
      %v4927 = vadd.f32 %v4838, %v4926
      %4928 = vmatmul.bf16.gmra.mxu0 %v3585
      %v4929 = vpop.f32.mrf.mxu0
      %v4930 = vadd.f32 %v4841, %v4929
      %v4931 = vpop.f32.mrf.mxu0
      %v4932 = vadd.f32 %v4843, %v4931
      %4933 = vmatmul.bf16.gmra.mxu0 %v3586
      %v4934 = vpop.f32.mrf.mxu0
      %v4935 = vadd.f32 %v4846, %v4934
      %v4936 = vpop.f32.mrf.mxu0
      %v4937 = vadd.f32 %v4848, %v4936
      %4938 = vmatmul.bf16.gmra.mxu0 %v3587
      %v4939 = vpop.f32.mrf.mxu0
      %v4940 = vadd.f32 %v4851, %v4939
      %v4941 = vpop.f32.mrf.mxu0
      %v4942 = vadd.f32 %v4853, %v4941
      %4943 = vmatmul.bf16.gmra.mxu0 %v3588
      %v4944 = vpop.f32.mrf.mxu0
      %v4945 = vadd.f32 %v4856, %v4944
      %v4946 = vpop.f32.mrf.mxu0
      %v4947 = vadd.f32 %v4858, %v4946
      %4948 = vmatmul.bf16.gmra.mxu0 %v3589
      %v4949 = vpop.f32.mrf.mxu0
      %v4950 = vadd.f32 %v4861, %v4949
      %v4951 = vpop.f32.mrf.mxu0
      %v4952 = vadd.f32 %v4863, %v4951
      %4953 = vmatmul.bf16.gmra.mxu0 %v3590
      %v4954 = vpop.f32.mrf.mxu0
      %v4955 = vadd.f32 %v4866, %v4954
      %v4956 = vpop.f32.mrf.mxu0
      %v4957 = vadd.f32 %v4868, %v4956
      %4958 = vmatmul.bf16.gmra.mxu0 %v3591
      %v4959 = vpop.f32.mrf.mxu0
      %v4960 = vadd.f32 %v4871, %v4959
      %v4961 = vpop.f32.mrf.mxu0
      %v4962 = vadd.f32 %v4873, %v4961
      %4963 = vdwg.mxu0
      %4964 = vmatpush.bf16.msra.mxu0 %v4179
      %4965 = vmatpush.bf16.msra.mxu0 %v4178
      %4966 = vmatpush.bf16.msra.mxu0 %v4177
      %4967 = vmatpush.bf16.msra.mxu0 %v4176
      %4968 = vmatpush.bf16.msra.mxu0 %v4175
      %4969 = vmatpush.bf16.msra.mxu0 %v4174
      %4970 = vmatpush.bf16.msra.mxu0 %v4173
      %4971 = vmatpush.bf16.msra.mxu0 %v4172
      %4972 = vmatmul.bf16.gmra.mxu0 %v3640
      %v4973 = vpop.f32.mrf.mxu0
      %v4974 = vadd.f32 %v4885, %v4973
      %v4975 = vpop.f32.mrf.mxu0
      %v4976 = vadd.f32 %v4887, %v4975
      %4977 = vmatmul.bf16.gmra.mxu0 %v3641
      %v4978 = vpop.f32.mrf.mxu0
      %v4979 = vadd.f32 %v4890, %v4978
      %v4980 = vpop.f32.mrf.mxu0
      %v4981 = vadd.f32 %v4892, %v4980
      %4982 = vmatmul.bf16.gmra.mxu0 %v3642
      %v4983 = vpop.f32.mrf.mxu0
      %v4984 = vadd.f32 %v4895, %v4983
      %v4985 = vpop.f32.mrf.mxu0
      %v4986 = vadd.f32 %v4897, %v4985
      %4987 = vmatmul.bf16.gmra.mxu0 %v3643
      %v4988 = vpop.f32.mrf.mxu0
      %v4989 = vadd.f32 %v4900, %v4988
      %v4990 = vpop.f32.mrf.mxu0
      %v4991 = vadd.f32 %v4902, %v4990
      %4992 = vmatmul.bf16.gmra.mxu0 %v3644
      %v4993 = vpop.f32.mrf.mxu0
      %v4994 = vadd.f32 %v4905, %v4993
      %v4995 = vpop.f32.mrf.mxu0
      %v4996 = vadd.f32 %v4907, %v4995
      %4997 = vmatmul.bf16.gmra.mxu0 %v3645
      %v4998 = vpop.f32.mrf.mxu0
      %v4999 = vadd.f32 %v4910, %v4998
      %v5000 = vpop.f32.mrf.mxu0
      %v5001 = vadd.f32 %v4912, %v5000
      %5002 = vmatmul.bf16.gmra.mxu0 %v3646
      %v5003 = vpop.f32.mrf.mxu0
      %v5004 = vadd.f32 %v4915, %v5003
      %v5005 = vpop.f32.mrf.mxu0
      %v5006 = vadd.f32 %v4917, %v5005
      %5007 = vmatmul.bf16.gmra.mxu0 %v3647
      %v5008 = vpop.f32.mrf.mxu0
      %v5009 = vadd.f32 %v4920, %v5008
      %v5010 = vpop.f32.mrf.mxu0
      %v5011 = vadd.f32 %v4922, %v5010
      %5012 = vmatmul.bf16.gmra.mxu0 %v3648
      %v5013 = vpop.f32.mrf.mxu0
      %v5014 = vadd.f32 %v4925, %v5013
      %v5015 = vpop.f32.mrf.mxu0
      %v5016 = vadd.f32 %v4927, %v5015
      %5017 = vmatmul.bf16.gmra.mxu0 %v3649
      %v5018 = vpop.f32.mrf.mxu0
      %v5019 = vadd.f32 %v4930, %v5018
      %v5020 = vpop.f32.mrf.mxu0
      %v5021 = vadd.f32 %v4932, %v5020
      %5022 = vmatmul.bf16.gmra.mxu0 %v3650
      %v5023 = vpop.f32.mrf.mxu0
      %v5024 = vadd.f32 %v4935, %v5023
      %v5025 = vpop.f32.mrf.mxu0
      %v5026 = vadd.f32 %v4937, %v5025
      %5027 = vmatmul.bf16.gmra.mxu0 %v3651
      %v5028 = vpop.f32.mrf.mxu0
      %v5029 = vadd.f32 %v4940, %v5028
      %v5030 = vpop.f32.mrf.mxu0
      %v5031 = vadd.f32 %v4942, %v5030
      %5032 = vmatmul.bf16.gmra.mxu0 %v3652
      %v5033 = vpop.f32.mrf.mxu0
      %v5034 = vadd.f32 %v4945, %v5033
      %v5035 = vpop.f32.mrf.mxu0
      %v5036 = vadd.f32 %v4947, %v5035
      %5037 = vmatmul.bf16.gmra.mxu0 %v3653
      %v5038 = vpop.f32.mrf.mxu0
      %v5039 = vadd.f32 %v4950, %v5038
      %v5040 = vpop.f32.mrf.mxu0
      %v5041 = vadd.f32 %v4952, %v5040
      %5042 = vmatmul.bf16.gmra.mxu0 %v3654
      %v5043 = vpop.f32.mrf.mxu0
      %v5044 = vadd.f32 %v4955, %v5043
      %v5045 = vpop.f32.mrf.mxu0
      %v5046 = vadd.f32 %v4957, %v5045
      %5047 = vmatmul.bf16.gmra.mxu0 %v3655
      %v5048 = vpop.f32.mrf.mxu0
      %v5049 = vadd.f32 %v4960, %v5048
      %v5050 = vpop.f32.mrf.mxu0
      %v5051 = vadd.f32 %v4962, %v5050
      %5052 = vdwg.mxu0
      %v5053 = vmax.f32 %v4974, 0.0
      %v5054 = vmax.f32 %v4976, 0.0
      %v5055 = vmax.f32 %v4979, 0.0
      %v5056 = vmax.f32 %v4981, 0.0
      %v5057 = vmax.f32 %v4984, 0.0
      %v5058 = vmax.f32 %v4986, 0.0
      %v5059 = vmax.f32 %v4989, 0.0
      %v5060 = vmax.f32 %v4991, 0.0
      %v5061 = vmax.f32 %v4994, 0.0
      %v5062 = vmax.f32 %v4996, 0.0
      %v5063 = vmax.f32 %v4999, 0.0
      %v5064 = vmax.f32 %v5001, 0.0
      %v5065 = vmax.f32 %v5004, 0.0
      %v5066 = vmax.f32 %v5006, 0.0
      %v5067 = vmax.f32 %v5009, 0.0
      %v5068 = vmax.f32 %v5011, 0.0
      %v5069 = vmax.f32 %v5014, 0.0
      %v5070 = vmax.f32 %v5016, 0.0
      %v5071 = vmax.f32 %v5019, 0.0
      %v5072 = vmax.f32 %v5021, 0.0
      %v5073 = vmax.f32 %v5024, 0.0
      %v5074 = vmax.f32 %v5026, 0.0
      %v5075 = vmax.f32 %v5029, 0.0
      %v5076 = vmax.f32 %v5031, 0.0
      %v5077 = vmax.f32 %v5034, 0.0
      %v5078 = vmax.f32 %v5036, 0.0
      %v5079 = vmax.f32 %v5039, 0.0
      %v5080 = vmax.f32 %v5041, 0.0
      %v5081 = vmax.f32 %v5044, 0.0
      %v5082 = vmax.f32 %v5046, 0.0
      %v5083 = vmax.f32 %v5049, 0.0
      %v5084 = vmax.f32 %v5051, 0.0
      %v5085 = vadd.f32 %v529, %v5053
      %v5086 = vadd.f32 %v531, %v5054
      %v5087 = vadd.f32 %v534, %v5055
      %v5088 = vadd.f32 %v536, %v5056
      %v5089 = vadd.f32 %v539, %v5057
      %v5090 = vadd.f32 %v541, %v5058
      %v5091 = vadd.f32 %v544, %v5059
      %v5092 = vadd.f32 %v546, %v5060
      %v5093 = vadd.f32 %v549, %v5061
      %v5094 = vadd.f32 %v551, %v5062
      %v5095 = vadd.f32 %v554, %v5063
      %v5096 = vadd.f32 %v556, %v5064
      %v5097 = vadd.f32 %v559, %v5065
      %v5098 = vadd.f32 %v561, %v5066
      %v5099 = vadd.f32 %v564, %v5067
      %v5100 = vadd.f32 %v566, %v5068
      %v5101 = vadd.f32 %v569, %v5069
      %v5102 = vadd.f32 %v571, %v5070
      %v5103 = vadd.f32 %v574, %v5071
      %v5104 = vadd.f32 %v576, %v5072
      %v5105 = vadd.f32 %v579, %v5073
      %v5106 = vadd.f32 %v581, %v5074
      %v5107 = vadd.f32 %v584, %v5075
      %v5108 = vadd.f32 %v586, %v5076
      %v5109 = vadd.f32 %v589, %v5077
      %v5110 = vadd.f32 %v591, %v5078
      %v5111 = vadd.f32 %v594, %v5079
      %v5112 = vadd.f32 %v596, %v5080
      %v5113 = vadd.f32 %v599, %v5081
      %v5114 = vadd.f32 %v601, %v5082
      %v5115 = vadd.f32 %v604, %v5083
      %v5116 = vadd.f32 %v606, %v5084
      %v5117 = vpack.c.bf16 %v5085, %v5085
      %v5118 = vpack.c.bf16 %v5086, %v5086
      %v5119 = vpack.c.bf16 %v5087, %v5087
      %v5120 = vpack.c.bf16 %v5088, %v5088
      %v5121 = vpack.c.bf16 %v5089, %v5089
      %v5122 = vpack.c.bf16 %v5090, %v5090
      %v5123 = vpack.c.bf16 %v5091, %v5091
      %v5124 = vpack.c.bf16 %v5092, %v5092
      %v5125 = vpack.c.bf16 %v5093, %v5093
      %v5126 = vpack.c.bf16 %v5094, %v5094
      %v5127 = vpack.c.bf16 %v5095, %v5095
      %v5128 = vpack.c.bf16 %v5096, %v5096
      %v5129 = vpack.c.bf16 %v5097, %v5097
      %v5130 = vpack.c.bf16 %v5098, %v5098
      %v5131 = vpack.c.bf16 %v5099, %v5099
      %v5132 = vpack.c.bf16 %v5100, %v5100
      %v5133 = vpack.c.bf16 %v5101, %v5101
      %v5134 = vpack.c.bf16 %v5102, %v5102
      %v5135 = vpack.c.bf16 %v5103, %v5103
      %v5136 = vpack.c.bf16 %v5104, %v5104
      %v5137 = vpack.c.bf16 %v5105, %v5105
      %v5138 = vpack.c.bf16 %v5106, %v5106
      %v5139 = vpack.c.bf16 %v5107, %v5107
      %v5140 = vpack.c.bf16 %v5108, %v5108
      %v5141 = vpack.c.bf16 %v5109, %v5109
      %v5142 = vpack.c.bf16 %v5110, %v5110
      %v5143 = vpack.c.bf16 %v5111, %v5111
      %v5144 = vpack.c.bf16 %v5112, %v5112
      %v5145 = vpack.c.bf16 %v5113, %v5113
      %v5146 = vpack.c.bf16 %v5114, %v5114
      %v5147 = vpack.c.bf16 %v5115, %v5115
      %v5148 = vpack.c.bf16 %v5116, %v5116
      %5149 = vst [vmem:[%s224] sm:$0xf] %v5117
      %5150 = vst [vmem:[%s224 + $0x4] sm:$0xf] %v5118
      %5151 = vst [vmem:[%s224 + $0x8] sm:$0xf] %v5119
      %5152 = vst [vmem:[%s224 + $0xc] sm:$0xf] %v5120
      %5153 = vst [vmem:[%s224 + $0x10] sm:$0xf] %v5121
      %5154 = vst [vmem:[%s224 + $0x14] sm:$0xf] %v5122
      %5155 = vst [vmem:[%s224 + $0x18] sm:$0xf] %v5123
      %5156 = vst [vmem:[%s224 + $0x1c] sm:$0xf] %v5124
      %5157 = vst [vmem:[%s224 + $0x20] sm:$0xf] %v5125
      %5158 = vst [vmem:[%s224 + $0x24] sm:$0xf] %v5126
      %5159 = vst [vmem:[%s224 + $0x28] sm:$0xf] %v5127
      %5160 = vst [vmem:[%s224 + $0x2c] sm:$0xf] %v5128
      %5161 = vst [vmem:[%s224 + $0x30] sm:$0xf] %v5129
      %5162 = vst [vmem:[%s224 + $0x34] sm:$0xf] %v5130
      %5163 = vst [vmem:[%s224 + $0x38] sm:$0xf] %v5131
      %5164 = vst [vmem:[%s224 + $0x3c] sm:$0xf] %v5132
      %5165 = vst [vmem:[%s224 + $0x40] sm:$0xf] %v5133
      %5166 = vst [vmem:[%s224 + $0x44] sm:$0xf] %v5134
      %5167 = vst [vmem:[%s224 + $0x48] sm:$0xf] %v5135
      %5168 = vst [vmem:[%s224 + $0x4c] sm:$0xf] %v5136
      %5169 = vst [vmem:[%s224 + $0x50] sm:$0xf] %v5137
      %5170 = vst [vmem:[%s224 + $0x54] sm:$0xf] %v5138
      %5171 = vst [vmem:[%s224 + $0x58] sm:$0xf] %v5139
      %5172 = vst [vmem:[%s224 + $0x5c] sm:$0xf] %v5140
      %5173 = vst [vmem:[%s224 + $0x60] sm:$0xf] %v5141
      %5174 = vst [vmem:[%s224 + $0x64] sm:$0xf] %v5142
      %5175 = vst [vmem:[%s224 + $0x68] sm:$0xf] %v5143
      %5176 = vst [vmem:[%s224 + $0x6c] sm:$0xf] %v5144
      %5177 = vst [vmem:[%s224 + $0x70] sm:$0xf] %v5145
      %5178 = vst [vmem:[%s224 + $0x74] sm:$0xf] %v5146
      %5179 = vst [vmem:[%s224 + $0x78] sm:$0xf] %v5147
      %5180 = vst [vmem:[%s224 + $0x7c] sm:$0xf] %v5148
      %p5181 = scmp.lt.s32.totalorder %s16, 1
      %s5182 = scalar_select %p5181, %s16, 1
      %s5183 = smul.addr %s5182, 32
      %s5184 = smul.addr %s5183, 4
      %s5185 = scalar_lea.vmem %s5, %s5184
      // Predicated region
      $region41: #{res_block_pallas.1} parent=39 // pred_check
        %p5186 = pneg %p144
      $region42: #{res_block_pallas.1} parent=39 // pred_check_branch
        %5188 = sbr.rel (%p5186) target = $region44
      $region43: #{res_block_pallas.1} parent=39 // pred_region
        _
      $region44: #{res_block_pallas.1} parent=39 // pred_fallthru
        _
    $region40: #{res_block_pallas.1} parent=5 // pred_fallthru
      _
    %p5189 = scmp.le.s32.totalorder 2, %s11
    // Predicated region
    $region45: #{res_block_pallas.1} parent=5 // pred_check
      %p5190 = pneg %p5189
    $region46: #{res_block_pallas.1} parent=5 // pred_check_branch
      %5192 = sbr.rel (%p5190) target = $region48
    $region47: #{res_block_pallas.1} parent=5 // pred_region
      %s5193 = ssub.s32 %s11, 2
      // Predicated region
      $region49: #{res_block_pallas.1} parent=47 // pred_check
        %p5194 = pneg %p150
      $region50: #{res_block_pallas.1} parent=47 // pred_check_branch
        %5196 = sbr.rel (%p5194) target = $region52
      $region51: #{res_block_pallas.1} parent=47 // pred_region
        %p5197 = scmp.lt.s32.totalorder %s17, 1
        %s5198 = scalar_select %p5197, %s17, 1
        %s5199 = smul.addr %s5198, 32
        %s5200 = smul.addr %s5199, 4
        %s5201 = scalar_lea.vmem %s5, %s5200
      $region52: #{res_block_pallas.1} parent=47 // pred_fallthru
        _
    $region48: #{res_block_pallas.1} parent=5 // pred_fallthru
      _
  $region6: #{res_block_pallas.1} parent=0 // loop_footer
    %s15 = sadd.s32 1, %s11
  $region7: #{res_block_pallas.1} parent=0 // loop_footer_branch
    %10 = sbr.rel target = $region3
  $region8: #{res_block_pallas.1} parent=0 // loop_exit
    _

</llo_original>
